<compile_context>
chip_gen: v5e
topology: v5e:2x2
jax: 0.10.0
libtpu: 0.0.40
codegen_flags: <defaults>
</compile_context>

<pallas_src>
import functools

import jax
import jax.numpy as jnp
from jax import lax
from jax.experimental import pallas as pl
from jax.experimental.pallas import tpu as pltpu


def _round_up(a, m):
    return ((a + m - 1) // m) * m


def tsmixer_kernel(x_ref, wmix_ref, bmix_ref, wcls_ref, bcls_ref, out_ref,
                   *, num_layers, mxu_dtype):
    """One batch-tile of the whole TSMixer forward pass.

    x_ref    : (TB, F)      input tile (batch on sublanes, features on lanes)
    wmix_ref : (2L, F, F)   stacked mixer weights, already (in, out) layout, mxu_dtype
    bmix_ref : (2L, F)      stacked mixer biases, f32
    wcls_ref : (F, C_pad)   classifier weight, already (in, out), lane-padded, mxu_dtype
    bcls_ref : (1, C_pad)   classifier bias, f32 (padded classes hold -1e30)
    out_ref  : (TB, C_pad)  softmax probabilities (padded classes are exactly 0)
    """
    # Residual chain runs in f32 regardless of the MXU operand dtype.
    x = x_ref[...].astype(jnp.float32)

    def layer(l, x):
        w = wmix_ref[l]                         # (F, F) -- no transpose, no astype
        b = bmix_ref[pl.ds(l, 1), :]            # (1, F) f32
        y = x + jnp.dot(x.astype(mxu_dtype), w,
                        preferred_element_type=jnp.float32) + b
        return jnp.maximum(y, 0.0)

    # 2 * num_mixer_layers residual Linear+ReLU blocks (feature mixers then time
    # mixers -- structurally identical since x stays [B, F] throughout).
    if num_layers <= 8:
        # Short stacks: full unroll (LLO scheduler visibility).
        for l in range(num_layers):
            x = layer(l, x)
    else:
        # Deep stacks: bounded vreg live ranges / code size.
        x = lax.fori_loop(0, num_layers, layer, x)

    # Classifier: logits = x @ Wc + bc (f32 accumulation + f32 bias, so the
    # -1e30 padded-class bias underflows exp() to exactly 0).
    logits = jnp.dot(x.astype(mxu_dtype), wcls_ref[...],
                     preferred_element_type=jnp.float32) + bcls_ref[...]

    # Softmax over the class axis.
    m = jnp.max(logits, axis=1, keepdims=True)
    e = jnp.exp(logits - m)
    denom = jnp.sum(e, axis=1, keepdims=True)
    r = pl.reciprocal(denom, approx=True)       # EUP slot
    r = r * (2.0 - denom * r)                   # one Newton step -> f32 accurate
    out_ref[...] = (e * r).astype(out_ref.dtype)


def tsmixer_forward(x, wmix, bmix, wcls, bcls, *, num_mixer_layers,
                    tile_b=512, mxu_dtype=jnp.float32, out_dtype=jnp.bfloat16):
    """x: (B, F); wmix: (2L, F, F) PyTorch (out,in); bmix: (2L, F);
    wcls: (C, F); bcls: (C,).  Returns softmax probabilities (B, C) in out_dtype."""
    B, F = x.shape
    C = wcls.shape[0]
    L2 = 2 * num_mixer_layers
    assert wmix.shape == (L2, F, F)

    # ---- layout plumbing, done ONCE in the wrapper (HBM), not per grid step --
    # (out,in) -> (in,out) so the kernel does x @ W with no in-kernel transpose.
    wmix_t = jnp.transpose(wmix, (0, 2, 1)).astype(mxu_dtype)       # (2L, F, F)
    # Lane-dense classifier: pad the class axis up to a multiple of 128.
    c_pad = max(128, _round_up(C, 128))
    wcls_t = jnp.zeros((F, c_pad), mxu_dtype).at[:, :C].set(
        wcls.T.astype(mxu_dtype))                                   # (F, C_pad)
    # Padded classes get a huge negative bias -> softmax prob exactly 0.
    bcls_p = jnp.full((1, c_pad), -1e30, jnp.float32).at[0, :C].set(
        bcls.astype(jnp.float32))                                   # (1, C_pad)
    bmix_f = bmix.astype(jnp.float32)                               # (2L, F)

    # ---- batch tiling ---------------------------------------------------------
    b_ceil8 = _round_up(max(B, 1), 8)
    tile_b = max(8, min(_round_up(int(tile_b), 8), b_ceil8))
    # v7x megacore: make sure the batch grid has >= 2 steps when there is enough
    # batch to split, so ("parallel",) can shard across both TensorCores.
    if b_ceil8 >= 16:
        tile_b = min(tile_b, _round_up((b_ceil8 + 1) // 2, 8))
    b_pad = _round_up(B, tile_b)
    x_p = x if b_pad == B else jnp.pad(x, ((0, b_pad - B), (0, 0)))
    # Ship the input in the MXU dtype (halves input DMA on the bf16 path; the
    # kernel upcasts to f32 once for the residual chain).
    x_p = x_p.astype(mxu_dtype)

    # ---- VMEM budget / compiler params ---------------------------------------
    w_item = jnp.dtype(mxu_dtype).itemsize
    weight_bytes = L2 * F * F * w_item + F * c_pad * w_item + L2 * F * 4 + c_pad * 4
    io_bytes = (2 * tile_b * F * jnp.dtype(mxu_dtype).itemsize +
                2 * tile_b * c_pad * jnp.dtype(out_dtype).itemsize)
    need = 2 * (weight_bytes + io_bytes)          # conservative (double-buffer all)
    vmem_limit = None if need < (16 << 20) else int(min(need + (4 << 20), 64 << 20))
    compiler_params = pltpu.CompilerParams(
        dimension_semantics=("parallel",), vmem_limit_bytes=vmem_limit)

    kernel = functools.partial(tsmixer_kernel, num_layers=L2, mxu_dtype=mxu_dtype)

    def build_call(single_buffer_weights):
        def const_spec(shape):
            idx = lambda i, _n=len(shape): (0,) * _n
            if single_buffer_weights:
                # Grid-invariant operands: fetched once, one buffer is enough.
                return pl.BlockSpec(shape, idx, pipeline_mode=pl.Buffered(1))
            return pl.BlockSpec(shape, idx)

        return pl.pallas_call(
            kernel,
            out_shape=jax.ShapeDtypeStruct((b_pad, c_pad), out_dtype),
            grid_spec=pltpu.PrefetchScalarGridSpec(
                num_scalar_prefetch=0,
                grid=(b_pad // tile_b,),
                in_specs=[
                    pl.BlockSpec((tile_b, F), lambda i: (i, 0)),    # x tile
                    const_spec((L2, F, F)),                         # mixer W (resident)
                    const_spec((L2, F)),                            # mixer b
                    const_spec((F, c_pad)),                         # classifier W
                    const_spec((1, c_pad)),                         # classifier b
                ],
                out_specs=pl.BlockSpec((tile_b, c_pad), lambda i: (i, 0)),
            ),
            compiler_params=compiler_params,
        )

    args = (x_p, wmix_t, bmix_f, wcls_t, bcls_p)
    try:
        out = build_call(True)(*args)
    except Exception:
        # Fallback if this JAX build rejects pipeline_mode=Buffered(1) here.
        out = build_call(False)(*args)

    return out[:B, :C]


def tsmixer_reference(x, wmix, bmix, wcls, bcls, num_mixer_layers):
    """Pure-JAX reference mirroring the PyTorch forward (PyTorch weight layout)."""
    for l in range(2 * num_mixer_layers):
        x = jax.nn.relu(x + (x @ wmix[l].T + bmix[l]))
    logits = x @ wcls.T + bcls
    return jax.nn.softmax(logits, axis=1)


if __name__ == "__main__":
    num_features = 32
    num_classes = 8
    num_mixer_layers = 2
    L2 = 2 * num_mixer_layers

    key = jax.random.PRNGKey(0)
    kx, kw, kb, kcw, kcb, kx2 = jax.random.split(key, 6)

    # PyTorch Linear shapes: W = (out, in), b = (out,)
    scale = 1.0 / jnp.sqrt(num_features)
    wmix = jax.random.uniform(kw, (L2, num_features, num_features),
                              minval=-scale, maxval=scale, dtype=jnp.float32)
    bmix = jax.random.uniform(kb, (L2, num_features),
                              minval=-scale, maxval=scale, dtype=jnp.float32)
    wcls = jax.random.uniform(kcw, (num_classes, num_features),
                              minval=-scale, maxval=scale, dtype=jnp.float32)
    bcls = jax.random.uniform(kcb, (num_classes,),
                              minval=-scale, maxval=scale, dtype=jnp.float32)

    batch = 512
    x = jax.random.normal(kx, (batch, num_features), dtype=jnp.float32)
    ref = tsmixer_reference(x, wmix, bmix, wcls, bcls, num_mixer_layers)

    # 1) Strict f32 path (f32 MXU operands, f32 output): bit-tight check.
    out_f32 = jax.block_until_ready(
        tsmixer_forward(x, wmix, bmix, wcls, bcls,
                        num_mixer_layers=num_mixer_layers,
                        mxu_dtype=jnp.float32, out_dtype=jnp.float32))
    assert out_f32.shape == (batch, num_classes)
    assert jnp.allclose(out_f32, ref, atol=1e-5, rtol=1e-5), "f32 mismatch vs reference"
    assert jnp.allclose(jnp.sum(out_f32, axis=1), 1.0, atol=1e-5), "rows must sum to 1"

    # 2) Default perf path (bf16 output writeback, f32 MXU): probabilities in
    #    [0,1] tolerate bf16 rounding easily.
    out_def = jax.block_until_ready(
        tsmixer_forward(x, wmix, bmix, wcls, bcls,
                        num_mixer_layers=num_mixer_layers))
    assert out_def.shape == (batch, num_classes)
    assert jnp.allclose(out_def.astype(jnp.float32), ref, atol=1e-2), "bf16-out mismatch"
    assert jnp.allclose(jnp.sum(out_def.astype(jnp.float32), axis=1), 1.0, atol=1e-2)

    # 3) Ragged batch (exercises the pad/clamp + 2-step-grid path), strict f32.
    x2 = jax.random.normal(kx2, (19, num_features), dtype=jnp.float32)
    out2 = jax.block_until_ready(
        tsmixer_forward(x2, wmix, bmix, wcls, bcls,
                        num_mixer_layers=num_mixer_layers,
                        mxu_dtype=jnp.float32, out_dtype=jnp.float32))
    ref2 = tsmixer_reference(x2, wmix, bmix, wcls, bcls, num_mixer_layers)
    assert out2.shape == (19, num_classes)
    assert jnp.allclose(out2, ref2, atol=1e-5, rtol=1e-5), "ragged mismatch"

    # 4) bf16-MXU path (recommended on v6e/v7x): bf16 operands + bf16 input DMA,
    #    f32 accumulation / residual / softmax; loose tolerance.
    out_bf16 = jax.block_until_ready(
        tsmixer_forward(x, wmix, bmix, wcls, bcls,
                        num_mixer_layers=num_mixer_layers,
                        mxu_dtype=jnp.bfloat16, out_dtype=jnp.bfloat16))
    assert jnp.allclose(jnp.sum(out_bf16.astype(jnp.float32), axis=1), 1.0, atol=1e-2)
    assert jnp.allclose(out_bf16.astype(jnp.float32), ref, atol=5e-2), "bf16 path diverged"

    print("KERNEL_OK")
</pallas_src>

<mosaic_0001>
module attributes {stable_mosaic.version = 11 : i64} {
  func.func @tsmixer_kernel(%arg0: i32, %arg1: memref<256x32xf32, #tpu.memory_space<vmem>>, %arg2: memref<4x32x32xf32, #tpu.memory_space<vmem>>, %arg3: memref<4x32xf32, #tpu.memory_space<vmem>>, %arg4: memref<32x128xf32, #tpu.memory_space<vmem>>, %arg5: memref<1x128xf32, #tpu.memory_space<vmem>>, %arg6: memref<256x128xf32, #tpu.memory_space<vmem>>) attributes {dimension_semantics = [#tpu.dimension_semantics<parallel>], iteration_bounds = array<i64: 2>, scalar_prefetch = 0 : i64, scratch_operands = 0 : i64, tpu.core_type = #tpu.core_type<tc>, window_params = [{transform_indices = @transform_0, window_bounds = array<i64: 256, 32>}, {pipeline_mode = #tpu.pipeline_mode<synchronous>, transform_indices = @transform_1, window_bounds = array<i64: 4, 32, 32>}, {pipeline_mode = #tpu.pipeline_mode<synchronous>, transform_indices = @transform_2, window_bounds = array<i64: 4, 32>}, {pipeline_mode = #tpu.pipeline_mode<synchronous>, transform_indices = @transform_3, window_bounds = array<i64: 32, 128>}, {pipeline_mode = #tpu.pipeline_mode<synchronous>, transform_indices = @transform_4, window_bounds = array<i64: 1, 128>}, {transform_indices = @transform_5, window_bounds = array<i64: 256, 128>}]} {
    %c0 = arith.constant 0 : index
    %c0_0 = arith.constant 0 : index
    %0 = vector.load %arg1[%c0, %c0_0] : memref<256x32xf32, #tpu.memory_space<vmem>>, vector<256x32xf32>
    %c0_1 = arith.constant 0 : index
    %c0_2 = arith.constant 0 : index
    %c0_3 = arith.constant 0 : index
    %1 = vector.load %arg2[%c0_1, %c0_2, %c0_3] : memref<4x32x32xf32, #tpu.memory_space<vmem>>, vector<1x32x32xf32>
    %2 = vector.shape_cast %1 : vector<1x32x32xf32> to vector<32x32xf32>
    %c0_4 = arith.constant 0 : index
    %c0_5 = arith.constant 0 : index
    %3 = vector.load %arg3[%c0_4, %c0_5] : memref<4x32xf32, #tpu.memory_space<vmem>>, vector<1x32xf32>
    %cst = arith.constant dense<0.000000e+00> : vector<256x32xf32>
    %4 = tpu.matmul %0, %2, %cst {dimension_numbers = #tpu.dot_dimension_numbers<[1], [0], [0], [1], [0, 0, 1, 1], [], []>} : vector<256x32xf32>, vector<32x32xf32>, vector<256x32xf32> -> vector<256x32xf32>
    %5 = arith.addf %0, %4 : vector<256x32xf32>
    %6 = vector.broadcast %3 : vector<1x32xf32> to vector<256x32xf32>
    %7 = arith.addf %5, %6 : vector<256x32xf32>
    %cst_6 = arith.constant 0.000000e+00 : f32
    %8 = vector.broadcast %cst_6 : f32 to vector<256x32xf32>
    %9 = arith.maximumf %7, %8 : vector<256x32xf32>
    %c1 = arith.constant 1 : index
    %c0_7 = arith.constant 0 : index
    %c0_8 = arith.constant 0 : index
    %10 = vector.load %arg2[%c1, %c0_7, %c0_8] : memref<4x32x32xf32, #tpu.memory_space<vmem>>, vector<1x32x32xf32>
    %11 = vector.shape_cast %10 : vector<1x32x32xf32> to vector<32x32xf32>
    %c1_9 = arith.constant 1 : index
    %c0_10 = arith.constant 0 : index
    %12 = vector.load %arg3[%c1_9, %c0_10] : memref<4x32xf32, #tpu.memory_space<vmem>>, vector<1x32xf32>
    %cst_11 = arith.constant dense<0.000000e+00> : vector<256x32xf32>
    %13 = tpu.matmul %9, %11, %cst_11 {dimension_numbers = #tpu.dot_dimension_numbers<[1], [0], [0], [1], [0, 0, 1, 1], [], []>} : vector<256x32xf32>, vector<32x32xf32>, vector<256x32xf32> -> vector<256x32xf32>
    %14 = arith.addf %9, %13 : vector<256x32xf32>
    %15 = vector.broadcast %12 : vector<1x32xf32> to vector<256x32xf32>
    %16 = arith.addf %14, %15 : vector<256x32xf32>
    %cst_12 = arith.constant 0.000000e+00 : f32
    %17 = vector.broadcast %cst_12 : f32 to vector<256x32xf32>
    %18 = arith.maximumf %16, %17 : vector<256x32xf32>
    %c2 = arith.constant 2 : index
    %c0_13 = arith.constant 0 : index
    %c0_14 = arith.constant 0 : index
    %19 = vector.load %arg2[%c2, %c0_13, %c0_14] : memref<4x32x32xf32, #tpu.memory_space<vmem>>, vector<1x32x32xf32>
    %20 = vector.shape_cast %19 : vector<1x32x32xf32> to vector<32x32xf32>
    %c2_15 = arith.constant 2 : index
    %c0_16 = arith.constant 0 : index
    %21 = vector.load %arg3[%c2_15, %c0_16] : memref<4x32xf32, #tpu.memory_space<vmem>>, vector<1x32xf32>
    %cst_17 = arith.constant dense<0.000000e+00> : vector<256x32xf32>
    %22 = tpu.matmul %18, %20, %cst_17 {dimension_numbers = #tpu.dot_dimension_numbers<[1], [0], [0], [1], [0, 0, 1, 1], [], []>} : vector<256x32xf32>, vector<32x32xf32>, vector<256x32xf32> -> vector<256x32xf32>
    %23 = arith.addf %18, %22 : vector<256x32xf32>
    %24 = vector.broadcast %21 : vector<1x32xf32> to vector<256x32xf32>
    %25 = arith.addf %23, %24 : vector<256x32xf32>
    %cst_18 = arith.constant 0.000000e+00 : f32
    %26 = vector.broadcast %cst_18 : f32 to vector<256x32xf32>
    %27 = arith.maximumf %25, %26 : vector<256x32xf32>
    %c3 = arith.constant 3 : index
    %c0_19 = arith.constant 0 : index
    %c0_20 = arith.constant 0 : index
    %28 = vector.load %arg2[%c3, %c0_19, %c0_20] : memref<4x32x32xf32, #tpu.memory_space<vmem>>, vector<1x32x32xf32>
    %29 = vector.shape_cast %28 : vector<1x32x32xf32> to vector<32x32xf32>
    %c3_21 = arith.constant 3 : index
    %c0_22 = arith.constant 0 : index
    %30 = vector.load %arg3[%c3_21, %c0_22] : memref<4x32xf32, #tpu.memory_space<vmem>>, vector<1x32xf32>
    %cst_23 = arith.constant dense<0.000000e+00> : vector<256x32xf32>
    %31 = tpu.matmul %27, %29, %cst_23 {dimension_numbers = #tpu.dot_dimension_numbers<[1], [0], [0], [1], [0, 0, 1, 1], [], []>} : vector<256x32xf32>, vector<32x32xf32>, vector<256x32xf32> -> vector<256x32xf32>
    %32 = arith.addf %27, %31 : vector<256x32xf32>
    %33 = vector.broadcast %30 : vector<1x32xf32> to vector<256x32xf32>
    %34 = arith.addf %32, %33 : vector<256x32xf32>
    %cst_24 = arith.constant 0.000000e+00 : f32
    %35 = vector.broadcast %cst_24 : f32 to vector<256x32xf32>
    %36 = arith.maximumf %34, %35 : vector<256x32xf32>
    %c0_25 = arith.constant 0 : index
    %c0_26 = arith.constant 0 : index
    %37 = vector.load %arg4[%c0_25, %c0_26] : memref<32x128xf32, #tpu.memory_space<vmem>>, vector<32x128xf32>
    %cst_27 = arith.constant dense<0.000000e+00> : vector<256x128xf32>
    %38 = tpu.matmul %36, %37, %cst_27 {dimension_numbers = #tpu.dot_dimension_numbers<[1], [0], [0], [1], [0, 0, 1, 1], [], []>} : vector<256x32xf32>, vector<32x128xf32>, vector<256x128xf32> -> vector<256x128xf32>
    %c0_28 = arith.constant 0 : index
    %c0_29 = arith.constant 0 : index
    %39 = vector.load %arg5[%c0_28, %c0_29] : memref<1x128xf32, #tpu.memory_space<vmem>>, vector<1x128xf32>
    %40 = vector.broadcast %39 : vector<1x128xf32> to vector<256x128xf32>
    %41 = arith.addf %38, %40 : vector<256x128xf32>
    %cst_30 = arith.constant dense<0xFF800000> : vector<256xf32>
    %42 = vector.multi_reduction <maximumf>, %41, %cst_30 [1] : vector<256x128xf32> to vector<256xf32>
    %43 = vector.shape_cast %42 : vector<256xf32> to vector<256x1xf32>
    %44 = vector.broadcast %43 : vector<256x1xf32> to vector<256x128xf32>
    %45 = arith.subf %41, %44 : vector<256x128xf32>
    %46 = math.exp %45 : vector<256x128xf32>
    %cst_31 = arith.constant dense<0.000000e+00> : vector<256xf32>
    %47 = vector.multi_reduction <add>, %46, %cst_31 [1] : vector<256x128xf32> to vector<256xf32>
    %48 = vector.shape_cast %47 : vector<256xf32> to vector<256x1xf32>
    %49 = tpu.reciprocal %48 {approx = true} : vector<256x1xf32> -> vector<256x1xf32>
    %50 = arith.mulf %48, %49 : vector<256x1xf32>
    %cst_32 = arith.constant 2.000000e+00 : f32
    %51 = vector.broadcast %cst_32 : f32 to vector<256x1xf32>
    %52 = arith.subf %51, %50 : vector<256x1xf32>
    %53 = arith.mulf %49, %52 : vector<256x1xf32>
    %54 = vector.broadcast %53 : vector<256x1xf32> to vector<256x128xf32>
    %55 = arith.mulf %46, %54 : vector<256x128xf32>
    %c0_33 = arith.constant 0 : index
    %c0_34 = arith.constant 0 : index
    %56 = vector.load %arg6[%c0_33, %c0_34] : memref<256x128xf32, #tpu.memory_space<vmem>>, vector<256x128xf32>
    tpu.vector_store %arg6[%c0_33, %c0_34], %55 {strides = array<i32>} : memref<256x128xf32, #tpu.memory_space<vmem>>, vector<256x128xf32>,
    return
  }
  func.func @transform_0(%arg0: i32) -> (i32, i32) {
    %c0_i32 = arith.constant 0 : i32
    %c0_i32_0 = arith.constant 0 : i32
    return %arg0, %c0_i32 : i32, i32
  }
  func.func @transform_1(%arg0: i32) -> (i32, i32, i32) {
    %c0_i32 = arith.constant 0 : i32
    %c0_i32_0 = arith.constant 0 : i32
    %c0_i32_1 = arith.constant 0 : i32
    %c0_i32_2 = arith.constant 0 : i32
    return %c0_i32, %c0_i32_0, %c0_i32_1 : i32, i32, i32
  }
  func.func @transform_2(%arg0: i32) -> (i32, i32) {
    %c0_i32 = arith.constant 0 : i32
    %c0_i32_0 = arith.constant 0 : i32
    %c0_i32_1 = arith.constant 0 : i32
    return %c0_i32, %c0_i32_0 : i32, i32
  }
  func.func @transform_3(%arg0: i32) -> (i32, i32) {
    %c0_i32 = arith.constant 0 : i32
    %c0_i32_0 = arith.constant 0 : i32
    %c0_i32_1 = arith.constant 0 : i32
    return %c0_i32, %c0_i32_0 : i32, i32
  }
  func.func @transform_4(%arg0: i32) -> (i32, i32) {
    %c0_i32 = arith.constant 0 : i32
    %c0_i32_0 = arith.constant 0 : i32
    %c0_i32_1 = arith.constant 0 : i32
    return %c0_i32, %c0_i32_0 : i32, i32
  }
  func.func @transform_5(%arg0: i32) -> (i32, i32) {
    %c0_i32 = arith.constant 0 : i32
    %c0_i32_0 = arith.constant 0 : i32
    return %arg0, %c0_i32 : i32, i32
  }
}

module attributes {stable_mosaic.version = 11 : i64} {
  func.func @tsmixer_kernel(%arg0: i32, %arg1: memref<256x32xf32, #tpu.memory_space<vmem>>, %arg2: memref<4x32x32xf32, #tpu.memory_space<vmem>>, %arg3: memref<4x32xf32, #tpu.memory_space<vmem>>, %arg4: memref<32x128xf32, #tpu.memory_space<vmem>>, %arg5: memref<1x128xf32, #tpu.memory_space<vmem>>, %arg6: memref<256x128xf32, #tpu.memory_space<vmem>>) attributes {dimension_semantics = [#tpu.dimension_semantics<parallel>], iteration_bounds = array<i64: 2>, scalar_prefetch = 0 : i64, scratch_operands = 0 : i64, tpu.core_type = #tpu.core_type<tc>, window_params = [{transform_indices = @transform_0, window_bounds = array<i64: 256, 32>}, {pipeline_mode = #tpu.pipeline_mode<synchronous>, transform_indices = @transform_1, window_bounds = array<i64: 4, 32, 32>}, {pipeline_mode = #tpu.pipeline_mode<synchronous>, transform_indices = @transform_2, window_bounds = array<i64: 4, 32>}, {pipeline_mode = #tpu.pipeline_mode<synchronous>, transform_indices = @transform_3, window_bounds = array<i64: 32, 128>}, {pipeline_mode = #tpu.pipeline_mode<synchronous>, transform_indices = @transform_4, window_bounds = array<i64: 1, 128>}, {transform_indices = @transform_5, window_bounds = array<i64: 256, 128>}]} {
    %c0 = arith.constant 0 : index
    %c0_0 = arith.constant 0 : index
    %0 = vector.load %arg1[%c0, %c0_0] : memref<256x32xf32, #tpu.memory_space<vmem>>, vector<256x32xf32>
    %c0_1 = arith.constant 0 : index
    %c0_2 = arith.constant 0 : index
    %c0_3 = arith.constant 0 : index
    %1 = vector.load %arg2[%c0_1, %c0_2, %c0_3] : memref<4x32x32xf32, #tpu.memory_space<vmem>>, vector<1x32x32xf32>
    %2 = vector.shape_cast %1 : vector<1x32x32xf32> to vector<32x32xf32>
    %c0_4 = arith.constant 0 : index
    %c0_5 = arith.constant 0 : index
    %3 = vector.load %arg3[%c0_4, %c0_5] : memref<4x32xf32, #tpu.memory_space<vmem>>, vector<1x32xf32>
    %cst = arith.constant dense<0.000000e+00> : vector<256x32xf32>
    %4 = tpu.matmul %0, %2, %cst {dimension_numbers = #tpu.dot_dimension_numbers<[1], [0], [0], [1], [0, 0, 1, 1], [], []>} : vector<256x32xf32>, vector<32x32xf32>, vector<256x32xf32> -> vector<256x32xf32>
    %5 = arith.addf %0, %4 : vector<256x32xf32>
    %6 = vector.broadcast %3 : vector<1x32xf32> to vector<256x32xf32>
    %7 = arith.addf %5, %6 : vector<256x32xf32>
    %cst_6 = arith.constant 0.000000e+00 : f32
    %8 = vector.broadcast %cst_6 : f32 to vector<256x32xf32>
    %9 = arith.maximumf %7, %8 : vector<256x32xf32>
    %c1 = arith.constant 1 : index
    %c0_7 = arith.constant 0 : index
    %c0_8 = arith.constant 0 : index
    %10 = vector.load %arg2[%c1, %c0_7, %c0_8] : memref<4x32x32xf32, #tpu.memory_space<vmem>>, vector<1x32x32xf32>
    %11 = vector.shape_cast %10 : vector<1x32x32xf32> to vector<32x32xf32>
    %c1_9 = arith.constant 1 : index
    %c0_10 = arith.constant 0 : index
    %12 = vector.load %arg3[%c1_9, %c0_10] : memref<4x32xf32, #tpu.memory_space<vmem>>, vector<1x32xf32>
    %cst_11 = arith.constant dense<0.000000e+00> : vector<256x32xf32>
    %13 = tpu.matmul %9, %11, %cst_11 {dimension_numbers = #tpu.dot_dimension_numbers<[1], [0], [0], [1], [0, 0, 1, 1], [], []>} : vector<256x32xf32>, vector<32x32xf32>, vector<256x32xf32> -> vector<256x32xf32>
    %14 = arith.addf %9, %13 : vector<256x32xf32>
    %15 = vector.broadcast %12 : vector<1x32xf32> to vector<256x32xf32>
    %16 = arith.addf %14, %15 : vector<256x32xf32>
    %cst_12 = arith.constant 0.000000e+00 : f32
    %17 = vector.broadcast %cst_12 : f32 to vector<256x32xf32>
    %18 = arith.maximumf %16, %17 : vector<256x32xf32>
    %c2 = arith.constant 2 : index
    %c0_13 = arith.constant 0 : index
    %c0_14 = arith.constant 0 : index
    %19 = vector.load %arg2[%c2, %c0_13, %c0_14] : memref<4x32x32xf32, #tpu.memory_space<vmem>>, vector<1x32x32xf32>
    %20 = vector.shape_cast %19 : vector<1x32x32xf32> to vector<32x32xf32>
    %c2_15 = arith.constant 2 : index
    %c0_16 = arith.constant 0 : index
    %21 = vector.load %arg3[%c2_15, %c0_16] : memref<4x32xf32, #tpu.memory_space<vmem>>, vector<1x32xf32>
    %cst_17 = arith.constant dense<0.000000e+00> : vector<256x32xf32>
    %22 = tpu.matmul %18, %20, %cst_17 {dimension_numbers = #tpu.dot_dimension_numbers<[1], [0], [0], [1], [0, 0, 1, 1], [], []>} : vector<256x32xf32>, vector<32x32xf32>, vector<256x32xf32> -> vector<256x32xf32>
    %23 = arith.addf %18, %22 : vector<256x32xf32>
    %24 = vector.broadcast %21 : vector<1x32xf32> to vector<256x32xf32>
    %25 = arith.addf %23, %24 : vector<256x32xf32>
    %cst_18 = arith.constant 0.000000e+00 : f32
    %26 = vector.broadcast %cst_18 : f32 to vector<256x32xf32>
    %27 = arith.maximumf %25, %26 : vector<256x32xf32>
    %c3 = arith.constant 3 : index
    %c0_19 = arith.constant 0 : index
    %c0_20 = arith.constant 0 : index
    %28 = vector.load %arg2[%c3, %c0_19, %c0_20] : memref<4x32x32xf32, #tpu.memory_space<vmem>>, vector<1x32x32xf32>
    %29 = vector.shape_cast %28 : vector<1x32x32xf32> to vector<32x32xf32>
    %c3_21 = arith.constant 3 : index
    %c0_22 = arith.constant 0 : index
    %30 = vector.load %arg3[%c3_21, %c0_22] : memref<4x32xf32, #tpu.memory_space<vmem>>, vector<1x32xf32>
    %cst_23 = arith.constant dense<0.000000e+00> : vector<256x32xf32>
    %31 = tpu.matmul %27, %29, %cst_23 {dimension_numbers = #tpu.dot_dimension_numbers<[1], [0], [0], [1], [0, 0, 1, 1], [], []>} : vector<256x32xf32>, vector<32x32xf32>, vector<256x32xf32> -> vector<256x32xf32>
    %32 = arith.addf %27, %31 : vector<256x32xf32>
    %33 = vector.broadcast %30 : vector<1x32xf32> to vector<256x32xf32>
    %34 = arith.addf %32, %33 : vector<256x32xf32>
    %cst_24 = arith.constant 0.000000e+00 : f32
    %35 = vector.broadcast %cst_24 : f32 to vector<256x32xf32>
    %36 = arith.maximumf %34, %35 : vector<256x32xf32>
    %c0_25 = arith.constant 0 : index
    %c0_26 = arith.constant 0 : index
    %37 = vector.load %arg4[%c0_25, %c0_26] : memref<32x128xf32, #tpu.memory_space<vmem>>, vector<32x128xf32>
    %cst_27 = arith.constant dense<0.000000e+00> : vector<256x128xf32>
    %38 = tpu.matmul %36, %37, %cst_27 {dimension_numbers = #tpu.dot_dimension_numbers<[1], [0], [0], [1], [0, 0, 1, 1], [], []>} : vector<256x32xf32>, vector<32x128xf32>, vector<256x128xf32> -> vector<256x128xf32>
    %c0_28 = arith.constant 0 : index
    %c0_29 = arith.constant 0 : index
    %39 = vector.load %arg5[%c0_28, %c0_29] : memref<1x128xf32, #tpu.memory_space<vmem>>, vector<1x128xf32>
    %40 = vector.broadcast %39 : vector<1x128xf32> to vector<256x128xf32>
    %41 = arith.addf %38, %40 : vector<256x128xf32>
    %cst_30 = arith.constant dense<0xFF800000> : vector<256xf32>
    %42 = vector.multi_reduction <maximumf>, %41, %cst_30 [1] : vector<256x128xf32> to vector<256xf32>
    %43 = vector.shape_cast %42 : vector<256xf32> to vector<256x1xf32>
    %44 = vector.broadcast %43 : vector<256x1xf32> to vector<256x128xf32>
    %45 = arith.subf %41, %44 : vector<256x128xf32>
    %46 = math.exp %45 : vector<256x128xf32>
    %cst_31 = arith.constant dense<0.000000e+00> : vector<256xf32>
    %47 = vector.multi_reduction <add>, %46, %cst_31 [1] : vector<256x128xf32> to vector<256xf32>
    %48 = vector.shape_cast %47 : vector<256xf32> to vector<256x1xf32>
    %49 = tpu.reciprocal %48 {approx = true} : vector<256x1xf32> -> vector<256x1xf32>
    %50 = arith.mulf %48, %49 : vector<256x1xf32>
    %cst_32 = arith.constant 2.000000e+00 : f32
    %51 = vector.broadcast %cst_32 : f32 to vector<256x1xf32>
    %52 = arith.subf %51, %50 : vector<256x1xf32>
    %53 = arith.mulf %49, %52 : vector<256x1xf32>
    %54 = vector.broadcast %53 : vector<256x1xf32> to vector<256x128xf32>
    %55 = arith.mulf %46, %54 : vector<256x128xf32>
    %c0_33 = arith.constant 0 : index
    %c0_34 = arith.constant 0 : index
    %56 = vector.load %arg6[%c0_33, %c0_34] : memref<256x128xf32, #tpu.memory_space<vmem>>, vector<256x128xf32>
    tpu.vector_store %arg6[%c0_33, %c0_34], %55 {strides = array<i32>} : memref<256x128xf32, #tpu.memory_space<vmem>>, vector<256x128xf32>,
    return
  }
  func.func @transform_0(%arg0: i32) -> (i32, i32) {
    %c0_i32 = arith.constant 0 : i32
    %c0_i32_0 = arith.constant 0 : i32
    return %arg0, %c0_i32 : i32, i32
  }
  func.func @transform_1(%arg0: i32) -> (i32, i32, i32) {
    %c0_i32 = arith.constant 0 : i32
    %c0_i32_0 = arith.constant 0 : i32
    %c0_i32_1 = arith.constant 0 : i32
    %c0_i32_2 = arith.constant 0 : i32
    return %c0_i32, %c0_i32_0, %c0_i32_1 : i32, i32, i32
  }
  func.func @transform_2(%arg0: i32) -> (i32, i32) {
    %c0_i32 = arith.constant 0 : i32
    %c0_i32_0 = arith.constant 0 : i32
    %c0_i32_1 = arith.constant 0 : i32
    return %c0_i32, %c0_i32_0 : i32, i32
  }
  func.func @transform_3(%arg0: i32) -> (i32, i32) {
    %c0_i32 = arith.constant 0 : i32
    %c0_i32_0 = arith.constant 0 : i32
    %c0_i32_1 = arith.constant 0 : i32
    return %c0_i32, %c0_i32_0 : i32, i32
  }
  func.func @transform_4(%arg0: i32) -> (i32, i32) {
    %c0_i32 = arith.constant 0 : i32
    %c0_i32_0 = arith.constant 0 : i32
    %c0_i32_1 = arith.constant 0 : i32
    return %c0_i32, %c0_i32_0 : i32, i32
  }
  func.func @transform_5(%arg0: i32) -> (i32, i32) {
    %c0_i32 = arith.constant 0 : i32
    %c0_i32_0 = arith.constant 0 : i32
    return %arg0, %c0_i32 : i32, i32
  }
}

</mosaic_0001>

<llo_original>
// kernel: tpu_custom_call.1
$region0: #{tpu_custom_call.1}
  #allocation0 [shape = 'u32[]', space=smem, size = 0x4, offset = 0x4, fixed_abs, tag = 'smem constant byte address 0x4 - core index']
  #allocation1 [shape = 'u32[72,128]{1,0:T(1,128)}', space=vmem, size = 0x9000, scoped, tag = 'internal scratch']
  %s0 = inlined_call_operand.vmem [shape: f32[512,32], index: 0, kind: input, shape index: {}]
  %s1 = inlined_call_operand.vmem [shape: f32[4,32,32], index: 1, kind: input, shape index: {}]
  %s2 = inlined_call_operand.vmem [shape: f32[4,32], index: 2, kind: input, shape index: {}]
  %s3 = inlined_call_operand.vmem [shape: f32[32,128], index: 3, kind: input, shape index: {}]
  %s4 = inlined_call_operand.vmem [shape: f32[1,128], index: 4, kind: input, shape index: {}]
  %s5 = inlined_call_operand.hbm [shape: f32[512,128], index: 5, kind: output, shape index: {}]
  %s6 = sld [smem:[#allocation0]]
  $region53: #{tpu_custom_call.1} parent=0
    _
  %s8 = ssub.s32 1, %s6
  %s9 = scalar_select 0, %s8, %s6
  $region1: #{tpu_custom_call.1} parent=0
    #allocation2 [shape = 'u8[262144]{0}', space=vmem, size = 0x40000, scoped, tag = 'output window, operand 0']
    #allocation3 [shape = 's32[2]{0}', space=sflag, size = 0x8, scoped, tag = 'scoped memory for tpu_custom_call.1']
    %10 = vsyncpa [#allocation3], 0
    %s11 = scalar_lea.sflag [#allocation3], 1
    %12 = vsyncpa %s11, 0
    loop: start=0, step=1, limit=4
    $region2: #{tpu_custom_call.1} parent=1 // loop_pre_header
      _
    $region3: #{tpu_custom_call.1} parent=1 // loop_header
      %s14 = sphi 0, %s18
      %p15 = scmp.ge.s32.totalorder %s14, 4
      %s24 = sphi 0, %s26
      %s27 = sphi 0, %s24
      %s28 = sphi 0, %s27
      %s44 = sphi 0, %s28
      %s48 = sphi 0, %s48
      %s50 = sphi 0, %s48
      %s51 = sphi 0, %s50
      %s65 = sphi 0, %s51
      %s69 = sphi 0, %s69
      %s71 = sphi 0, %s69
      %s72 = sphi 0, %s71
      %s86 = sphi 0, %s72
      %s90 = sphi 0, %s90
      %s92 = sphi 0, %s90
      %s93 = sphi 0, %s92
      %s107 = sphi 0, %s93
      %s111 = sphi 0, %s111
      %s113 = sphi 0, %s111
      %s114 = sphi 0, %s113
      %s128 = sphi 0, %s114
      %s134 = sphi 0, %s136
      %s137 = sphi 0, %s134
      %s138 = sphi 0, %s137
      %s154 = sphi 0, %s138
    $region4: #{tpu_custom_call.1} parent=1 // loop_header_branch
      %17 = sbr.rel (%p15) target = $region8
    $region5: #{tpu_custom_call.1} parent=1 // loop_body
      %s19 = ssub.s32 %s14, 1
      %s20 = ssub.s32 %s14, 2
      %s21 = sadd.s32 %s14, 1
      %s22 = ssub.s32 %s14, %s21
      %p23 = scmp.eq.s32.totalorder %s22, 0
      %s25 = sadd.s32 %s24, 1
      %s26 = scalar_select %p23, %s24, %s25
      %p29 = pneg %p23
      %p30 = scmp.eq.s32.totalorder %s14, 1
      %p31 = por %p29, %p30
      %p32 = scmp.ne.s32.totalorder %s24, %s27
      %p33 = scmp.eq.s32.totalorder %s14, 0
      %p34 = por %p32, %p33
      %p35 = scmp.ne.s32.totalorder %s24, %s27
      %p36 = scmp.eq.s32.totalorder %s19, 1
      %p37 = por %p35, %p36
      %p38 = scmp.ne.s32.totalorder %s27, %s28
      %p39 = scmp.eq.s32.totalorder %s19, 0
      %p40 = por %p38, %p39
      %p41 = scmp.ne.s32.totalorder %s27, %s28
      %p42 = scmp.eq.s32.totalorder %s20, 1
      %p43 = por %p41, %p42
      %p45 = scmp.ne.s32.totalorder %s28, %s44
      %p46 = scmp.eq.s32.totalorder %s20, 0
      %p47 = por %p45, %p46
      %s49 = sadd.s32 %s48, 1
      %p52 = scmp.eq.s32.totalorder %s14, 1
      %p53 = scmp.ne.s32.totalorder %s48, %s50
      %p54 = scmp.eq.s32.totalorder %s14, 0
      %p55 = por %p53, %p54
      %p56 = scmp.ne.s32.totalorder %s48, %s50
      %p57 = scmp.eq.s32.totalorder %s19, 1
      %p58 = por %p56, %p57
      %p59 = scmp.ne.s32.totalorder %s50, %s51
      %p60 = scmp.eq.s32.totalorder %s19, 0
      %p61 = por %p59, %p60
      %p62 = scmp.ne.s32.totalorder %s50, %s51
      %p63 = scmp.eq.s32.totalorder %s20, 1
      %p64 = por %p62, %p63
      %p66 = scmp.ne.s32.totalorder %s51, %s65
      %p67 = scmp.eq.s32.totalorder %s20, 0
      %p68 = por %p66, %p67
      %s70 = sadd.s32 %s69, 1
      %p73 = scmp.eq.s32.totalorder %s14, 1
      %p74 = scmp.ne.s32.totalorder %s69, %s71
      %p75 = scmp.eq.s32.totalorder %s14, 0
      %p76 = por %p74, %p75
      %p77 = scmp.ne.s32.totalorder %s69, %s71
      %p78 = scmp.eq.s32.totalorder %s19, 1
      %p79 = por %p77, %p78
      %p80 = scmp.ne.s32.totalorder %s71, %s72
      %p81 = scmp.eq.s32.totalorder %s19, 0
      %p82 = por %p80, %p81
      %p83 = scmp.ne.s32.totalorder %s71, %s72
      %p84 = scmp.eq.s32.totalorder %s20, 1
      %p85 = por %p83, %p84
      %p87 = scmp.ne.s32.totalorder %s72, %s86
      %p88 = scmp.eq.s32.totalorder %s20, 0
      %p89 = por %p87, %p88
      %s91 = sadd.s32 %s90, 1
      %p94 = scmp.eq.s32.totalorder %s14, 1
      %p95 = scmp.ne.s32.totalorder %s90, %s92
      %p96 = scmp.eq.s32.totalorder %s14, 0
      %p97 = por %p95, %p96
      %p98 = scmp.ne.s32.totalorder %s90, %s92
      %p99 = scmp.eq.s32.totalorder %s19, 1
      %p100 = por %p98, %p99
      %p101 = scmp.ne.s32.totalorder %s92, %s93
      %p102 = scmp.eq.s32.totalorder %s19, 0
      %p103 = por %p101, %p102
      %p104 = scmp.ne.s32.totalorder %s92, %s93
      %p105 = scmp.eq.s32.totalorder %s20, 1
      %p106 = por %p104, %p105
      %p108 = scmp.ne.s32.totalorder %s93, %s107
      %p109 = scmp.eq.s32.totalorder %s20, 0
      %p110 = por %p108, %p109
      %s112 = sadd.s32 %s111, 1
      %p115 = scmp.eq.s32.totalorder %s14, 1
      %p116 = scmp.ne.s32.totalorder %s111, %s113
      %p117 = scmp.eq.s32.totalorder %s14, 0
      %p118 = por %p116, %p117
      %p119 = scmp.ne.s32.totalorder %s111, %s113
      %p120 = scmp.eq.s32.totalorder %s19, 1
      %p121 = por %p119, %p120
      %p122 = scmp.ne.s32.totalorder %s113, %s114
      %p123 = scmp.eq.s32.totalorder %s19, 0
      %p124 = por %p122, %p123
      %p125 = scmp.ne.s32.totalorder %s113, %s114
      %p126 = scmp.eq.s32.totalorder %s20, 1
      %p127 = por %p125, %p126
      %p129 = scmp.ne.s32.totalorder %s114, %s128
      %p130 = scmp.eq.s32.totalorder %s20, 0
      %p131 = por %p129, %p130
      %s132 = ssub.s32 %s14, %s21
      %p133 = scmp.eq.s32.totalorder %s132, 0
      %s135 = sadd.s32 %s134, 1
      %s136 = scalar_select %p133, %s134, %s135
      %p139 = pneg %p133
      %p140 = scmp.eq.s32.totalorder %s14, 1
      %p141 = por %p139, %p140
      %p142 = scmp.ne.s32.totalorder %s134, %s137
      %p143 = scmp.eq.s32.totalorder %s14, 0
      %p144 = por %p142, %p143
      %p145 = scmp.ne.s32.totalorder %s134, %s137
      %p146 = scmp.eq.s32.totalorder %s19, 1
      %p147 = por %p145, %p146
      %p148 = scmp.ne.s32.totalorder %s137, %s138
      %p149 = scmp.eq.s32.totalorder %s19, 0
      %p150 = por %p148, %p149
      %p151 = scmp.ne.s32.totalorder %s137, %s138
      %p152 = scmp.eq.s32.totalorder %s20, 1
      %p153 = por %p151, %p152
      %p155 = scmp.ne.s32.totalorder %s138, %s154
      %p156 = scmp.eq.s32.totalorder %s20, 0
      %p157 = por %p155, %p156
      %p158 = scmp.le.s32.totalorder 1, %s14
      %p159 = scmp.lt.s32.totalorder %s14, 3
      %p160 = pnand %p158, %p159
      %p161 = pneg %p160
      // Predicated region
      $region9: #{tpu_custom_call.1} parent=5 // pred_check
        _
      $region10: #{tpu_custom_call.1} parent=5 // pred_check_branch
        %163 = sbr.rel (%p160) target = $region12
      $region11: #{tpu_custom_call.1} parent=5 // pred_region
        %s164 = ssub.s32 %s14, 1
        // Predicated region
        $region13: #{tpu_custom_call.1} parent=11 // pred_check
          %p165 = pneg %p61
        $region14: #{tpu_custom_call.1} parent=11 // pred_check_branch
          %167 = sbr.rel (%p165) target = $region16
        $region15: #{tpu_custom_call.1} parent=11 // pred_region
          _
        $region16: #{tpu_custom_call.1} parent=11 // pred_fallthru
          _
        // Predicated region
        $region17: #{tpu_custom_call.1} parent=11 // pred_check
          %p168 = pneg %p82
        $region18: #{tpu_custom_call.1} parent=11 // pred_check_branch
          %170 = sbr.rel (%p168) target = $region20
        $region19: #{tpu_custom_call.1} parent=11 // pred_region
          _
        $region20: #{tpu_custom_call.1} parent=11 // pred_fallthru
          _
        // Predicated region
        $region21: #{tpu_custom_call.1} parent=11 // pred_check
          %p171 = pneg %p103
        $region22: #{tpu_custom_call.1} parent=11 // pred_check_branch
          %173 = sbr.rel (%p171) target = $region24
        $region23: #{tpu_custom_call.1} parent=11 // pred_region
          _
        $region24: #{tpu_custom_call.1} parent=11 // pred_fallthru
          _
        // Predicated region
        $region25: #{tpu_custom_call.1} parent=11 // pred_check
          %p174 = pneg %p124
        $region26: #{tpu_custom_call.1} parent=11 // pred_check_branch
          %176 = sbr.rel (%p174) target = $region28
        $region27: #{tpu_custom_call.1} parent=11 // pred_region
          _
        $region28: #{tpu_custom_call.1} parent=11 // pred_fallthru
          _
      $region12: #{tpu_custom_call.1} parent=5 // pred_fallthru
        _
      %p177 = scmp.lt.s32.totalorder %s14, 2
      // Predicated region
      $region29: #{tpu_custom_call.1} parent=5 // pred_check
        %p178 = pneg %p177
      $region30: #{tpu_custom_call.1} parent=5 // pred_check_branch
        %180 = sbr.rel (%p178) target = $region32
      $region31: #{tpu_custom_call.1} parent=5 // pred_region
        // Predicated region
        $region33: #{tpu_custom_call.1} parent=31 // pred_check
          %p181 = pneg %p34
        $region34: #{tpu_custom_call.1} parent=31 // pred_check_branch
          %183 = sbr.rel (%p181) target = $region36
        $region35: #{tpu_custom_call.1} parent=31 // pred_region
          %s184 = smul.u32 32, %s14
          %p185 = scmp.lt.s32.totalorder %s184, 63
          %s186 = scalar_select %p185, %s184, 63
          %s187 = smul.addr %s186, 8
          %s188 = scalar_lea.vmem %s0, %s187
          %s189 = smul.u32 32, %s14
        $region36: #{tpu_custom_call.1} parent=31 // pred_fallthru
          _
      $region32: #{tpu_custom_call.1} parent=5 // pred_fallthru
        _
      %p190 = scmp.le.s32.totalorder 1, %s14
      %p191 = scmp.lt.s32.totalorder %s14, 3
      %p192 = pnand %p190, %p191
      %p193 = pneg %p192
      // Predicated region
      $region37: #{tpu_custom_call.1} parent=5 // pred_check
        _
      $region38: #{tpu_custom_call.1} parent=5 // pred_check_branch
        %195 = sbr.rel (%p192) target = $region40
      $region39: #{tpu_custom_call.1} parent=5 // pred_region
        %s196 = ssub.s32 %s14, 1
        %s197 = smul.u32 32, %s19
        %p198 = scmp.lt.s32.totalorder %s197, 63
        %s199 = scalar_select %p198, %s197, 63
        %s200 = smul.addr %s199, 8
        %s201 = scalar_lea.vmem %s0, %s200
        %p202 = pneg %p40
        %p203 = pneg %p37
        %p204 = pneg %p61
        %p205 = pneg %p58
        %p206 = pneg %p82
        %p207 = pneg %p79
        %p208 = pneg %p103
        %p209 = pneg %p100
        %p210 = pneg %p124
        %p211 = pneg %p121
        %p212 = pneg %p150
        %p213 = pneg %p147
        %s214 = sand.u32 %s137, 1
        %s215 = scalar_lea.sflag [#allocation3], %s214
        %s216 = sand.u32 %s137, 1
        %s217 = smul.addr %s216, 256
        %s218 = scalar_lea.vmem [#allocation2], %s217
        %s219 = smul.u32 32, %s19
        %p220 = scmp.lt.s32.totalorder %s219, 63
        %s221 = scalar_select %p220, %s219, 63
        %s222 = smul.addr %s221, 8
        %s223 = scalar_lea.vmem %s0, %s222
        %s224 = smul.u32 32, %s19
        %s225 = smul.u32 32, %s19
        %v226 = vld [vmem:[%s223] sm:$0xff]
        %v227 = vld [vmem:[%s223 + $0x8] sm:$0xff]
        %v228 = vld [vmem:[%s223 + $0x10] sm:$0xff]
        %v229 = vld [vmem:[%s223 + $0x18] sm:$0xff]
        %v230 = vld [vmem:[%s223 + $0x20] sm:$0xff]
        %v231 = vld [vmem:[%s223 + $0x28] sm:$0xff]
        %v232 = vld [vmem:[%s223 + $0x30] sm:$0xff]
        %v233 = vld [vmem:[%s223 + $0x38] sm:$0xff]
        %v234 = vld [vmem:[%s223 + $0x40] sm:$0xff]
        %v235 = vld [vmem:[%s223 + $0x48] sm:$0xff]
        %v236 = vld [vmem:[%s223 + $0x50] sm:$0xff]
        %v237 = vld [vmem:[%s223 + $0x58] sm:$0xff]
        %v238 = vld [vmem:[%s223 + $0x60] sm:$0xff]
        %v239 = vld [vmem:[%s223 + $0x68] sm:$0xff]
        %v240 = vld [vmem:[%s223 + $0x70] sm:$0xff]
        %v241 = vld [vmem:[%s223 + $0x78] sm:$0xff]
        %v242 = vld [vmem:[%s223 + $0x80] sm:$0xff]
        %v243 = vld [vmem:[%s223 + $0x88] sm:$0xff]
        %v244 = vld [vmem:[%s223 + $0x90] sm:$0xff]
        %v245 = vld [vmem:[%s223 + $0x98] sm:$0xff]
        %v246 = vld [vmem:[%s223 + $0xa0] sm:$0xff]
        %v247 = vld [vmem:[%s223 + $0xa8] sm:$0xff]
        %v248 = vld [vmem:[%s223 + $0xb0] sm:$0xff]
        %v249 = vld [vmem:[%s223 + $0xb8] sm:$0xff]
        %v250 = vld [vmem:[%s223 + $0xc0] sm:$0xff]
        %v251 = vld [vmem:[%s223 + $0xc8] sm:$0xff]
        %v252 = vld [vmem:[%s223 + $0xd0] sm:$0xff]
        %v253 = vld [vmem:[%s223 + $0xd8] sm:$0xff]
        %v254 = vld [vmem:[%s223 + $0xe0] sm:$0xff]
        %v255 = vld [vmem:[%s223 + $0xe8] sm:$0xff]
        %v256 = vld [vmem:[%s223 + $0xf0] sm:$0xff]
        %v257 = vld [vmem:[%s223 + $0xf8] sm:$0xff]
        %v258 = vld [vmem:[%s1] sm:$0xff]
        %v259 = vld [vmem:[%s1 + $0x8] sm:$0xff]
        %v260 = vld [vmem:[%s1 + $0x10] sm:$0xff]
        %v261 = vld [vmem:[%s1 + $0x18] sm:$0xff]
        %v262 = vld [vmem:[%s2] sm:$0x1]
        %vm263 = vcmask 261120
        %v265 = vsel %vm263, %v226, 0
        %v268 = vsel %vm263, %v227, 0
        %v271 = vsel %vm263, %v228, 0
        %v274 = vsel %vm263, %v229, 0
        %v277 = vsel %vm263, %v230, 0
        %v280 = vsel %vm263, %v231, 0
        %v283 = vsel %vm263, %v232, 0
        %v286 = vsel %vm263, %v233, 0
        %v289 = vsel %vm263, %v234, 0
        %v292 = vsel %vm263, %v235, 0
        %v295 = vsel %vm263, %v236, 0
        %v298 = vsel %vm263, %v237, 0
        %v301 = vsel %vm263, %v238, 0
        %v304 = vsel %vm263, %v239, 0
        %v307 = vsel %vm263, %v240, 0
        %v310 = vsel %vm263, %v241, 0
        %v313 = vsel %vm263, %v242, 0
        %v316 = vsel %vm263, %v243, 0
        %v319 = vsel %vm263, %v244, 0
        %v322 = vsel %vm263, %v245, 0
        %v325 = vsel %vm263, %v246, 0
        %v328 = vsel %vm263, %v247, 0
        %v331 = vsel %vm263, %v248, 0
        %v334 = vsel %vm263, %v249, 0
        %v337 = vsel %vm263, %v250, 0
        %v340 = vsel %vm263, %v251, 0
        %v343 = vsel %vm263, %v252, 0
        %v346 = vsel %vm263, %v253, 0
        %v349 = vsel %vm263, %v254, 0
        %v352 = vsel %vm263, %v255, 0
        %v355 = vsel %vm263, %v256, 0
        %v358 = vsel %vm263, %v257, 0
        %360 = vmatpush.msra.mxu0 0.0
        %361 = vmatpush.msra.mxu0 0.0
        %362 = vmatpush.msra.mxu0 0.0
        %363 = vmatpush.msra.mxu0 0.0
        %364 = vmatpush.msra.mxu0 0.0
        %365 = vmatpush.msra.mxu0 0.0
        %366 = vmatpush.msra.mxu0 0.0
        %367 = vmatpush.msra.mxu0 0.0
        %368 = vmatpush.msra.mxu0 0.0
        %369 = vmatpush.msra.mxu0 0.0
        %370 = vmatpush.msra.mxu0 0.0
        %371 = vmatpush.msra.mxu0 0.0
        %372 = vmatpush.msra.mxu0 %v261
        %373 = vmatpush.msra.mxu0 %v260
        %374 = vmatpush.msra.mxu0 %v259
        %375 = vmatpush.msra.mxu0 %v258
        %376 = vmatmul.f32.gmra.mxu0 %v265
        %v377 = vpop.f32.mrf.mxu0
        %v378 = vadd.f32 0.0, %v377
        %379 = vmatmul.f32.gmra.mxu0 %v268
        %v380 = vpop.f32.mrf.mxu0
        %v381 = vadd.f32 0.0, %v380
        %382 = vmatmul.f32.gmra.mxu0 %v271
        %v383 = vpop.f32.mrf.mxu0
        %v384 = vadd.f32 0.0, %v383
        %385 = vmatmul.f32.gmra.mxu0 %v274
        %v386 = vpop.f32.mrf.mxu0
        %v387 = vadd.f32 0.0, %v386
        %388 = vmatmul.f32.gmra.mxu0 %v277
        %v389 = vpop.f32.mrf.mxu0
        %v390 = vadd.f32 0.0, %v389
        %391 = vmatmul.f32.gmra.mxu0 %v280
        %v392 = vpop.f32.mrf.mxu0
        %v393 = vadd.f32 0.0, %v392
        %394 = vmatmul.f32.gmra.mxu0 %v283
        %v395 = vpop.f32.mrf.mxu0
        %v396 = vadd.f32 0.0, %v395
        %397 = vmatmul.f32.gmra.mxu0 %v286
        %v398 = vpop.f32.mrf.mxu0
        %v399 = vadd.f32 0.0, %v398
        %400 = vmatmul.f32.gmra.mxu0 %v289
        %v401 = vpop.f32.mrf.mxu0
        %v402 = vadd.f32 0.0, %v401
        %403 = vmatmul.f32.gmra.mxu0 %v292
        %v404 = vpop.f32.mrf.mxu0
        %v405 = vadd.f32 0.0, %v404
        %406 = vmatmul.f32.gmra.mxu0 %v295
        %v407 = vpop.f32.mrf.mxu0
        %v408 = vadd.f32 0.0, %v407
        %409 = vmatmul.f32.gmra.mxu0 %v298
        %v410 = vpop.f32.mrf.mxu0
        %v411 = vadd.f32 0.0, %v410
        %412 = vmatmul.f32.gmra.mxu0 %v301
        %v413 = vpop.f32.mrf.mxu0
        %v414 = vadd.f32 0.0, %v413
        %415 = vmatmul.f32.gmra.mxu0 %v304
        %v416 = vpop.f32.mrf.mxu0
        %v417 = vadd.f32 0.0, %v416
        %418 = vmatmul.f32.gmra.mxu0 %v307
        %v419 = vpop.f32.mrf.mxu0
        %v420 = vadd.f32 0.0, %v419
        %421 = vmatmul.f32.gmra.mxu0 %v310
        %v422 = vpop.f32.mrf.mxu0
        %v423 = vadd.f32 0.0, %v422
        %424 = vmatmul.f32.gmra.mxu0 %v313
        %v425 = vpop.f32.mrf.mxu0
        %v426 = vadd.f32 0.0, %v425
        %427 = vmatmul.f32.gmra.mxu0 %v316
        %v428 = vpop.f32.mrf.mxu0
        %v429 = vadd.f32 0.0, %v428
        %430 = vmatmul.f32.gmra.mxu0 %v319
        %v431 = vpop.f32.mrf.mxu0
        %v432 = vadd.f32 0.0, %v431
        %433 = vmatmul.f32.gmra.mxu0 %v322
        %v434 = vpop.f32.mrf.mxu0
        %v435 = vadd.f32 0.0, %v434
        %436 = vmatmul.f32.gmra.mxu0 %v325
        %v437 = vpop.f32.mrf.mxu0
        %v438 = vadd.f32 0.0, %v437
        %439 = vmatmul.f32.gmra.mxu0 %v328
        %v440 = vpop.f32.mrf.mxu0
        %v441 = vadd.f32 0.0, %v440
        %442 = vmatmul.f32.gmra.mxu0 %v331
        %v443 = vpop.f32.mrf.mxu0
        %v444 = vadd.f32 0.0, %v443
        %445 = vmatmul.f32.gmra.mxu0 %v334
        %v446 = vpop.f32.mrf.mxu0
        %v447 = vadd.f32 0.0, %v446
        %448 = vmatmul.f32.gmra.mxu0 %v337
        %v449 = vpop.f32.mrf.mxu0
        %v450 = vadd.f32 0.0, %v449
        %451 = vmatmul.f32.gmra.mxu0 %v340
        %v452 = vpop.f32.mrf.mxu0
        %v453 = vadd.f32 0.0, %v452
        %454 = vmatmul.f32.gmra.mxu0 %v343
        %v455 = vpop.f32.mrf.mxu0
        %v456 = vadd.f32 0.0, %v455
        %457 = vmatmul.f32.gmra.mxu0 %v346
        %v458 = vpop.f32.mrf.mxu0
        %v459 = vadd.f32 0.0, %v458
        %460 = vmatmul.f32.gmra.mxu0 %v349
        %v461 = vpop.f32.mrf.mxu0
        %v462 = vadd.f32 0.0, %v461
        %463 = vmatmul.f32.gmra.mxu0 %v352
        %v464 = vpop.f32.mrf.mxu0
        %v465 = vadd.f32 0.0, %v464
        %466 = vmatmul.f32.gmra.mxu0 %v355
        %v467 = vpop.f32.mrf.mxu0
        %v468 = vadd.f32 0.0, %v467
        %469 = vmatmul.f32.gmra.mxu0 %v358
        %v470 = vpop.f32.mrf.mxu0
        %v471 = vadd.f32 0.0, %v470
        %472 = vdwg.mxu0
        %v473 = vadd.f32 %v226, %v378
        %v474 = vadd.f32 %v227, %v381
        %v475 = vadd.f32 %v228, %v384
        %v476 = vadd.f32 %v229, %v387
        %v477 = vadd.f32 %v230, %v390
        %v478 = vadd.f32 %v231, %v393
        %v479 = vadd.f32 %v232, %v396
        %v480 = vadd.f32 %v233, %v399
        %v481 = vadd.f32 %v234, %v402
        %v482 = vadd.f32 %v235, %v405
        %v483 = vadd.f32 %v236, %v408
        %v484 = vadd.f32 %v237, %v411
        %v485 = vadd.f32 %v238, %v414
        %v486 = vadd.f32 %v239, %v417
        %v487 = vadd.f32 %v240, %v420
        %v488 = vadd.f32 %v241, %v423
        %v489 = vadd.f32 %v242, %v426
        %v490 = vadd.f32 %v243, %v429
        %v491 = vadd.f32 %v244, %v432
        %v492 = vadd.f32 %v245, %v435
        %v493 = vadd.f32 %v246, %v438
        %v494 = vadd.f32 %v247, %v441
        %v495 = vadd.f32 %v248, %v444
        %v496 = vadd.f32 %v249, %v447
        %v497 = vadd.f32 %v250, %v450
        %v498 = vadd.f32 %v251, %v453
        %v499 = vadd.f32 %v252, %v456
        %v500 = vadd.f32 %v253, %v459
        %v501 = vadd.f32 %v254, %v462
        %v502 = vadd.f32 %v255, %v465
        %v503 = vadd.f32 %v256, %v468
        %v504 = vadd.f32 %v257, %v471
        %v505 = vperm.slane %v262, 0
        %v506 = vadd.f32 %v473, %v505
        %v507 = vadd.f32 %v474, %v505
        %v508 = vadd.f32 %v475, %v505
        %v509 = vadd.f32 %v476, %v505
        %v510 = vadd.f32 %v477, %v505
        %v511 = vadd.f32 %v478, %v505
        %v512 = vadd.f32 %v479, %v505
        %v513 = vadd.f32 %v480, %v505
        %v514 = vadd.f32 %v481, %v505
        %v515 = vadd.f32 %v482, %v505
        %v516 = vadd.f32 %v483, %v505
        %v517 = vadd.f32 %v484, %v505
        %v518 = vadd.f32 %v485, %v505
        %v519 = vadd.f32 %v486, %v505
        %v520 = vadd.f32 %v487, %v505
        %v521 = vadd.f32 %v488, %v505
        %v522 = vadd.f32 %v489, %v505
        %v523 = vadd.f32 %v490, %v505
        %v524 = vadd.f32 %v491, %v505
        %v525 = vadd.f32 %v492, %v505
        %v526 = vadd.f32 %v493, %v505
        %v527 = vadd.f32 %v494, %v505
        %v528 = vadd.f32 %v495, %v505
        %v529 = vadd.f32 %v496, %v505
        %v530 = vadd.f32 %v497, %v505
        %v531 = vadd.f32 %v498, %v505
        %v532 = vadd.f32 %v499, %v505
        %v533 = vadd.f32 %v500, %v505
        %v534 = vadd.f32 %v501, %v505
        %v535 = vadd.f32 %v502, %v505
        %v536 = vadd.f32 %v503, %v505
        %v537 = vadd.f32 %v504, %v505
        %v538 = vmax.f32 %v506, 0.0
        %v539 = vmax.f32 %v507, 0.0
        %v540 = vmax.f32 %v508, 0.0
        %v541 = vmax.f32 %v509, 0.0
        %v542 = vmax.f32 %v510, 0.0
        %v543 = vmax.f32 %v511, 0.0
        %v544 = vmax.f32 %v512, 0.0
        %v545 = vmax.f32 %v513, 0.0
        %v546 = vmax.f32 %v514, 0.0
        %v547 = vmax.f32 %v515, 0.0
        %v548 = vmax.f32 %v516, 0.0
        %v549 = vmax.f32 %v517, 0.0
        %v550 = vmax.f32 %v518, 0.0
        %v551 = vmax.f32 %v519, 0.0
        %v552 = vmax.f32 %v520, 0.0
        %v553 = vmax.f32 %v521, 0.0
        %v554 = vmax.f32 %v522, 0.0
        %v555 = vmax.f32 %v523, 0.0
        %v556 = vmax.f32 %v524, 0.0
        %v557 = vmax.f32 %v525, 0.0
        %v558 = vmax.f32 %v526, 0.0
        %v559 = vmax.f32 %v527, 0.0
        %v560 = vmax.f32 %v528, 0.0
        %v561 = vmax.f32 %v529, 0.0
        %v562 = vmax.f32 %v530, 0.0
        %v563 = vmax.f32 %v531, 0.0
        %v564 = vmax.f32 %v532, 0.0
        %v565 = vmax.f32 %v533, 0.0
        %v566 = vmax.f32 %v534, 0.0
        %v567 = vmax.f32 %v535, 0.0
        %v568 = vmax.f32 %v536, 0.0
        %v569 = vmax.f32 %v537, 0.0
        %s570 = scalar_lea.vmem %s1, 32
        %v571 = vld [vmem:[%s570] sm:$0xff]
        %v572 = vld [vmem:[%s570 + $0x8] sm:$0xff]
        %v573 = vld [vmem:[%s570 + $0x10] sm:$0xff]
        %v574 = vld [vmem:[%s570 + $0x18] sm:$0xff]
        %v575 = vld [vmem:[%s2 + $0x1] sm:$0x1]
        %v577 = vsel %vm263, %v538, 0
        %v580 = vsel %vm263, %v539, 0
        %v583 = vsel %vm263, %v540, 0
        %v586 = vsel %vm263, %v541, 0
        %v589 = vsel %vm263, %v542, 0
        %v592 = vsel %vm263, %v543, 0
        %v595 = vsel %vm263, %v544, 0
        %v598 = vsel %vm263, %v545, 0
        %v601 = vsel %vm263, %v546, 0
        %v604 = vsel %vm263, %v547, 0
        %v607 = vsel %vm263, %v548, 0
        %v610 = vsel %vm263, %v549, 0
        %v613 = vsel %vm263, %v550, 0
        %v616 = vsel %vm263, %v551, 0
        %v619 = vsel %vm263, %v552, 0
        %v622 = vsel %vm263, %v553, 0
        %v625 = vsel %vm263, %v554, 0
        %v628 = vsel %vm263, %v555, 0
        %v631 = vsel %vm263, %v556, 0
        %v634 = vsel %vm263, %v557, 0
        %v637 = vsel %vm263, %v558, 0
        %v640 = vsel %vm263, %v559, 0
        %v643 = vsel %vm263, %v560, 0
        %v646 = vsel %vm263, %v561, 0
        %v649 = vsel %vm263, %v562, 0
        %v652 = vsel %vm263, %v563, 0
        %v655 = vsel %vm263, %v564, 0
        %v658 = vsel %vm263, %v565, 0
        %v661 = vsel %vm263, %v566, 0
        %v664 = vsel %vm263, %v567, 0
        %v667 = vsel %vm263, %v568, 0
        %v670 = vsel %vm263, %v569, 0
        %672 = vmatpush.msra.mxu0 0.0
        %673 = vmatpush.msra.mxu0 0.0
        %674 = vmatpush.msra.mxu0 0.0
        %675 = vmatpush.msra.mxu0 0.0
        %676 = vmatpush.msra.mxu0 0.0
        %677 = vmatpush.msra.mxu0 0.0
        %678 = vmatpush.msra.mxu0 0.0
        %679 = vmatpush.msra.mxu0 0.0
        %680 = vmatpush.msra.mxu0 0.0
        %681 = vmatpush.msra.mxu0 0.0
        %682 = vmatpush.msra.mxu0 0.0
        %683 = vmatpush.msra.mxu0 0.0
        %684 = vmatpush.msra.mxu0 %v574
        %685 = vmatpush.msra.mxu0 %v573
        %686 = vmatpush.msra.mxu0 %v572
        %687 = vmatpush.msra.mxu0 %v571
        %688 = vmatmul.f32.gmra.mxu0 %v577
        %v689 = vpop.f32.mrf.mxu0
        %v690 = vadd.f32 0.0, %v689
        %691 = vmatmul.f32.gmra.mxu0 %v580
        %v692 = vpop.f32.mrf.mxu0
        %v693 = vadd.f32 0.0, %v692
        %694 = vmatmul.f32.gmra.mxu0 %v583
        %v695 = vpop.f32.mrf.mxu0
        %v696 = vadd.f32 0.0, %v695
        %697 = vmatmul.f32.gmra.mxu0 %v586
        %v698 = vpop.f32.mrf.mxu0
        %v699 = vadd.f32 0.0, %v698
        %700 = vmatmul.f32.gmra.mxu0 %v589
        %v701 = vpop.f32.mrf.mxu0
        %v702 = vadd.f32 0.0, %v701
        %703 = vmatmul.f32.gmra.mxu0 %v592
        %v704 = vpop.f32.mrf.mxu0
        %v705 = vadd.f32 0.0, %v704
        %706 = vmatmul.f32.gmra.mxu0 %v595
        %v707 = vpop.f32.mrf.mxu0
        %v708 = vadd.f32 0.0, %v707
        %709 = vmatmul.f32.gmra.mxu0 %v598
        %v710 = vpop.f32.mrf.mxu0
        %v711 = vadd.f32 0.0, %v710
        %712 = vmatmul.f32.gmra.mxu0 %v601
        %v713 = vpop.f32.mrf.mxu0
        %v714 = vadd.f32 0.0, %v713
        %715 = vmatmul.f32.gmra.mxu0 %v604
        %v716 = vpop.f32.mrf.mxu0
        %v717 = vadd.f32 0.0, %v716
        %718 = vmatmul.f32.gmra.mxu0 %v607
        %v719 = vpop.f32.mrf.mxu0
        %v720 = vadd.f32 0.0, %v719
        %721 = vmatmul.f32.gmra.mxu0 %v610
        %v722 = vpop.f32.mrf.mxu0
        %v723 = vadd.f32 0.0, %v722
        %724 = vmatmul.f32.gmra.mxu0 %v613
        %v725 = vpop.f32.mrf.mxu0
        %v726 = vadd.f32 0.0, %v725
        %727 = vmatmul.f32.gmra.mxu0 %v616
        %v728 = vpop.f32.mrf.mxu0
        %v729 = vadd.f32 0.0, %v728
        %730 = vmatmul.f32.gmra.mxu0 %v619
        %v731 = vpop.f32.mrf.mxu0
        %v732 = vadd.f32 0.0, %v731
        %733 = vmatmul.f32.gmra.mxu0 %v622
        %v734 = vpop.f32.mrf.mxu0
        %v735 = vadd.f32 0.0, %v734
        %736 = vmatmul.f32.gmra.mxu0 %v625
        %v737 = vpop.f32.mrf.mxu0
        %v738 = vadd.f32 0.0, %v737
        %739 = vmatmul.f32.gmra.mxu0 %v628
        %v740 = vpop.f32.mrf.mxu0
        %v741 = vadd.f32 0.0, %v740
        %742 = vmatmul.f32.gmra.mxu0 %v631
        %v743 = vpop.f32.mrf.mxu0
        %v744 = vadd.f32 0.0, %v743
        %745 = vmatmul.f32.gmra.mxu0 %v634
        %v746 = vpop.f32.mrf.mxu0
        %v747 = vadd.f32 0.0, %v746
        %748 = vmatmul.f32.gmra.mxu0 %v637
        %v749 = vpop.f32.mrf.mxu0
        %v750 = vadd.f32 0.0, %v749
        %751 = vmatmul.f32.gmra.mxu0 %v640
        %v752 = vpop.f32.mrf.mxu0
        %v753 = vadd.f32 0.0, %v752
        %754 = vmatmul.f32.gmra.mxu0 %v643
        %v755 = vpop.f32.mrf.mxu0
        %v756 = vadd.f32 0.0, %v755
        %757 = vmatmul.f32.gmra.mxu0 %v646
        %v758 = vpop.f32.mrf.mxu0
        %v759 = vadd.f32 0.0, %v758
        %760 = vmatmul.f32.gmra.mxu0 %v649
        %v761 = vpop.f32.mrf.mxu0
        %v762 = vadd.f32 0.0, %v761
        %763 = vmatmul.f32.gmra.mxu0 %v652
        %v764 = vpop.f32.mrf.mxu0
        %v765 = vadd.f32 0.0, %v764
        %766 = vmatmul.f32.gmra.mxu0 %v655
        %v767 = vpop.f32.mrf.mxu0
        %v768 = vadd.f32 0.0, %v767
        %769 = vmatmul.f32.gmra.mxu0 %v658
        %v770 = vpop.f32.mrf.mxu0
        %v771 = vadd.f32 0.0, %v770
        %772 = vmatmul.f32.gmra.mxu0 %v661
        %v773 = vpop.f32.mrf.mxu0
        %v774 = vadd.f32 0.0, %v773
        %775 = vmatmul.f32.gmra.mxu0 %v664
        %v776 = vpop.f32.mrf.mxu0
        %v777 = vadd.f32 0.0, %v776
        %778 = vmatmul.f32.gmra.mxu0 %v667
        %v779 = vpop.f32.mrf.mxu0
        %v780 = vadd.f32 0.0, %v779
        %781 = vmatmul.f32.gmra.mxu0 %v670
        %v782 = vpop.f32.mrf.mxu0
        %v783 = vadd.f32 0.0, %v782
        %784 = vdwg.mxu0
        %v785 = vadd.f32 %v538, %v690
        %v786 = vadd.f32 %v539, %v693
        %v787 = vadd.f32 %v540, %v696
        %v788 = vadd.f32 %v541, %v699
        %v789 = vadd.f32 %v542, %v702
        %v790 = vadd.f32 %v543, %v705
        %v791 = vadd.f32 %v544, %v708
        %v792 = vadd.f32 %v545, %v711
        %v793 = vadd.f32 %v546, %v714
        %v794 = vadd.f32 %v547, %v717
        %v795 = vadd.f32 %v548, %v720
        %v796 = vadd.f32 %v549, %v723
        %v797 = vadd.f32 %v550, %v726
        %v798 = vadd.f32 %v551, %v729
        %v799 = vadd.f32 %v552, %v732
        %v800 = vadd.f32 %v553, %v735
        %v801 = vadd.f32 %v554, %v738
        %v802 = vadd.f32 %v555, %v741
        %v803 = vadd.f32 %v556, %v744
        %v804 = vadd.f32 %v557, %v747
        %v805 = vadd.f32 %v558, %v750
        %v806 = vadd.f32 %v559, %v753
        %v807 = vadd.f32 %v560, %v756
        %v808 = vadd.f32 %v561, %v759
        %v809 = vadd.f32 %v562, %v762
        %v810 = vadd.f32 %v563, %v765
        %v811 = vadd.f32 %v564, %v768
        %v812 = vadd.f32 %v565, %v771
        %v813 = vadd.f32 %v566, %v774
        %v814 = vadd.f32 %v567, %v777
        %v815 = vadd.f32 %v568, %v780
        %v816 = vadd.f32 %v569, %v783
        %v817 = vperm.slane %v575, 0
        %v818 = vadd.f32 %v785, %v817
        %v819 = vadd.f32 %v786, %v817
        %v820 = vadd.f32 %v787, %v817
        %v821 = vadd.f32 %v788, %v817
        %v822 = vadd.f32 %v789, %v817
        %v823 = vadd.f32 %v790, %v817
        %v824 = vadd.f32 %v791, %v817
        %v825 = vadd.f32 %v792, %v817
        %v826 = vadd.f32 %v793, %v817
        %v827 = vadd.f32 %v794, %v817
        %v828 = vadd.f32 %v795, %v817
        %v829 = vadd.f32 %v796, %v817
        %v830 = vadd.f32 %v797, %v817
        %v831 = vadd.f32 %v798, %v817
        %v832 = vadd.f32 %v799, %v817
        %v833 = vadd.f32 %v800, %v817
        %v834 = vadd.f32 %v801, %v817
        %v835 = vadd.f32 %v802, %v817
        %v836 = vadd.f32 %v803, %v817
        %v837 = vadd.f32 %v804, %v817
        %v838 = vadd.f32 %v805, %v817
        %v839 = vadd.f32 %v806, %v817
        %v840 = vadd.f32 %v807, %v817
        %v841 = vadd.f32 %v808, %v817
        %v842 = vadd.f32 %v809, %v817
        %v843 = vadd.f32 %v810, %v817
        %v844 = vadd.f32 %v811, %v817
        %v845 = vadd.f32 %v812, %v817
        %v846 = vadd.f32 %v813, %v817
        %v847 = vadd.f32 %v814, %v817
        %v848 = vadd.f32 %v815, %v817
        %v849 = vadd.f32 %v816, %v817
        %v850 = vmax.f32 %v818, 0.0
        %v851 = vmax.f32 %v819, 0.0
        %v852 = vmax.f32 %v820, 0.0
        %v853 = vmax.f32 %v821, 0.0
        %v854 = vmax.f32 %v822, 0.0
        %v855 = vmax.f32 %v823, 0.0
        %v856 = vmax.f32 %v824, 0.0
        %v857 = vmax.f32 %v825, 0.0
        %v858 = vmax.f32 %v826, 0.0
        %v859 = vmax.f32 %v827, 0.0
        %v860 = vmax.f32 %v828, 0.0
        %v861 = vmax.f32 %v829, 0.0
        %v862 = vmax.f32 %v830, 0.0
        %v863 = vmax.f32 %v831, 0.0
        %v864 = vmax.f32 %v832, 0.0
        %v865 = vmax.f32 %v833, 0.0
        %v866 = vmax.f32 %v834, 0.0
        %v867 = vmax.f32 %v835, 0.0
        %v868 = vmax.f32 %v836, 0.0
        %v869 = vmax.f32 %v837, 0.0
        %v870 = vmax.f32 %v838, 0.0
        %v871 = vmax.f32 %v839, 0.0
        %v872 = vmax.f32 %v840, 0.0
        %v873 = vmax.f32 %v841, 0.0
        %v874 = vmax.f32 %v842, 0.0
        %v875 = vmax.f32 %v843, 0.0
        %v876 = vmax.f32 %v844, 0.0
        %v877 = vmax.f32 %v845, 0.0
        %v878 = vmax.f32 %v846, 0.0
        %v879 = vmax.f32 %v847, 0.0
        %v880 = vmax.f32 %v848, 0.0
        %v881 = vmax.f32 %v849, 0.0
        %s882 = scalar_lea.vmem %s1, 64
        %v883 = vld [vmem:[%s882] sm:$0xff]
        %v884 = vld [vmem:[%s882 + $0x8] sm:$0xff]
        %v885 = vld [vmem:[%s882 + $0x10] sm:$0xff]
        %v886 = vld [vmem:[%s882 + $0x18] sm:$0xff]
        %v887 = vld [vmem:[%s2 + $0x2] sm:$0x1]
        %v889 = vsel %vm263, %v850, 0
        %v892 = vsel %vm263, %v851, 0
        %v895 = vsel %vm263, %v852, 0
        %v898 = vsel %vm263, %v853, 0
        %v901 = vsel %vm263, %v854, 0
        %v904 = vsel %vm263, %v855, 0
        %v907 = vsel %vm263, %v856, 0
        %v910 = vsel %vm263, %v857, 0
        %v913 = vsel %vm263, %v858, 0
        %v916 = vsel %vm263, %v859, 0
        %v919 = vsel %vm263, %v860, 0
        %v922 = vsel %vm263, %v861, 0
        %v925 = vsel %vm263, %v862, 0
        %v928 = vsel %vm263, %v863, 0
        %v931 = vsel %vm263, %v864, 0
        %v934 = vsel %vm263, %v865, 0
        %v937 = vsel %vm263, %v866, 0
        %v940 = vsel %vm263, %v867, 0
        %v943 = vsel %vm263, %v868, 0
        %v946 = vsel %vm263, %v869, 0
        %v949 = vsel %vm263, %v870, 0
        %v952 = vsel %vm263, %v871, 0
        %v955 = vsel %vm263, %v872, 0
        %v958 = vsel %vm263, %v873, 0
        %v961 = vsel %vm263, %v874, 0
        %v964 = vsel %vm263, %v875, 0
        %v967 = vsel %vm263, %v876, 0
        %v970 = vsel %vm263, %v877, 0
        %v973 = vsel %vm263, %v878, 0
        %v976 = vsel %vm263, %v879, 0
        %v979 = vsel %vm263, %v880, 0
        %v982 = vsel %vm263, %v881, 0
        %984 = vmatpush.msra.mxu0 0.0
        %985 = vmatpush.msra.mxu0 0.0
        %986 = vmatpush.msra.mxu0 0.0
        %987 = vmatpush.msra.mxu0 0.0
        %988 = vmatpush.msra.mxu0 0.0
        %989 = vmatpush.msra.mxu0 0.0
        %990 = vmatpush.msra.mxu0 0.0
        %991 = vmatpush.msra.mxu0 0.0
        %992 = vmatpush.msra.mxu0 0.0
        %993 = vmatpush.msra.mxu0 0.0
        %994 = vmatpush.msra.mxu0 0.0
        %995 = vmatpush.msra.mxu0 0.0
        %996 = vmatpush.msra.mxu0 %v886
        %997 = vmatpush.msra.mxu0 %v885
        %998 = vmatpush.msra.mxu0 %v884
        %999 = vmatpush.msra.mxu0 %v883
        %1000 = vmatmul.f32.gmra.mxu0 %v889
        %v1001 = vpop.f32.mrf.mxu0
        %v1002 = vadd.f32 0.0, %v1001
        %1003 = vmatmul.f32.gmra.mxu0 %v892
        %v1004 = vpop.f32.mrf.mxu0
        %v1005 = vadd.f32 0.0, %v1004
        %1006 = vmatmul.f32.gmra.mxu0 %v895
        %v1007 = vpop.f32.mrf.mxu0
        %v1008 = vadd.f32 0.0, %v1007
        %1009 = vmatmul.f32.gmra.mxu0 %v898
        %v1010 = vpop.f32.mrf.mxu0
        %v1011 = vadd.f32 0.0, %v1010
        %1012 = vmatmul.f32.gmra.mxu0 %v901
        %v1013 = vpop.f32.mrf.mxu0
        %v1014 = vadd.f32 0.0, %v1013
        %1015 = vmatmul.f32.gmra.mxu0 %v904
        %v1016 = vpop.f32.mrf.mxu0
        %v1017 = vadd.f32 0.0, %v1016
        %1018 = vmatmul.f32.gmra.mxu0 %v907
        %v1019 = vpop.f32.mrf.mxu0
        %v1020 = vadd.f32 0.0, %v1019
        %1021 = vmatmul.f32.gmra.mxu0 %v910
        %v1022 = vpop.f32.mrf.mxu0
        %v1023 = vadd.f32 0.0, %v1022
        %1024 = vmatmul.f32.gmra.mxu0 %v913
        %v1025 = vpop.f32.mrf.mxu0
        %v1026 = vadd.f32 0.0, %v1025
        %1027 = vmatmul.f32.gmra.mxu0 %v916
        %v1028 = vpop.f32.mrf.mxu0
        %v1029 = vadd.f32 0.0, %v1028
        %1030 = vmatmul.f32.gmra.mxu0 %v919
        %v1031 = vpop.f32.mrf.mxu0
        %v1032 = vadd.f32 0.0, %v1031
        %1033 = vmatmul.f32.gmra.mxu0 %v922
        %v1034 = vpop.f32.mrf.mxu0
        %v1035 = vadd.f32 0.0, %v1034
        %1036 = vmatmul.f32.gmra.mxu0 %v925
        %v1037 = vpop.f32.mrf.mxu0
        %v1038 = vadd.f32 0.0, %v1037
        %1039 = vmatmul.f32.gmra.mxu0 %v928
        %v1040 = vpop.f32.mrf.mxu0
        %v1041 = vadd.f32 0.0, %v1040
        %1042 = vmatmul.f32.gmra.mxu0 %v931
        %v1043 = vpop.f32.mrf.mxu0
        %v1044 = vadd.f32 0.0, %v1043
        %1045 = vmatmul.f32.gmra.mxu0 %v934
        %v1046 = vpop.f32.mrf.mxu0
        %v1047 = vadd.f32 0.0, %v1046
        %1048 = vmatmul.f32.gmra.mxu0 %v937
        %v1049 = vpop.f32.mrf.mxu0
        %v1050 = vadd.f32 0.0, %v1049
        %1051 = vmatmul.f32.gmra.mxu0 %v940
        %v1052 = vpop.f32.mrf.mxu0
        %v1053 = vadd.f32 0.0, %v1052
        %1054 = vmatmul.f32.gmra.mxu0 %v943
        %v1055 = vpop.f32.mrf.mxu0
        %v1056 = vadd.f32 0.0, %v1055
        %1057 = vmatmul.f32.gmra.mxu0 %v946
        %v1058 = vpop.f32.mrf.mxu0
        %v1059 = vadd.f32 0.0, %v1058
        %1060 = vmatmul.f32.gmra.mxu0 %v949
        %v1061 = vpop.f32.mrf.mxu0
        %v1062 = vadd.f32 0.0, %v1061
        %1063 = vmatmul.f32.gmra.mxu0 %v952
        %v1064 = vpop.f32.mrf.mxu0
        %v1065 = vadd.f32 0.0, %v1064
        %1066 = vmatmul.f32.gmra.mxu0 %v955
        %v1067 = vpop.f32.mrf.mxu0
        %v1068 = vadd.f32 0.0, %v1067
        %1069 = vmatmul.f32.gmra.mxu0 %v958
        %v1070 = vpop.f32.mrf.mxu0
        %v1071 = vadd.f32 0.0, %v1070
        %1072 = vmatmul.f32.gmra.mxu0 %v961
        %v1073 = vpop.f32.mrf.mxu0
        %v1074 = vadd.f32 0.0, %v1073
        %1075 = vmatmul.f32.gmra.mxu0 %v964
        %v1076 = vpop.f32.mrf.mxu0
        %v1077 = vadd.f32 0.0, %v1076
        %1078 = vmatmul.f32.gmra.mxu0 %v967
        %v1079 = vpop.f32.mrf.mxu0
        %v1080 = vadd.f32 0.0, %v1079
        %1081 = vmatmul.f32.gmra.mxu0 %v970
        %v1082 = vpop.f32.mrf.mxu0
        %v1083 = vadd.f32 0.0, %v1082
        %1084 = vmatmul.f32.gmra.mxu0 %v973
        %v1085 = vpop.f32.mrf.mxu0
        %v1086 = vadd.f32 0.0, %v1085
        %1087 = vmatmul.f32.gmra.mxu0 %v976
        %v1088 = vpop.f32.mrf.mxu0
        %v1089 = vadd.f32 0.0, %v1088
        %1090 = vmatmul.f32.gmra.mxu0 %v979
        %v1091 = vpop.f32.mrf.mxu0
        %v1092 = vadd.f32 0.0, %v1091
        %1093 = vmatmul.f32.gmra.mxu0 %v982
        %v1094 = vpop.f32.mrf.mxu0
        %v1095 = vadd.f32 0.0, %v1094
        %1096 = vdwg.mxu0
        %v1097 = vadd.f32 %v850, %v1002
        %v1098 = vadd.f32 %v851, %v1005
        %v1099 = vadd.f32 %v852, %v1008
        %v1100 = vadd.f32 %v853, %v1011
        %v1101 = vadd.f32 %v854, %v1014
        %v1102 = vadd.f32 %v855, %v1017
        %v1103 = vadd.f32 %v856, %v1020
        %v1104 = vadd.f32 %v857, %v1023
        %v1105 = vadd.f32 %v858, %v1026
        %v1106 = vadd.f32 %v859, %v1029
        %v1107 = vadd.f32 %v860, %v1032
        %v1108 = vadd.f32 %v861, %v1035
        %v1109 = vadd.f32 %v862, %v1038
        %v1110 = vadd.f32 %v863, %v1041
        %v1111 = vadd.f32 %v864, %v1044
        %v1112 = vadd.f32 %v865, %v1047
        %v1113 = vadd.f32 %v866, %v1050
        %v1114 = vadd.f32 %v867, %v1053
        %v1115 = vadd.f32 %v868, %v1056
        %v1116 = vadd.f32 %v869, %v1059
        %v1117 = vadd.f32 %v870, %v1062
        %v1118 = vadd.f32 %v871, %v1065
        %v1119 = vadd.f32 %v872, %v1068
        %v1120 = vadd.f32 %v873, %v1071
        %v1121 = vadd.f32 %v874, %v1074
        %v1122 = vadd.f32 %v875, %v1077
        %v1123 = vadd.f32 %v876, %v1080
        %v1124 = vadd.f32 %v877, %v1083
        %v1125 = vadd.f32 %v878, %v1086
        %v1126 = vadd.f32 %v879, %v1089
        %v1127 = vadd.f32 %v880, %v1092
        %v1128 = vadd.f32 %v881, %v1095
        %v1129 = vperm.slane %v887, 0
        %v1130 = vadd.f32 %v1097, %v1129
        %v1131 = vadd.f32 %v1098, %v1129
        %v1132 = vadd.f32 %v1099, %v1129
        %v1133 = vadd.f32 %v1100, %v1129
        %v1134 = vadd.f32 %v1101, %v1129
        %v1135 = vadd.f32 %v1102, %v1129
        %v1136 = vadd.f32 %v1103, %v1129
        %v1137 = vadd.f32 %v1104, %v1129
        %v1138 = vadd.f32 %v1105, %v1129
        %v1139 = vadd.f32 %v1106, %v1129
        %v1140 = vadd.f32 %v1107, %v1129
        %v1141 = vadd.f32 %v1108, %v1129
        %v1142 = vadd.f32 %v1109, %v1129
        %v1143 = vadd.f32 %v1110, %v1129
        %v1144 = vadd.f32 %v1111, %v1129
        %v1145 = vadd.f32 %v1112, %v1129
        %v1146 = vadd.f32 %v1113, %v1129
        %v1147 = vadd.f32 %v1114, %v1129
        %v1148 = vadd.f32 %v1115, %v1129
        %v1149 = vadd.f32 %v1116, %v1129
        %v1150 = vadd.f32 %v1117, %v1129
        %v1151 = vadd.f32 %v1118, %v1129
        %v1152 = vadd.f32 %v1119, %v1129
        %v1153 = vadd.f32 %v1120, %v1129
        %v1154 = vadd.f32 %v1121, %v1129
        %v1155 = vadd.f32 %v1122, %v1129
        %v1156 = vadd.f32 %v1123, %v1129
        %v1157 = vadd.f32 %v1124, %v1129
        %v1158 = vadd.f32 %v1125, %v1129
        %v1159 = vadd.f32 %v1126, %v1129
        %v1160 = vadd.f32 %v1127, %v1129
        %v1161 = vadd.f32 %v1128, %v1129
        %v1162 = vmax.f32 %v1130, 0.0
        %v1163 = vmax.f32 %v1131, 0.0
        %v1164 = vmax.f32 %v1132, 0.0
        %v1165 = vmax.f32 %v1133, 0.0
        %v1166 = vmax.f32 %v1134, 0.0
        %v1167 = vmax.f32 %v1135, 0.0
        %v1168 = vmax.f32 %v1136, 0.0
        %v1169 = vmax.f32 %v1137, 0.0
        %v1170 = vmax.f32 %v1138, 0.0
        %v1171 = vmax.f32 %v1139, 0.0
        %v1172 = vmax.f32 %v1140, 0.0
        %v1173 = vmax.f32 %v1141, 0.0
        %v1174 = vmax.f32 %v1142, 0.0
        %v1175 = vmax.f32 %v1143, 0.0
        %v1176 = vmax.f32 %v1144, 0.0
        %v1177 = vmax.f32 %v1145, 0.0
        %v1178 = vmax.f32 %v1146, 0.0
        %v1179 = vmax.f32 %v1147, 0.0
        %v1180 = vmax.f32 %v1148, 0.0
        %v1181 = vmax.f32 %v1149, 0.0
        %v1182 = vmax.f32 %v1150, 0.0
        %v1183 = vmax.f32 %v1151, 0.0
        %v1184 = vmax.f32 %v1152, 0.0
        %v1185 = vmax.f32 %v1153, 0.0
        %v1186 = vmax.f32 %v1154, 0.0
        %v1187 = vmax.f32 %v1155, 0.0
        %v1188 = vmax.f32 %v1156, 0.0
        %v1189 = vmax.f32 %v1157, 0.0
        %v1190 = vmax.f32 %v1158, 0.0
        %v1191 = vmax.f32 %v1159, 0.0
        %v1192 = vmax.f32 %v1160, 0.0
        %v1193 = vmax.f32 %v1161, 0.0
        %s1194 = scalar_lea.vmem %s1, 96
        %v1195 = vld [vmem:[%s1194] sm:$0xff]
        %v1196 = vld [vmem:[%s1194 + $0x8] sm:$0xff]
        %v1197 = vld [vmem:[%s1194 + $0x10] sm:$0xff]
        %v1198 = vld [vmem:[%s1194 + $0x18] sm:$0xff]
        %v1199 = vld [vmem:[%s2 + $0x3] sm:$0x1]
        %v1201 = vsel %vm263, %v1162, 0
        %v1204 = vsel %vm263, %v1163, 0
        %v1207 = vsel %vm263, %v1164, 0
        %v1210 = vsel %vm263, %v1165, 0
        %v1213 = vsel %vm263, %v1166, 0
        %v1216 = vsel %vm263, %v1167, 0
        %v1219 = vsel %vm263, %v1168, 0
        %v1222 = vsel %vm263, %v1169, 0
        %v1225 = vsel %vm263, %v1170, 0
        %v1228 = vsel %vm263, %v1171, 0
        %v1231 = vsel %vm263, %v1172, 0
        %v1234 = vsel %vm263, %v1173, 0
        %v1237 = vsel %vm263, %v1174, 0
        %v1240 = vsel %vm263, %v1175, 0
        %v1243 = vsel %vm263, %v1176, 0
        %v1246 = vsel %vm263, %v1177, 0
        %v1249 = vsel %vm263, %v1178, 0
        %v1252 = vsel %vm263, %v1179, 0
        %v1255 = vsel %vm263, %v1180, 0
        %v1258 = vsel %vm263, %v1181, 0
        %v1261 = vsel %vm263, %v1182, 0
        %v1264 = vsel %vm263, %v1183, 0
        %v1267 = vsel %vm263, %v1184, 0
        %v1270 = vsel %vm263, %v1185, 0
        %v1273 = vsel %vm263, %v1186, 0
        %v1276 = vsel %vm263, %v1187, 0
        %v1279 = vsel %vm263, %v1188, 0
        %v1282 = vsel %vm263, %v1189, 0
        %v1285 = vsel %vm263, %v1190, 0
        %v1288 = vsel %vm263, %v1191, 0
        %v1291 = vsel %vm263, %v1192, 0
        %v1294 = vsel %vm263, %v1193, 0
        %1296 = vmatpush.msra.mxu0 0.0
        %1297 = vmatpush.msra.mxu0 0.0
        %1298 = vmatpush.msra.mxu0 0.0
        %1299 = vmatpush.msra.mxu0 0.0
        %1300 = vmatpush.msra.mxu0 0.0
        %1301 = vmatpush.msra.mxu0 0.0
        %1302 = vmatpush.msra.mxu0 0.0
        %1303 = vmatpush.msra.mxu0 0.0
        %1304 = vmatpush.msra.mxu0 0.0
        %1305 = vmatpush.msra.mxu0 0.0
        %1306 = vmatpush.msra.mxu0 0.0
        %1307 = vmatpush.msra.mxu0 0.0
        %1308 = vmatpush.msra.mxu0 %v1198
        %1309 = vmatpush.msra.mxu0 %v1197
        %1310 = vmatpush.msra.mxu0 %v1196
        %1311 = vmatpush.msra.mxu0 %v1195
        %1312 = vmatmul.f32.gmra.mxu0 %v1201
        %v1313 = vpop.f32.mrf.mxu0
        %v1314 = vadd.f32 0.0, %v1313
        %1315 = vmatmul.f32.gmra.mxu0 %v1204
        %v1316 = vpop.f32.mrf.mxu0
        %v1317 = vadd.f32 0.0, %v1316
        %1318 = vmatmul.f32.gmra.mxu0 %v1207
        %v1319 = vpop.f32.mrf.mxu0
        %v1320 = vadd.f32 0.0, %v1319
        %1321 = vmatmul.f32.gmra.mxu0 %v1210
        %v1322 = vpop.f32.mrf.mxu0
        %v1323 = vadd.f32 0.0, %v1322
        %1324 = vmatmul.f32.gmra.mxu0 %v1213
        %v1325 = vpop.f32.mrf.mxu0
        %v1326 = vadd.f32 0.0, %v1325
        %1327 = vmatmul.f32.gmra.mxu0 %v1216
        %v1328 = vpop.f32.mrf.mxu0
        %v1329 = vadd.f32 0.0, %v1328
        %1330 = vmatmul.f32.gmra.mxu0 %v1219
        %v1331 = vpop.f32.mrf.mxu0
        %v1332 = vadd.f32 0.0, %v1331
        %1333 = vmatmul.f32.gmra.mxu0 %v1222
        %v1334 = vpop.f32.mrf.mxu0
        %v1335 = vadd.f32 0.0, %v1334
        %1336 = vmatmul.f32.gmra.mxu0 %v1225
        %v1337 = vpop.f32.mrf.mxu0
        %v1338 = vadd.f32 0.0, %v1337
        %1339 = vmatmul.f32.gmra.mxu0 %v1228
        %v1340 = vpop.f32.mrf.mxu0
        %v1341 = vadd.f32 0.0, %v1340
        %1342 = vmatmul.f32.gmra.mxu0 %v1231
        %v1343 = vpop.f32.mrf.mxu0
        %v1344 = vadd.f32 0.0, %v1343
        %1345 = vmatmul.f32.gmra.mxu0 %v1234
        %v1346 = vpop.f32.mrf.mxu0
        %v1347 = vadd.f32 0.0, %v1346
        %1348 = vmatmul.f32.gmra.mxu0 %v1237
        %v1349 = vpop.f32.mrf.mxu0
        %v1350 = vadd.f32 0.0, %v1349
        %1351 = vmatmul.f32.gmra.mxu0 %v1240
        %v1352 = vpop.f32.mrf.mxu0
        %v1353 = vadd.f32 0.0, %v1352
        %1354 = vmatmul.f32.gmra.mxu0 %v1243
        %v1355 = vpop.f32.mrf.mxu0
        %v1356 = vadd.f32 0.0, %v1355
        %1357 = vmatmul.f32.gmra.mxu0 %v1246
        %v1358 = vpop.f32.mrf.mxu0
        %v1359 = vadd.f32 0.0, %v1358
        %1360 = vmatmul.f32.gmra.mxu0 %v1249
        %v1361 = vpop.f32.mrf.mxu0
        %v1362 = vadd.f32 0.0, %v1361
        %1363 = vmatmul.f32.gmra.mxu0 %v1252
        %v1364 = vpop.f32.mrf.mxu0
        %v1365 = vadd.f32 0.0, %v1364
        %1366 = vmatmul.f32.gmra.mxu0 %v1255
        %v1367 = vpop.f32.mrf.mxu0
        %v1368 = vadd.f32 0.0, %v1367
        %1369 = vmatmul.f32.gmra.mxu0 %v1258
        %v1370 = vpop.f32.mrf.mxu0
        %v1371 = vadd.f32 0.0, %v1370
        %1372 = vmatmul.f32.gmra.mxu0 %v1261
        %v1373 = vpop.f32.mrf.mxu0
        %v1374 = vadd.f32 0.0, %v1373
        %1375 = vmatmul.f32.gmra.mxu0 %v1264
        %v1376 = vpop.f32.mrf.mxu0
        %v1377 = vadd.f32 0.0, %v1376
        %1378 = vmatmul.f32.gmra.mxu0 %v1267
        %v1379 = vpop.f32.mrf.mxu0
        %v1380 = vadd.f32 0.0, %v1379
        %1381 = vmatmul.f32.gmra.mxu0 %v1270
        %v1382 = vpop.f32.mrf.mxu0
        %v1383 = vadd.f32 0.0, %v1382
        %1384 = vmatmul.f32.gmra.mxu0 %v1273
        %v1385 = vpop.f32.mrf.mxu0
        %v1386 = vadd.f32 0.0, %v1385
        %1387 = vmatmul.f32.gmra.mxu0 %v1276
        %v1388 = vpop.f32.mrf.mxu0
        %v1389 = vadd.f32 0.0, %v1388
        %1390 = vmatmul.f32.gmra.mxu0 %v1279
        %v1391 = vpop.f32.mrf.mxu0
        %v1392 = vadd.f32 0.0, %v1391
        %1393 = vmatmul.f32.gmra.mxu0 %v1282
        %v1394 = vpop.f32.mrf.mxu0
        %v1395 = vadd.f32 0.0, %v1394
        %1396 = vmatmul.f32.gmra.mxu0 %v1285
        %v1397 = vpop.f32.mrf.mxu0
        %v1398 = vadd.f32 0.0, %v1397
        %1399 = vmatmul.f32.gmra.mxu0 %v1288
        %v1400 = vpop.f32.mrf.mxu0
        %v1401 = vadd.f32 0.0, %v1400
        %1402 = vmatmul.f32.gmra.mxu0 %v1291
        %v1403 = vpop.f32.mrf.mxu0
        %v1404 = vadd.f32 0.0, %v1403
        %1405 = vmatmul.f32.gmra.mxu0 %v1294
        %v1406 = vpop.f32.mrf.mxu0
        %v1407 = vadd.f32 0.0, %v1406
        %1408 = vdwg.mxu0
        %v1409 = vadd.f32 %v1162, %v1314
        %v1410 = vadd.f32 %v1163, %v1317
        %v1411 = vadd.f32 %v1164, %v1320
        %v1412 = vadd.f32 %v1165, %v1323
        %v1413 = vadd.f32 %v1166, %v1326
        %v1414 = vadd.f32 %v1167, %v1329
        %v1415 = vadd.f32 %v1168, %v1332
        %v1416 = vadd.f32 %v1169, %v1335
        %v1417 = vadd.f32 %v1170, %v1338
        %v1418 = vadd.f32 %v1171, %v1341
        %v1419 = vadd.f32 %v1172, %v1344
        %v1420 = vadd.f32 %v1173, %v1347
        %v1421 = vadd.f32 %v1174, %v1350
        %v1422 = vadd.f32 %v1175, %v1353
        %v1423 = vadd.f32 %v1176, %v1356
        %v1424 = vadd.f32 %v1177, %v1359
        %v1425 = vadd.f32 %v1178, %v1362
        %v1426 = vadd.f32 %v1179, %v1365
        %v1427 = vadd.f32 %v1180, %v1368
        %v1428 = vadd.f32 %v1181, %v1371
        %v1429 = vadd.f32 %v1182, %v1374
        %v1430 = vadd.f32 %v1183, %v1377
        %v1431 = vadd.f32 %v1184, %v1380
        %v1432 = vadd.f32 %v1185, %v1383
        %v1433 = vadd.f32 %v1186, %v1386
        %v1434 = vadd.f32 %v1187, %v1389
        %v1435 = vadd.f32 %v1188, %v1392
        %v1436 = vadd.f32 %v1189, %v1395
        %v1437 = vadd.f32 %v1190, %v1398
        %v1438 = vadd.f32 %v1191, %v1401
        %v1439 = vadd.f32 %v1192, %v1404
        %v1440 = vadd.f32 %v1193, %v1407
        %v1441 = vperm.slane %v1199, 0
        %v1442 = vadd.f32 %v1409, %v1441
        %v1443 = vadd.f32 %v1410, %v1441
        %v1444 = vadd.f32 %v1411, %v1441
        %v1445 = vadd.f32 %v1412, %v1441
        %v1446 = vadd.f32 %v1413, %v1441
        %v1447 = vadd.f32 %v1414, %v1441
        %v1448 = vadd.f32 %v1415, %v1441
        %v1449 = vadd.f32 %v1416, %v1441
        %v1450 = vadd.f32 %v1417, %v1441
        %v1451 = vadd.f32 %v1418, %v1441
        %v1452 = vadd.f32 %v1419, %v1441
        %v1453 = vadd.f32 %v1420, %v1441
        %v1454 = vadd.f32 %v1421, %v1441
        %v1455 = vadd.f32 %v1422, %v1441
        %v1456 = vadd.f32 %v1423, %v1441
        %v1457 = vadd.f32 %v1424, %v1441
        %v1458 = vadd.f32 %v1425, %v1441
        %v1459 = vadd.f32 %v1426, %v1441
        %v1460 = vadd.f32 %v1427, %v1441
        %v1461 = vadd.f32 %v1428, %v1441
        %v1462 = vadd.f32 %v1429, %v1441
        %v1463 = vadd.f32 %v1430, %v1441
        %v1464 = vadd.f32 %v1431, %v1441
        %v1465 = vadd.f32 %v1432, %v1441
        %v1466 = vadd.f32 %v1433, %v1441
        %v1467 = vadd.f32 %v1434, %v1441
        %v1468 = vadd.f32 %v1435, %v1441
        %v1469 = vadd.f32 %v1436, %v1441
        %v1470 = vadd.f32 %v1437, %v1441
        %v1471 = vadd.f32 %v1438, %v1441
        %v1472 = vadd.f32 %v1439, %v1441
        %v1473 = vadd.f32 %v1440, %v1441
        %v1474 = vmax.f32 %v1442, 0.0
        %v1475 = vmax.f32 %v1443, 0.0
        %v1476 = vmax.f32 %v1444, 0.0
        %v1477 = vmax.f32 %v1445, 0.0
        %v1478 = vmax.f32 %v1446, 0.0
        %v1479 = vmax.f32 %v1447, 0.0
        %v1480 = vmax.f32 %v1448, 0.0
        %v1481 = vmax.f32 %v1449, 0.0
        %v1482 = vmax.f32 %v1450, 0.0
        %v1483 = vmax.f32 %v1451, 0.0
        %v1484 = vmax.f32 %v1452, 0.0
        %v1485 = vmax.f32 %v1453, 0.0
        %v1486 = vmax.f32 %v1454, 0.0
        %v1487 = vmax.f32 %v1455, 0.0
        %v1488 = vmax.f32 %v1456, 0.0
        %v1489 = vmax.f32 %v1457, 0.0
        %v1490 = vmax.f32 %v1458, 0.0
        %v1491 = vmax.f32 %v1459, 0.0
        %v1492 = vmax.f32 %v1460, 0.0
        %v1493 = vmax.f32 %v1461, 0.0
        %v1494 = vmax.f32 %v1462, 0.0
        %v1495 = vmax.f32 %v1463, 0.0
        %v1496 = vmax.f32 %v1464, 0.0
        %v1497 = vmax.f32 %v1465, 0.0
        %v1498 = vmax.f32 %v1466, 0.0
        %v1499 = vmax.f32 %v1467, 0.0
        %v1500 = vmax.f32 %v1468, 0.0
        %v1501 = vmax.f32 %v1469, 0.0
        %v1502 = vmax.f32 %v1470, 0.0
        %v1503 = vmax.f32 %v1471, 0.0
        %v1504 = vmax.f32 %v1472, 0.0
        %v1505 = vmax.f32 %v1473, 0.0
        %v1506 = vld [vmem:[%s3] sm:$0xff]
        %v1507 = vld [vmem:[%s3 + $0x8] sm:$0xff]
        %v1508 = vld [vmem:[%s3 + $0x10] sm:$0xff]
        %v1509 = vld [vmem:[%s3 + $0x18] sm:$0xff]
        %v1510 = vld [vmem:[%s4] sm:$0x1]
        %v1512 = vperm.slane %v1510, 0
        %v1515 = vsel %vm263, %v1474, 0
        %v1518 = vsel %vm263, %v1475, 0
        %v1521 = vsel %vm263, %v1476, 0
        %v1524 = vsel %vm263, %v1477, 0
        %v1527 = vsel %vm263, %v1478, 0
        %v1530 = vsel %vm263, %v1479, 0
        %v1533 = vsel %vm263, %v1480, 0
        %v1536 = vsel %vm263, %v1481, 0
        %v1539 = vsel %vm263, %v1482, 0
        %v1542 = vsel %vm263, %v1483, 0
        %v1545 = vsel %vm263, %v1484, 0
        %v1548 = vsel %vm263, %v1485, 0
        %v1551 = vsel %vm263, %v1486, 0
        %v1554 = vsel %vm263, %v1487, 0
        %v1557 = vsel %vm263, %v1488, 0
        %v1560 = vsel %vm263, %v1489, 0
        %v1563 = vsel %vm263, %v1490, 0
        %v1566 = vsel %vm263, %v1491, 0
        %v1569 = vsel %vm263, %v1492, 0
        %v1572 = vsel %vm263, %v1493, 0
        %v1575 = vsel %vm263, %v1494, 0
        %v1578 = vsel %vm263, %v1495, 0
        %v1581 = vsel %vm263, %v1496, 0
        %v1584 = vsel %vm263, %v1497, 0
        %v1587 = vsel %vm263, %v1498, 0
        %v1590 = vsel %vm263, %v1499, 0
        %v1593 = vsel %vm263, %v1500, 0
        %v1596 = vsel %vm263, %v1501, 0
        %v1599 = vsel %vm263, %v1502, 0
        %v1602 = vsel %vm263, %v1503, 0
        %v1605 = vsel %vm263, %v1504, 0
        %v1608 = vsel %vm263, %v1505, 0
        %1610 = vmatpush.msra.mxu0 0.0
        %1611 = vmatpush.msra.mxu0 0.0
        %1612 = vmatpush.msra.mxu0 0.0
        %1613 = vmatpush.msra.mxu0 0.0
        %1614 = vmatpush.msra.mxu0 0.0
        %1615 = vmatpush.msra.mxu0 0.0
        %1616 = vmatpush.msra.mxu0 0.0
        %1617 = vmatpush.msra.mxu0 0.0
        %1618 = vmatpush.msra.mxu0 0.0
        %1619 = vmatpush.msra.mxu0 0.0
        %1620 = vmatpush.msra.mxu0 0.0
        %1621 = vmatpush.msra.mxu0 0.0
        %1622 = vmatpush.msra.mxu0 %v1509
        %1623 = vmatpush.msra.mxu0 %v1508
        %1624 = vmatpush.msra.mxu0 %v1507
        %1625 = vmatpush.msra.mxu0 %v1506
        %1626 = vmatmul.f32.gmra.mxu0 %v1515
        %v1627 = vpop.f32.mrf.mxu0
        %v1628 = vadd.f32 %v1512, %v1627
        %1629 = vmatmul.f32.gmra.mxu0 %v1518
        %v1630 = vpop.f32.mrf.mxu0
        %v1631 = vadd.f32 %v1512, %v1630
        %1632 = vmatmul.f32.gmra.mxu0 %v1521
        %v1633 = vpop.f32.mrf.mxu0
        %v1634 = vadd.f32 %v1512, %v1633
        %1635 = vmatmul.f32.gmra.mxu0 %v1524
        %v1636 = vpop.f32.mrf.mxu0
        %v1637 = vadd.f32 %v1512, %v1636
        %1638 = vmatmul.f32.gmra.mxu0 %v1527
        %v1639 = vpop.f32.mrf.mxu0
        %v1640 = vadd.f32 %v1512, %v1639
        %1641 = vmatmul.f32.gmra.mxu0 %v1530
        %v1642 = vpop.f32.mrf.mxu0
        %v1643 = vadd.f32 %v1512, %v1642
        %1644 = vmatmul.f32.gmra.mxu0 %v1533
        %v1645 = vpop.f32.mrf.mxu0
        %v1646 = vadd.f32 %v1512, %v1645
        %1647 = vmatmul.f32.gmra.mxu0 %v1536
        %v1648 = vpop.f32.mrf.mxu0
        %v1649 = vadd.f32 %v1512, %v1648
        %1650 = vmatmul.f32.gmra.mxu0 %v1539
        %v1651 = vpop.f32.mrf.mxu0
        %v1652 = vadd.f32 %v1512, %v1651
        %1653 = vmatmul.f32.gmra.mxu0 %v1542
        %v1654 = vpop.f32.mrf.mxu0
        %v1655 = vadd.f32 %v1512, %v1654
        %1656 = vmatmul.f32.gmra.mxu0 %v1545
        %v1657 = vpop.f32.mrf.mxu0
        %v1658 = vadd.f32 %v1512, %v1657
        %1659 = vmatmul.f32.gmra.mxu0 %v1548
        %v1660 = vpop.f32.mrf.mxu0
        %v1661 = vadd.f32 %v1512, %v1660
        %1662 = vmatmul.f32.gmra.mxu0 %v1551
        %v1663 = vpop.f32.mrf.mxu0
        %v1664 = vadd.f32 %v1512, %v1663
        %1665 = vmatmul.f32.gmra.mxu0 %v1554
        %v1666 = vpop.f32.mrf.mxu0
        %v1667 = vadd.f32 %v1512, %v1666
        %1668 = vmatmul.f32.gmra.mxu0 %v1557
        %v1669 = vpop.f32.mrf.mxu0
        %v1670 = vadd.f32 %v1512, %v1669
        %1671 = vmatmul.f32.gmra.mxu0 %v1560
        %v1672 = vpop.f32.mrf.mxu0
        %v1673 = vadd.f32 %v1512, %v1672
        %1674 = vmatmul.f32.gmra.mxu0 %v1563
        %v1675 = vpop.f32.mrf.mxu0
        %v1676 = vadd.f32 %v1512, %v1675
        %1677 = vmatmul.f32.gmra.mxu0 %v1566
        %v1678 = vpop.f32.mrf.mxu0
        %v1679 = vadd.f32 %v1512, %v1678
        %1680 = vmatmul.f32.gmra.mxu0 %v1569
        %v1681 = vpop.f32.mrf.mxu0
        %v1682 = vadd.f32 %v1512, %v1681
        %1683 = vmatmul.f32.gmra.mxu0 %v1572
        %v1684 = vpop.f32.mrf.mxu0
        %v1685 = vadd.f32 %v1512, %v1684
        %1686 = vmatmul.f32.gmra.mxu0 %v1575
        %v1687 = vpop.f32.mrf.mxu0
        %v1688 = vadd.f32 %v1512, %v1687
        %1689 = vmatmul.f32.gmra.mxu0 %v1578
        %v1690 = vpop.f32.mrf.mxu0
        %v1691 = vadd.f32 %v1512, %v1690
        %1692 = vmatmul.f32.gmra.mxu0 %v1581
        %v1693 = vpop.f32.mrf.mxu0
        %v1694 = vadd.f32 %v1512, %v1693
        %1695 = vmatmul.f32.gmra.mxu0 %v1584
        %v1696 = vpop.f32.mrf.mxu0
        %v1697 = vadd.f32 %v1512, %v1696
        %1698 = vmatmul.f32.gmra.mxu0 %v1587
        %v1699 = vpop.f32.mrf.mxu0
        %v1700 = vadd.f32 %v1512, %v1699
        %1701 = vmatmul.f32.gmra.mxu0 %v1590
        %v1702 = vpop.f32.mrf.mxu0
        %v1703 = vadd.f32 %v1512, %v1702
        %1704 = vmatmul.f32.gmra.mxu0 %v1593
        %v1705 = vpop.f32.mrf.mxu0
        %v1706 = vadd.f32 %v1512, %v1705
        %1707 = vmatmul.f32.gmra.mxu0 %v1596
        %v1708 = vpop.f32.mrf.mxu0
        %v1709 = vadd.f32 %v1512, %v1708
        %1710 = vmatmul.f32.gmra.mxu0 %v1599
        %v1711 = vpop.f32.mrf.mxu0
        %v1712 = vadd.f32 %v1512, %v1711
        %1713 = vmatmul.f32.gmra.mxu0 %v1602
        %v1714 = vpop.f32.mrf.mxu0
        %v1715 = vadd.f32 %v1512, %v1714
        %1716 = vmatmul.f32.gmra.mxu0 %v1605
        %v1717 = vpop.f32.mrf.mxu0
        %v1718 = vadd.f32 %v1512, %v1717
        %1719 = vmatmul.f32.gmra.mxu0 %v1608
        %v1720 = vpop.f32.mrf.mxu0
        %v1721 = vadd.f32 %v1512, %v1720
        %1722 = vdwg.mxu0
        %1723 = vmax.xlane.f32.xlu0 %v1628
        %v1724 = vpop.xlane.xlu0 %1723
        %1725 = vmax.xlane.f32.xlu0 %v1631
        %v1726 = vpop.xlane.xlu0 %1725
        %1727 = vmax.xlane.f32.xlu0 %v1634
        %v1728 = vpop.xlane.xlu0 %1727
        %1729 = vmax.xlane.f32.xlu0 %v1637
        %v1730 = vpop.xlane.xlu0 %1729
        %1731 = vmax.xlane.f32.xlu0 %v1640
        %v1732 = vpop.xlane.xlu0 %1731
        %1733 = vmax.xlane.f32.xlu0 %v1643
        %v1734 = vpop.xlane.xlu0 %1733
        %1735 = vmax.xlane.f32.xlu0 %v1646
        %v1736 = vpop.xlane.xlu0 %1735
        %1737 = vmax.xlane.f32.xlu0 %v1649
        %v1738 = vpop.xlane.xlu0 %1737
        %1739 = vmax.xlane.f32.xlu0 %v1652
        %v1740 = vpop.xlane.xlu0 %1739
        %1741 = vmax.xlane.f32.xlu0 %v1655
        %v1742 = vpop.xlane.xlu0 %1741
        %1743 = vmax.xlane.f32.xlu0 %v1658
        %v1744 = vpop.xlane.xlu0 %1743
        %1745 = vmax.xlane.f32.xlu0 %v1661
        %v1746 = vpop.xlane.xlu0 %1745
        %1747 = vmax.xlane.f32.xlu0 %v1664
        %v1748 = vpop.xlane.xlu0 %1747
        %1749 = vmax.xlane.f32.xlu0 %v1667
        %v1750 = vpop.xlane.xlu0 %1749
        %1751 = vmax.xlane.f32.xlu0 %v1670
        %v1752 = vpop.xlane.xlu0 %1751
        %1753 = vmax.xlane.f32.xlu0 %v1673
        %v1754 = vpop.xlane.xlu0 %1753
        %1755 = vmax.xlane.f32.xlu0 %v1676
        %v1756 = vpop.xlane.xlu0 %1755
        %1757 = vmax.xlane.f32.xlu0 %v1679
        %v1758 = vpop.xlane.xlu0 %1757
        %1759 = vmax.xlane.f32.xlu0 %v1682
        %v1760 = vpop.xlane.xlu0 %1759
        %1761 = vmax.xlane.f32.xlu0 %v1685
        %v1762 = vpop.xlane.xlu0 %1761
        %1763 = vmax.xlane.f32.xlu0 %v1688
        %v1764 = vpop.xlane.xlu0 %1763
        %1765 = vmax.xlane.f32.xlu0 %v1691
        %v1766 = vpop.xlane.xlu0 %1765
        %1767 = vmax.xlane.f32.xlu0 %v1694
        %v1768 = vpop.xlane.xlu0 %1767
        %1769 = vmax.xlane.f32.xlu0 %v1697
        %v1770 = vpop.xlane.xlu0 %1769
        %1771 = vmax.xlane.f32.xlu0 %v1700
        %v1772 = vpop.xlane.xlu0 %1771
        %1773 = vmax.xlane.f32.xlu0 %v1703
        %v1774 = vpop.xlane.xlu0 %1773
        %1775 = vmax.xlane.f32.xlu0 %v1706
        %v1776 = vpop.xlane.xlu0 %1775
        %1777 = vmax.xlane.f32.xlu0 %v1709
        %v1778 = vpop.xlane.xlu0 %1777
        %1779 = vmax.xlane.f32.xlu0 %v1712
        %v1780 = vpop.xlane.xlu0 %1779
        %1781 = vmax.xlane.f32.xlu0 %v1715
        %v1782 = vpop.xlane.xlu0 %1781
        %1783 = vmax.xlane.f32.xlu0 %v1718
        %v1784 = vpop.xlane.xlu0 %1783
        %1785 = vmax.xlane.f32.xlu0 %v1721
        %v1786 = vpop.xlane.xlu0 %1785
        %v1787 = vsub.f32 %v1628, %v1724
        %v1788 = vsub.f32 %v1631, %v1726
        %v1789 = vsub.f32 %v1634, %v1728
        %v1790 = vsub.f32 %v1637, %v1730
        %v1791 = vsub.f32 %v1640, %v1732
        %v1792 = vsub.f32 %v1643, %v1734
        %v1793 = vsub.f32 %v1646, %v1736
        %v1794 = vsub.f32 %v1649, %v1738
        %v1795 = vsub.f32 %v1652, %v1740
        %v1796 = vsub.f32 %v1655, %v1742
        %v1797 = vsub.f32 %v1658, %v1744
        %v1798 = vsub.f32 %v1661, %v1746
        %v1799 = vsub.f32 %v1664, %v1748
        %v1800 = vsub.f32 %v1667, %v1750
        %v1801 = vsub.f32 %v1670, %v1752
        %v1802 = vsub.f32 %v1673, %v1754
        %v1803 = vsub.f32 %v1676, %v1756
        %v1804 = vsub.f32 %v1679, %v1758
        %v1805 = vsub.f32 %v1682, %v1760
        %v1806 = vsub.f32 %v1685, %v1762
        %v1807 = vsub.f32 %v1688, %v1764
        %v1808 = vsub.f32 %v1691, %v1766
        %v1809 = vsub.f32 %v1694, %v1768
        %v1810 = vsub.f32 %v1697, %v1770
        %v1811 = vsub.f32 %v1700, %v1772
        %v1812 = vsub.f32 %v1703, %v1774
        %v1813 = vsub.f32 %v1706, %v1776
        %v1814 = vsub.f32 %v1709, %v1778
        %v1815 = vsub.f32 %v1712, %v1780
        %v1816 = vsub.f32 %v1715, %v1782
        %v1817 = vsub.f32 %v1718, %v1784
        %v1818 = vsub.f32 %v1721, %v1786
        %v1819 = vmul.f32 %v1787, 1.442695
        %v1820 = vpow.pop %v1819
        %v1821 = vmul.f32 %v1788, 1.442695
        %v1822 = vpow.pop %v1821
        %v1823 = vmul.f32 %v1789, 1.442695
        %v1824 = vpow.pop %v1823
        %v1825 = vmul.f32 %v1790, 1.442695
        %v1826 = vpow.pop %v1825
        %v1827 = vmul.f32 %v1791, 1.442695
        %v1828 = vpow.pop %v1827
        %v1829 = vmul.f32 %v1792, 1.442695
        %v1830 = vpow.pop %v1829
        %v1831 = vmul.f32 %v1793, 1.442695
        %v1832 = vpow.pop %v1831
        %v1833 = vmul.f32 %v1794, 1.442695
        %v1834 = vpow.pop %v1833
        %v1835 = vmul.f32 %v1795, 1.442695
        %v1836 = vpow.pop %v1835
        %v1837 = vmul.f32 %v1796, 1.442695
        %v1838 = vpow.pop %v1837
        %v1839 = vmul.f32 %v1797, 1.442695
        %v1840 = vpow.pop %v1839
        %v1841 = vmul.f32 %v1798, 1.442695
        %v1842 = vpow.pop %v1841
        %v1843 = vmul.f32 %v1799, 1.442695
        %v1844 = vpow.pop %v1843
        %v1845 = vmul.f32 %v1800, 1.442695
        %v1846 = vpow.pop %v1845
        %v1847 = vmul.f32 %v1801, 1.442695
        %v1848 = vpow.pop %v1847
        %v1849 = vmul.f32 %v1802, 1.442695
        %v1850 = vpow.pop %v1849
        %v1851 = vmul.f32 %v1803, 1.442695
        %v1852 = vpow.pop %v1851
        %v1853 = vmul.f32 %v1804, 1.442695
        %v1854 = vpow.pop %v1853
        %v1855 = vmul.f32 %v1805, 1.442695
        %v1856 = vpow.pop %v1855
        %v1857 = vmul.f32 %v1806, 1.442695
        %v1858 = vpow.pop %v1857
        %v1859 = vmul.f32 %v1807, 1.442695
        %v1860 = vpow.pop %v1859
        %v1861 = vmul.f32 %v1808, 1.442695
        %v1862 = vpow.pop %v1861
        %v1863 = vmul.f32 %v1809, 1.442695
        %v1864 = vpow.pop %v1863
        %v1865 = vmul.f32 %v1810, 1.442695
        %v1866 = vpow.pop %v1865
        %v1867 = vmul.f32 %v1811, 1.442695
        %v1868 = vpow.pop %v1867
        %v1869 = vmul.f32 %v1812, 1.442695
        %v1870 = vpow.pop %v1869
        %v1871 = vmul.f32 %v1813, 1.442695
        %v1872 = vpow.pop %v1871
        %v1873 = vmul.f32 %v1814, 1.442695
        %v1874 = vpow.pop %v1873
        %v1875 = vmul.f32 %v1815, 1.442695
        %v1876 = vpow.pop %v1875
        %v1877 = vmul.f32 %v1816, 1.442695
        %v1878 = vpow.pop %v1877
        %v1879 = vmul.f32 %v1817, 1.442695
        %v1880 = vpow.pop %v1879
        %v1881 = vmul.f32 %v1818, 1.442695
        %v1882 = vpow.pop %v1881
        %1883 = vadd.xlane.f32.xlu0 %v1820
        %v1884 = vpop.xlane.xlu0 %1883
        %1885 = vadd.xlane.f32.xlu0 %v1822
        %v1886 = vpop.xlane.xlu0 %1885
        %1887 = vadd.xlane.f32.xlu0 %v1824
        %v1888 = vpop.xlane.xlu0 %1887
        %1889 = vadd.xlane.f32.xlu0 %v1826
        %v1890 = vpop.xlane.xlu0 %1889
        %1891 = vadd.xlane.f32.xlu0 %v1828
        %v1892 = vpop.xlane.xlu0 %1891
        %1893 = vadd.xlane.f32.xlu0 %v1830
        %v1894 = vpop.xlane.xlu0 %1893
        %1895 = vadd.xlane.f32.xlu0 %v1832
        %v1896 = vpop.xlane.xlu0 %1895
        %1897 = vadd.xlane.f32.xlu0 %v1834
        %v1898 = vpop.xlane.xlu0 %1897
        %1899 = vadd.xlane.f32.xlu0 %v1836
        %v1900 = vpop.xlane.xlu0 %1899
        %1901 = vadd.xlane.f32.xlu0 %v1838
        %v1902 = vpop.xlane.xlu0 %1901
        %1903 = vadd.xlane.f32.xlu0 %v1840
        %v1904 = vpop.xlane.xlu0 %1903
        %1905 = vadd.xlane.f32.xlu0 %v1842
        %v1906 = vpop.xlane.xlu0 %1905
        %1907 = vadd.xlane.f32.xlu0 %v1844
        %v1908 = vpop.xlane.xlu0 %1907
        %1909 = vadd.xlane.f32.xlu0 %v1846
        %v1910 = vpop.xlane.xlu0 %1909
        %1911 = vadd.xlane.f32.xlu0 %v1848
        %v1912 = vpop.xlane.xlu0 %1911
        %1913 = vadd.xlane.f32.xlu0 %v1850
        %v1914 = vpop.xlane.xlu0 %1913
        %1915 = vadd.xlane.f32.xlu0 %v1852
        %v1916 = vpop.xlane.xlu0 %1915
        %1917 = vadd.xlane.f32.xlu0 %v1854
        %v1918 = vpop.xlane.xlu0 %1917
        %1919 = vadd.xlane.f32.xlu0 %v1856
        %v1920 = vpop.xlane.xlu0 %1919
        %1921 = vadd.xlane.f32.xlu0 %v1858
        %v1922 = vpop.xlane.xlu0 %1921
        %1923 = vadd.xlane.f32.xlu0 %v1860
        %v1924 = vpop.xlane.xlu0 %1923
        %1925 = vadd.xlane.f32.xlu0 %v1862
        %v1926 = vpop.xlane.xlu0 %1925
        %1927 = vadd.xlane.f32.xlu0 %v1864
        %v1928 = vpop.xlane.xlu0 %1927
        %1929 = vadd.xlane.f32.xlu0 %v1866
        %v1930 = vpop.xlane.xlu0 %1929
        %1931 = vadd.xlane.f32.xlu0 %v1868
        %v1932 = vpop.xlane.xlu0 %1931
        %1933 = vadd.xlane.f32.xlu0 %v1870
        %v1934 = vpop.xlane.xlu0 %1933
        %1935 = vadd.xlane.f32.xlu0 %v1872
        %v1936 = vpop.xlane.xlu0 %1935
        %1937 = vadd.xlane.f32.xlu0 %v1874
        %v1938 = vpop.xlane.xlu0 %1937
        %1939 = vadd.xlane.f32.xlu0 %v1876
        %v1940 = vpop.xlane.xlu0 %1939
        %1941 = vadd.xlane.f32.xlu0 %v1878
        %v1942 = vpop.xlane.xlu0 %1941
        %1943 = vadd.xlane.f32.xlu0 %v1880
        %v1944 = vpop.xlane.xlu0 %1943
        %1945 = vadd.xlane.f32.xlu0 %v1882
        %v1946 = vpop.xlane.xlu0 %1945
        %v1947 = vrcp.pop %v1884
        %v1948 = vrcp.pop %v1886
        %v1949 = vrcp.pop %v1888
        %v1950 = vrcp.pop %v1890
        %v1951 = vrcp.pop %v1892
        %v1952 = vrcp.pop %v1894
        %v1953 = vrcp.pop %v1896
        %v1954 = vrcp.pop %v1898
        %v1955 = vrcp.pop %v1900
        %v1956 = vrcp.pop %v1902
        %v1957 = vrcp.pop %v1904
        %v1958 = vrcp.pop %v1906
        %v1959 = vrcp.pop %v1908
        %v1960 = vrcp.pop %v1910
        %v1961 = vrcp.pop %v1912
        %v1962 = vrcp.pop %v1914
        %v1963 = vrcp.pop %v1916
        %v1964 = vrcp.pop %v1918
        %v1965 = vrcp.pop %v1920
        %v1966 = vrcp.pop %v1922
        %v1967 = vrcp.pop %v1924
        %v1968 = vrcp.pop %v1926
        %v1969 = vrcp.pop %v1928
        %v1970 = vrcp.pop %v1930
        %v1971 = vrcp.pop %v1932
        %v1972 = vrcp.pop %v1934
        %v1973 = vrcp.pop %v1936
        %v1974 = vrcp.pop %v1938
        %v1975 = vrcp.pop %v1940
        %v1976 = vrcp.pop %v1942
        %v1977 = vrcp.pop %v1944
        %v1978 = vrcp.pop %v1946
        %v1979 = vmul.f32 %v1884, %v1947
        %v1980 = vmul.f32 %v1886, %v1948
        %v1981 = vmul.f32 %v1888, %v1949
        %v1982 = vmul.f32 %v1890, %v1950
        %v1983 = vmul.f32 %v1892, %v1951
        %v1984 = vmul.f32 %v1894, %v1952
        %v1985 = vmul.f32 %v1896, %v1953
        %v1986 = vmul.f32 %v1898, %v1954
        %v1987 = vmul.f32 %v1900, %v1955
        %v1988 = vmul.f32 %v1902, %v1956
        %v1989 = vmul.f32 %v1904, %v1957
        %v1990 = vmul.f32 %v1906, %v1958
        %v1991 = vmul.f32 %v1908, %v1959
        %v1992 = vmul.f32 %v1910, %v1960
        %v1993 = vmul.f32 %v1912, %v1961
        %v1994 = vmul.f32 %v1914, %v1962
        %v1995 = vmul.f32 %v1916, %v1963
        %v1996 = vmul.f32 %v1918, %v1964
        %v1997 = vmul.f32 %v1920, %v1965
        %v1998 = vmul.f32 %v1922, %v1966
        %v1999 = vmul.f32 %v1924, %v1967
        %v2000 = vmul.f32 %v1926, %v1968
        %v2001 = vmul.f32 %v1928, %v1969
        %v2002 = vmul.f32 %v1930, %v1970
        %v2003 = vmul.f32 %v1932, %v1971
        %v2004 = vmul.f32 %v1934, %v1972
        %v2005 = vmul.f32 %v1936, %v1973
        %v2006 = vmul.f32 %v1938, %v1974
        %v2007 = vmul.f32 %v1940, %v1975
        %v2008 = vmul.f32 %v1942, %v1976
        %v2009 = vmul.f32 %v1944, %v1977
        %v2010 = vmul.f32 %v1946, %v1978
        %v2011 = vsub.f32 2.0, %v1979
        %v2012 = vsub.f32 2.0, %v1980
        %v2013 = vsub.f32 2.0, %v1981
        %v2014 = vsub.f32 2.0, %v1982
        %v2015 = vsub.f32 2.0, %v1983
        %v2016 = vsub.f32 2.0, %v1984
        %v2017 = vsub.f32 2.0, %v1985
        %v2018 = vsub.f32 2.0, %v1986
        %v2019 = vsub.f32 2.0, %v1987
        %v2020 = vsub.f32 2.0, %v1988
        %v2021 = vsub.f32 2.0, %v1989
        %v2022 = vsub.f32 2.0, %v1990
        %v2023 = vsub.f32 2.0, %v1991
        %v2024 = vsub.f32 2.0, %v1992
        %v2025 = vsub.f32 2.0, %v1993
        %v2026 = vsub.f32 2.0, %v1994
        %v2027 = vsub.f32 2.0, %v1995
        %v2028 = vsub.f32 2.0, %v1996
        %v2029 = vsub.f32 2.0, %v1997
        %v2030 = vsub.f32 2.0, %v1998
        %v2031 = vsub.f32 2.0, %v1999
        %v2032 = vsub.f32 2.0, %v2000
        %v2033 = vsub.f32 2.0, %v2001
        %v2034 = vsub.f32 2.0, %v2002
        %v2035 = vsub.f32 2.0, %v2003
        %v2036 = vsub.f32 2.0, %v2004
        %v2037 = vsub.f32 2.0, %v2005
        %v2038 = vsub.f32 2.0, %v2006
        %v2039 = vsub.f32 2.0, %v2007
        %v2040 = vsub.f32 2.0, %v2008
        %v2041 = vsub.f32 2.0, %v2009
        %v2042 = vsub.f32 2.0, %v2010
        %v2043 = vmul.f32 %v1947, %v2011
        %v2044 = vmul.f32 %v1948, %v2012
        %v2045 = vmul.f32 %v1949, %v2013
        %v2046 = vmul.f32 %v1950, %v2014
        %v2047 = vmul.f32 %v1951, %v2015
        %v2048 = vmul.f32 %v1952, %v2016
        %v2049 = vmul.f32 %v1953, %v2017
        %v2050 = vmul.f32 %v1954, %v2018
        %v2051 = vmul.f32 %v1955, %v2019
        %v2052 = vmul.f32 %v1956, %v2020
        %v2053 = vmul.f32 %v1957, %v2021
        %v2054 = vmul.f32 %v1958, %v2022
        %v2055 = vmul.f32 %v1959, %v2023
        %v2056 = vmul.f32 %v1960, %v2024
        %v2057 = vmul.f32 %v1961, %v2025
        %v2058 = vmul.f32 %v1962, %v2026
        %v2059 = vmul.f32 %v1963, %v2027
        %v2060 = vmul.f32 %v1964, %v2028
        %v2061 = vmul.f32 %v1965, %v2029
        %v2062 = vmul.f32 %v1966, %v2030
        %v2063 = vmul.f32 %v1967, %v2031
        %v2064 = vmul.f32 %v1968, %v2032
        %v2065 = vmul.f32 %v1969, %v2033
        %v2066 = vmul.f32 %v1970, %v2034
        %v2067 = vmul.f32 %v1971, %v2035
        %v2068 = vmul.f32 %v1972, %v2036
        %v2069 = vmul.f32 %v1973, %v2037
        %v2070 = vmul.f32 %v1974, %v2038
        %v2071 = vmul.f32 %v1975, %v2039
        %v2072 = vmul.f32 %v1976, %v2040
        %v2073 = vmul.f32 %v1977, %v2041
        %v2074 = vmul.f32 %v1978, %v2042
        %v2075 = vmul.f32 %v1820, %v2043
        %v2076 = vmul.f32 %v1822, %v2044
        %v2077 = vmul.f32 %v1824, %v2045
        %v2078 = vmul.f32 %v1826, %v2046
        %v2079 = vmul.f32 %v1828, %v2047
        %v2080 = vmul.f32 %v1830, %v2048
        %v2081 = vmul.f32 %v1832, %v2049
        %v2082 = vmul.f32 %v1834, %v2050
        %v2083 = vmul.f32 %v1836, %v2051
        %v2084 = vmul.f32 %v1838, %v2052
        %v2085 = vmul.f32 %v1840, %v2053
        %v2086 = vmul.f32 %v1842, %v2054
        %v2087 = vmul.f32 %v1844, %v2055
        %v2088 = vmul.f32 %v1846, %v2056
        %v2089 = vmul.f32 %v1848, %v2057
        %v2090 = vmul.f32 %v1850, %v2058
        %v2091 = vmul.f32 %v1852, %v2059
        %v2092 = vmul.f32 %v1854, %v2060
        %v2093 = vmul.f32 %v1856, %v2061
        %v2094 = vmul.f32 %v1858, %v2062
        %v2095 = vmul.f32 %v1860, %v2063
        %v2096 = vmul.f32 %v1862, %v2064
        %v2097 = vmul.f32 %v1864, %v2065
        %v2098 = vmul.f32 %v1866, %v2066
        %v2099 = vmul.f32 %v1868, %v2067
        %v2100 = vmul.f32 %v1870, %v2068
        %v2101 = vmul.f32 %v1872, %v2069
        %v2102 = vmul.f32 %v1874, %v2070
        %v2103 = vmul.f32 %v1876, %v2071
        %v2104 = vmul.f32 %v1878, %v2072
        %v2105 = vmul.f32 %v1880, %v2073
        %v2106 = vmul.f32 %v1882, %v2074
        %2107 = vst [vmem:[%s218] sm:$0xff] %v2075
        %2108 = vst [vmem:[%s218 + $0x8] sm:$0xff] %v2076
        %2109 = vst [vmem:[%s218 + $0x10] sm:$0xff] %v2077
        %2110 = vst [vmem:[%s218 + $0x18] sm:$0xff] %v2078
        %2111 = vst [vmem:[%s218 + $0x20] sm:$0xff] %v2079
        %2112 = vst [vmem:[%s218 + $0x28] sm:$0xff] %v2080
        %2113 = vst [vmem:[%s218 + $0x30] sm:$0xff] %v2081
        %2114 = vst [vmem:[%s218 + $0x38] sm:$0xff] %v2082
        %2115 = vst [vmem:[%s218 + $0x40] sm:$0xff] %v2083
        %2116 = vst [vmem:[%s218 + $0x48] sm:$0xff] %v2084
        %2117 = vst [vmem:[%s218 + $0x50] sm:$0xff] %v2085
        %2118 = vst [vmem:[%s218 + $0x58] sm:$0xff] %v2086
        %2119 = vst [vmem:[%s218 + $0x60] sm:$0xff] %v2087
        %2120 = vst [vmem:[%s218 + $0x68] sm:$0xff] %v2088
        %2121 = vst [vmem:[%s218 + $0x70] sm:$0xff] %v2089
        %2122 = vst [vmem:[%s218 + $0x78] sm:$0xff] %v2090
        %2123 = vst [vmem:[%s218 + $0x80] sm:$0xff] %v2091
        %2124 = vst [vmem:[%s218 + $0x88] sm:$0xff] %v2092
        %2125 = vst [vmem:[%s218 + $0x90] sm:$0xff] %v2093
        %2126 = vst [vmem:[%s218 + $0x98] sm:$0xff] %v2094
        %2127 = vst [vmem:[%s218 + $0xa0] sm:$0xff] %v2095
        %2128 = vst [vmem:[%s218 + $0xa8] sm:$0xff] %v2096
        %2129 = vst [vmem:[%s218 + $0xb0] sm:$0xff] %v2097
        %2130 = vst [vmem:[%s218 + $0xb8] sm:$0xff] %v2098
        %2131 = vst [vmem:[%s218 + $0xc0] sm:$0xff] %v2099
        %2132 = vst [vmem:[%s218 + $0xc8] sm:$0xff] %v2100
        %2133 = vst [vmem:[%s218 + $0xd0] sm:$0xff] %v2101
        %2134 = vst [vmem:[%s218 + $0xd8] sm:$0xff] %v2102
        %2135 = vst [vmem:[%s218 + $0xe0] sm:$0xff] %v2103
        %2136 = vst [vmem:[%s218 + $0xe8] sm:$0xff] %v2104
        %2137 = vst [vmem:[%s218 + $0xf0] sm:$0xff] %v2105
        %2138 = vst [vmem:[%s218 + $0xf8] sm:$0xff] %v2106
        %s2139 = sand.u32 %s137, 1
        %s2140 = scalar_lea.sflag [#allocation3], %s2139
        %s2141 = sand.u32 %s137, 1
        %s2142 = smul.addr %s2141, 256
        %s2143 = scalar_lea.vmem [#allocation2], %s2142
        // Predicated region
        $region41: #{tpu_custom_call.1} parent=39 // pred_check
          %p2144 = pneg %p147
        $region42: #{tpu_custom_call.1} parent=39 // pred_check_branch
          %2146 = sbr.rel (%p2144) target = $region44
        $region43: #{tpu_custom_call.1} parent=39 // pred_region
          %s2147 = smul.u32 32, %s19
          %2149 = vsyncadd %s2140, 0
          %s2150 = smul.addr %s2147, 8
          %s2151 = scalar_lea.hbm %s5, %s2150
          %s2152 = sshll.u32 %s2143, 4
          %s2153 = int_to_ptr.vmem [resolvable:$true] %s2152
          %s2154 = sshll.u32 %s2151, 4
          %s2155 = int_to_ptr.hbm [resolvable:$true] %s2154
          %2160 = dma.vmem_to_hbm [thread:$0]  %s2153, 4096, %s2155, %s2140, 128, 128, 8
        $region44: #{tpu_custom_call.1} parent=39 // pred_fallthru
          _
      $region40: #{tpu_custom_call.1} parent=5 // pred_fallthru
        _
      %p2161 = scmp.le.s32.totalorder 2, %s14
      // Predicated region
      $region45: #{tpu_custom_call.1} parent=5 // pred_check
        %p2162 = pneg %p2161
      $region46: #{tpu_custom_call.1} parent=5 // pred_check_branch
        %2164 = sbr.rel (%p2162) target = $region48
      $region47: #{tpu_custom_call.1} parent=5 // pred_region
        %s2165 = ssub.s32 %s14, 2
        // Predicated region
        $region49: #{tpu_custom_call.1} parent=47 // pred_check
          %p2166 = pneg %p153
        $region50: #{tpu_custom_call.1} parent=47 // pred_check_branch
          %2168 = sbr.rel (%p2166) target = $region52
        $region51: #{tpu_custom_call.1} parent=47 // pred_region
          %s2169 = sand.u32 %s138, 1
          %s2170 = scalar_lea.sflag [#allocation3], %s2169
          %s2171 = sand.u32 %s138, 1
          %s2172 = smul.addr %s2171, 256
          %s2173 = scalar_lea.vmem [#allocation2], %s2172
          %2175 = dma.done %s2170, 4096
        $region52: #{tpu_custom_call.1} parent=47 // pred_fallthru
          _
      $region48: #{tpu_custom_call.1} parent=5 // pred_fallthru
        _
    $region6: #{tpu_custom_call.1} parent=1 // loop_footer
      %s18 = sadd.s32 1, %s14
    $region7: #{tpu_custom_call.1} parent=1 // loop_footer_branch
      %13 = sbr.rel target = $region3
    $region8: #{tpu_custom_call.1} parent=1 // loop_exit
      _
    %2176 = vsyncpa [#allocation3], 1
    %s2177 = scalar_lea.sflag [#allocation3], 1
    %2178 = vsyncpa %s2177, 1

// kernel: tpu_custom_call.1
$region0: #{tpu_custom_call.1}
  #allocation0 [shape = 'u32[]', space=smem, size = 0x4, offset = 0x4, fixed_abs, tag = 'smem constant byte address 0x4 - core index']
  #allocation1 [shape = 'u32[72,128]{1,0:T(1,128)}', space=vmem, size = 0x9000, scoped, tag = 'internal scratch']
  %s0 = inlined_call_operand.vmem [shape: f32[512,32], index: 0, kind: input, shape index: {}]
  %s1 = inlined_call_operand.vmem [shape: f32[4,32,32], index: 1, kind: input, shape index: {}]
  %s2 = inlined_call_operand.vmem [shape: f32[4,32], index: 2, kind: input, shape index: {}]
  %s3 = inlined_call_operand.vmem [shape: f32[32,128], index: 3, kind: input, shape index: {}]
  %s4 = inlined_call_operand.vmem [shape: f32[1,128], index: 4, kind: input, shape index: {}]
  %s5 = inlined_call_operand.hbm [shape: f32[512,128], index: 5, kind: output, shape index: {}]
  %s6 = sld [smem:[#allocation0]]
  $region53: #{tpu_custom_call.1} parent=0
    _
  %s8 = ssub.s32 1, %s6
  %s9 = scalar_select 0, %s8, %s6
  $region1: #{tpu_custom_call.1} parent=0
    #allocation2 [shape = 'u8[262144]{0}', space=vmem, size = 0x40000, scoped, tag = 'output window, operand 0']
    #allocation3 [shape = 's32[2]{0}', space=sflag, size = 0x8, scoped, tag = 'scoped memory for tpu_custom_call.1']
    %10 = vsyncpa [#allocation3], 0
    %s11 = scalar_lea.sflag [#allocation3], 1
    %12 = vsyncpa %s11, 0
    loop: start=0, step=1, limit=4
    $region2: #{tpu_custom_call.1} parent=1 // loop_pre_header
      _
    $region3: #{tpu_custom_call.1} parent=1 // loop_header
      %s14 = sphi 0, %s18
      %p15 = scmp.ge.s32.totalorder %s14, 4
      %s24 = sphi 0, %s26
      %s27 = sphi 0, %s24
      %s28 = sphi 0, %s27
      %s44 = sphi 0, %s28
      %s48 = sphi 0, %s48
      %s50 = sphi 0, %s48
      %s51 = sphi 0, %s50
      %s65 = sphi 0, %s51
      %s69 = sphi 0, %s69
      %s71 = sphi 0, %s69
      %s72 = sphi 0, %s71
      %s86 = sphi 0, %s72
      %s90 = sphi 0, %s90
      %s92 = sphi 0, %s90
      %s93 = sphi 0, %s92
      %s107 = sphi 0, %s93
      %s111 = sphi 0, %s111
      %s113 = sphi 0, %s111
      %s114 = sphi 0, %s113
      %s128 = sphi 0, %s114
      %s134 = sphi 0, %s136
      %s137 = sphi 0, %s134
      %s138 = sphi 0, %s137
      %s154 = sphi 0, %s138
    $region4: #{tpu_custom_call.1} parent=1 // loop_header_branch
      %17 = sbr.rel (%p15) target = $region8
    $region5: #{tpu_custom_call.1} parent=1 // loop_body
      %s19 = ssub.s32 %s14, 1
      %s20 = ssub.s32 %s14, 2
      %s21 = sadd.s32 %s14, 1
      %s22 = ssub.s32 %s14, %s21
      %p23 = scmp.eq.s32.totalorder %s22, 0
      %s25 = sadd.s32 %s24, 1
      %s26 = scalar_select %p23, %s24, %s25
      %p29 = pneg %p23
      %p30 = scmp.eq.s32.totalorder %s14, 1
      %p31 = por %p29, %p30
      %p32 = scmp.ne.s32.totalorder %s24, %s27
      %p33 = scmp.eq.s32.totalorder %s14, 0
      %p34 = por %p32, %p33
      %p35 = scmp.ne.s32.totalorder %s24, %s27
      %p36 = scmp.eq.s32.totalorder %s19, 1
      %p37 = por %p35, %p36
      %p38 = scmp.ne.s32.totalorder %s27, %s28
      %p39 = scmp.eq.s32.totalorder %s19, 0
      %p40 = por %p38, %p39
      %p41 = scmp.ne.s32.totalorder %s27, %s28
      %p42 = scmp.eq.s32.totalorder %s20, 1
      %p43 = por %p41, %p42
      %p45 = scmp.ne.s32.totalorder %s28, %s44
      %p46 = scmp.eq.s32.totalorder %s20, 0
      %p47 = por %p45, %p46
      %s49 = sadd.s32 %s48, 1
      %p52 = scmp.eq.s32.totalorder %s14, 1
      %p53 = scmp.ne.s32.totalorder %s48, %s50
      %p54 = scmp.eq.s32.totalorder %s14, 0
      %p55 = por %p53, %p54
      %p56 = scmp.ne.s32.totalorder %s48, %s50
      %p57 = scmp.eq.s32.totalorder %s19, 1
      %p58 = por %p56, %p57
      %p59 = scmp.ne.s32.totalorder %s50, %s51
      %p60 = scmp.eq.s32.totalorder %s19, 0
      %p61 = por %p59, %p60
      %p62 = scmp.ne.s32.totalorder %s50, %s51
      %p63 = scmp.eq.s32.totalorder %s20, 1
      %p64 = por %p62, %p63
      %p66 = scmp.ne.s32.totalorder %s51, %s65
      %p67 = scmp.eq.s32.totalorder %s20, 0
      %p68 = por %p66, %p67
      %s70 = sadd.s32 %s69, 1
      %p73 = scmp.eq.s32.totalorder %s14, 1
      %p74 = scmp.ne.s32.totalorder %s69, %s71
      %p75 = scmp.eq.s32.totalorder %s14, 0
      %p76 = por %p74, %p75
      %p77 = scmp.ne.s32.totalorder %s69, %s71
      %p78 = scmp.eq.s32.totalorder %s19, 1
      %p79 = por %p77, %p78
      %p80 = scmp.ne.s32.totalorder %s71, %s72
      %p81 = scmp.eq.s32.totalorder %s19, 0
      %p82 = por %p80, %p81
      %p83 = scmp.ne.s32.totalorder %s71, %s72
      %p84 = scmp.eq.s32.totalorder %s20, 1
      %p85 = por %p83, %p84
      %p87 = scmp.ne.s32.totalorder %s72, %s86
      %p88 = scmp.eq.s32.totalorder %s20, 0
      %p89 = por %p87, %p88
      %s91 = sadd.s32 %s90, 1
      %p94 = scmp.eq.s32.totalorder %s14, 1
      %p95 = scmp.ne.s32.totalorder %s90, %s92
      %p96 = scmp.eq.s32.totalorder %s14, 0
      %p97 = por %p95, %p96
      %p98 = scmp.ne.s32.totalorder %s90, %s92
      %p99 = scmp.eq.s32.totalorder %s19, 1
      %p100 = por %p98, %p99
      %p101 = scmp.ne.s32.totalorder %s92, %s93
      %p102 = scmp.eq.s32.totalorder %s19, 0
      %p103 = por %p101, %p102
      %p104 = scmp.ne.s32.totalorder %s92, %s93
      %p105 = scmp.eq.s32.totalorder %s20, 1
      %p106 = por %p104, %p105
      %p108 = scmp.ne.s32.totalorder %s93, %s107
      %p109 = scmp.eq.s32.totalorder %s20, 0
      %p110 = por %p108, %p109
      %s112 = sadd.s32 %s111, 1
      %p115 = scmp.eq.s32.totalorder %s14, 1
      %p116 = scmp.ne.s32.totalorder %s111, %s113
      %p117 = scmp.eq.s32.totalorder %s14, 0
      %p118 = por %p116, %p117
      %p119 = scmp.ne.s32.totalorder %s111, %s113
      %p120 = scmp.eq.s32.totalorder %s19, 1
      %p121 = por %p119, %p120
      %p122 = scmp.ne.s32.totalorder %s113, %s114
      %p123 = scmp.eq.s32.totalorder %s19, 0
      %p124 = por %p122, %p123
      %p125 = scmp.ne.s32.totalorder %s113, %s114
      %p126 = scmp.eq.s32.totalorder %s20, 1
      %p127 = por %p125, %p126
      %p129 = scmp.ne.s32.totalorder %s114, %s128
      %p130 = scmp.eq.s32.totalorder %s20, 0
      %p131 = por %p129, %p130
      %s132 = ssub.s32 %s14, %s21
      %p133 = scmp.eq.s32.totalorder %s132, 0
      %s135 = sadd.s32 %s134, 1
      %s136 = scalar_select %p133, %s134, %s135
      %p139 = pneg %p133
      %p140 = scmp.eq.s32.totalorder %s14, 1
      %p141 = por %p139, %p140
      %p142 = scmp.ne.s32.totalorder %s134, %s137
      %p143 = scmp.eq.s32.totalorder %s14, 0
      %p144 = por %p142, %p143
      %p145 = scmp.ne.s32.totalorder %s134, %s137
      %p146 = scmp.eq.s32.totalorder %s19, 1
      %p147 = por %p145, %p146
      %p148 = scmp.ne.s32.totalorder %s137, %s138
      %p149 = scmp.eq.s32.totalorder %s19, 0
      %p150 = por %p148, %p149
      %p151 = scmp.ne.s32.totalorder %s137, %s138
      %p152 = scmp.eq.s32.totalorder %s20, 1
      %p153 = por %p151, %p152
      %p155 = scmp.ne.s32.totalorder %s138, %s154
      %p156 = scmp.eq.s32.totalorder %s20, 0
      %p157 = por %p155, %p156
      %p158 = scmp.le.s32.totalorder 1, %s14
      %p159 = scmp.lt.s32.totalorder %s14, 3
      %p160 = pnand %p158, %p159
      %p161 = pneg %p160
      // Predicated region
      $region9: #{tpu_custom_call.1} parent=5 // pred_check
        _
      $region10: #{tpu_custom_call.1} parent=5 // pred_check_branch
        %163 = sbr.rel (%p160) target = $region12
      $region11: #{tpu_custom_call.1} parent=5 // pred_region
        %s164 = ssub.s32 %s14, 1
        // Predicated region
        $region13: #{tpu_custom_call.1} parent=11 // pred_check
          %p165 = pneg %p61
        $region14: #{tpu_custom_call.1} parent=11 // pred_check_branch
          %167 = sbr.rel (%p165) target = $region16
        $region15: #{tpu_custom_call.1} parent=11 // pred_region
          _
        $region16: #{tpu_custom_call.1} parent=11 // pred_fallthru
          _
        // Predicated region
        $region17: #{tpu_custom_call.1} parent=11 // pred_check
          %p168 = pneg %p82
        $region18: #{tpu_custom_call.1} parent=11 // pred_check_branch
          %170 = sbr.rel (%p168) target = $region20
        $region19: #{tpu_custom_call.1} parent=11 // pred_region
          _
        $region20: #{tpu_custom_call.1} parent=11 // pred_fallthru
          _
        // Predicated region
        $region21: #{tpu_custom_call.1} parent=11 // pred_check
          %p171 = pneg %p103
        $region22: #{tpu_custom_call.1} parent=11 // pred_check_branch
          %173 = sbr.rel (%p171) target = $region24
        $region23: #{tpu_custom_call.1} parent=11 // pred_region
          _
        $region24: #{tpu_custom_call.1} parent=11 // pred_fallthru
          _
        // Predicated region
        $region25: #{tpu_custom_call.1} parent=11 // pred_check
          %p174 = pneg %p124
        $region26: #{tpu_custom_call.1} parent=11 // pred_check_branch
          %176 = sbr.rel (%p174) target = $region28
        $region27: #{tpu_custom_call.1} parent=11 // pred_region
          _
        $region28: #{tpu_custom_call.1} parent=11 // pred_fallthru
          _
      $region12: #{tpu_custom_call.1} parent=5 // pred_fallthru
        _
      %p177 = scmp.lt.s32.totalorder %s14, 2
      // Predicated region
      $region29: #{tpu_custom_call.1} parent=5 // pred_check
        %p178 = pneg %p177
      $region30: #{tpu_custom_call.1} parent=5 // pred_check_branch
        %180 = sbr.rel (%p178) target = $region32
      $region31: #{tpu_custom_call.1} parent=5 // pred_region
        // Predicated region
        $region33: #{tpu_custom_call.1} parent=31 // pred_check
          %p181 = pneg %p34
        $region34: #{tpu_custom_call.1} parent=31 // pred_check_branch
          %183 = sbr.rel (%p181) target = $region36
        $region35: #{tpu_custom_call.1} parent=31 // pred_region
          %s184 = smul.u32 32, %s14
          %p185 = scmp.lt.s32.totalorder %s184, 63
          %s186 = scalar_select %p185, %s184, 63
          %s187 = smul.addr %s186, 8
          %s188 = scalar_lea.vmem %s0, %s187
          %s189 = smul.u32 32, %s14
        $region36: #{tpu_custom_call.1} parent=31 // pred_fallthru
          _
      $region32: #{tpu_custom_call.1} parent=5 // pred_fallthru
        _
      %p190 = scmp.le.s32.totalorder 1, %s14
      %p191 = scmp.lt.s32.totalorder %s14, 3
      %p192 = pnand %p190, %p191
      %p193 = pneg %p192
      // Predicated region
      $region37: #{tpu_custom_call.1} parent=5 // pred_check
        _
      $region38: #{tpu_custom_call.1} parent=5 // pred_check_branch
        %195 = sbr.rel (%p192) target = $region40
      $region39: #{tpu_custom_call.1} parent=5 // pred_region
        %s196 = ssub.s32 %s14, 1
        %s197 = smul.u32 32, %s19
        %p198 = scmp.lt.s32.totalorder %s197, 63
        %s199 = scalar_select %p198, %s197, 63
        %s200 = smul.addr %s199, 8
        %s201 = scalar_lea.vmem %s0, %s200
        %p202 = pneg %p40
        %p203 = pneg %p37
        %p204 = pneg %p61
        %p205 = pneg %p58
        %p206 = pneg %p82
        %p207 = pneg %p79
        %p208 = pneg %p103
        %p209 = pneg %p100
        %p210 = pneg %p124
        %p211 = pneg %p121
        %p212 = pneg %p150
        %p213 = pneg %p147
        %s214 = sand.u32 %s137, 1
        %s215 = scalar_lea.sflag [#allocation3], %s214
        %s216 = sand.u32 %s137, 1
        %s217 = smul.addr %s216, 256
        %s218 = scalar_lea.vmem [#allocation2], %s217
        %s219 = smul.u32 32, %s19
        %p220 = scmp.lt.s32.totalorder %s219, 63
        %s221 = scalar_select %p220, %s219, 63
        %s222 = smul.addr %s221, 8
        %s223 = scalar_lea.vmem %s0, %s222
        %s224 = smul.u32 32, %s19
        %s225 = smul.u32 32, %s19
        %v226 = vld [vmem:[%s223] sm:$0xff]
        %v227 = vld [vmem:[%s223 + $0x8] sm:$0xff]
        %v228 = vld [vmem:[%s223 + $0x10] sm:$0xff]
        %v229 = vld [vmem:[%s223 + $0x18] sm:$0xff]
        %v230 = vld [vmem:[%s223 + $0x20] sm:$0xff]
        %v231 = vld [vmem:[%s223 + $0x28] sm:$0xff]
        %v232 = vld [vmem:[%s223 + $0x30] sm:$0xff]
        %v233 = vld [vmem:[%s223 + $0x38] sm:$0xff]
        %v234 = vld [vmem:[%s223 + $0x40] sm:$0xff]
        %v235 = vld [vmem:[%s223 + $0x48] sm:$0xff]
        %v236 = vld [vmem:[%s223 + $0x50] sm:$0xff]
        %v237 = vld [vmem:[%s223 + $0x58] sm:$0xff]
        %v238 = vld [vmem:[%s223 + $0x60] sm:$0xff]
        %v239 = vld [vmem:[%s223 + $0x68] sm:$0xff]
        %v240 = vld [vmem:[%s223 + $0x70] sm:$0xff]
        %v241 = vld [vmem:[%s223 + $0x78] sm:$0xff]
        %v242 = vld [vmem:[%s223 + $0x80] sm:$0xff]
        %v243 = vld [vmem:[%s223 + $0x88] sm:$0xff]
        %v244 = vld [vmem:[%s223 + $0x90] sm:$0xff]
        %v245 = vld [vmem:[%s223 + $0x98] sm:$0xff]
        %v246 = vld [vmem:[%s223 + $0xa0] sm:$0xff]
        %v247 = vld [vmem:[%s223 + $0xa8] sm:$0xff]
        %v248 = vld [vmem:[%s223 + $0xb0] sm:$0xff]
        %v249 = vld [vmem:[%s223 + $0xb8] sm:$0xff]
        %v250 = vld [vmem:[%s223 + $0xc0] sm:$0xff]
        %v251 = vld [vmem:[%s223 + $0xc8] sm:$0xff]
        %v252 = vld [vmem:[%s223 + $0xd0] sm:$0xff]
        %v253 = vld [vmem:[%s223 + $0xd8] sm:$0xff]
        %v254 = vld [vmem:[%s223 + $0xe0] sm:$0xff]
        %v255 = vld [vmem:[%s223 + $0xe8] sm:$0xff]
        %v256 = vld [vmem:[%s223 + $0xf0] sm:$0xff]
        %v257 = vld [vmem:[%s223 + $0xf8] sm:$0xff]
        %v258 = vld [vmem:[%s1] sm:$0xff]
        %v259 = vld [vmem:[%s1 + $0x8] sm:$0xff]
        %v260 = vld [vmem:[%s1 + $0x10] sm:$0xff]
        %v261 = vld [vmem:[%s1 + $0x18] sm:$0xff]
        %v262 = vld [vmem:[%s2] sm:$0x1]
        %vm263 = vcmask 261120
        %v265 = vsel %vm263, %v226, 0
        %v268 = vsel %vm263, %v227, 0
        %v271 = vsel %vm263, %v228, 0
        %v274 = vsel %vm263, %v229, 0
        %v277 = vsel %vm263, %v230, 0
        %v280 = vsel %vm263, %v231, 0
        %v283 = vsel %vm263, %v232, 0
        %v286 = vsel %vm263, %v233, 0
        %v289 = vsel %vm263, %v234, 0
        %v292 = vsel %vm263, %v235, 0
        %v295 = vsel %vm263, %v236, 0
        %v298 = vsel %vm263, %v237, 0
        %v301 = vsel %vm263, %v238, 0
        %v304 = vsel %vm263, %v239, 0
        %v307 = vsel %vm263, %v240, 0
        %v310 = vsel %vm263, %v241, 0
        %v313 = vsel %vm263, %v242, 0
        %v316 = vsel %vm263, %v243, 0
        %v319 = vsel %vm263, %v244, 0
        %v322 = vsel %vm263, %v245, 0
        %v325 = vsel %vm263, %v246, 0
        %v328 = vsel %vm263, %v247, 0
        %v331 = vsel %vm263, %v248, 0
        %v334 = vsel %vm263, %v249, 0
        %v337 = vsel %vm263, %v250, 0
        %v340 = vsel %vm263, %v251, 0
        %v343 = vsel %vm263, %v252, 0
        %v346 = vsel %vm263, %v253, 0
        %v349 = vsel %vm263, %v254, 0
        %v352 = vsel %vm263, %v255, 0
        %v355 = vsel %vm263, %v256, 0
        %v358 = vsel %vm263, %v257, 0
        %360 = vmatpush.msra.mxu0 0.0
        %361 = vmatpush.msra.mxu0 0.0
        %362 = vmatpush.msra.mxu0 0.0
        %363 = vmatpush.msra.mxu0 0.0
        %364 = vmatpush.msra.mxu0 0.0
        %365 = vmatpush.msra.mxu0 0.0
        %366 = vmatpush.msra.mxu0 0.0
        %367 = vmatpush.msra.mxu0 0.0
        %368 = vmatpush.msra.mxu0 0.0
        %369 = vmatpush.msra.mxu0 0.0
        %370 = vmatpush.msra.mxu0 0.0
        %371 = vmatpush.msra.mxu0 0.0
        %372 = vmatpush.msra.mxu0 %v261
        %373 = vmatpush.msra.mxu0 %v260
        %374 = vmatpush.msra.mxu0 %v259
        %375 = vmatpush.msra.mxu0 %v258
        %376 = vmatmul.f32.gmra.mxu0 %v265
        %v377 = vpop.f32.mrf.mxu0
        %v378 = vadd.f32 0.0, %v377
        %379 = vmatmul.f32.gmra.mxu0 %v268
        %v380 = vpop.f32.mrf.mxu0
        %v381 = vadd.f32 0.0, %v380
        %382 = vmatmul.f32.gmra.mxu0 %v271
        %v383 = vpop.f32.mrf.mxu0
        %v384 = vadd.f32 0.0, %v383
        %385 = vmatmul.f32.gmra.mxu0 %v274
        %v386 = vpop.f32.mrf.mxu0
        %v387 = vadd.f32 0.0, %v386
        %388 = vmatmul.f32.gmra.mxu0 %v277
        %v389 = vpop.f32.mrf.mxu0
        %v390 = vadd.f32 0.0, %v389
        %391 = vmatmul.f32.gmra.mxu0 %v280
        %v392 = vpop.f32.mrf.mxu0
        %v393 = vadd.f32 0.0, %v392
        %394 = vmatmul.f32.gmra.mxu0 %v283
        %v395 = vpop.f32.mrf.mxu0
        %v396 = vadd.f32 0.0, %v395
        %397 = vmatmul.f32.gmra.mxu0 %v286
        %v398 = vpop.f32.mrf.mxu0
        %v399 = vadd.f32 0.0, %v398
        %400 = vmatmul.f32.gmra.mxu0 %v289
        %v401 = vpop.f32.mrf.mxu0
        %v402 = vadd.f32 0.0, %v401
        %403 = vmatmul.f32.gmra.mxu0 %v292
        %v404 = vpop.f32.mrf.mxu0
        %v405 = vadd.f32 0.0, %v404
        %406 = vmatmul.f32.gmra.mxu0 %v295
        %v407 = vpop.f32.mrf.mxu0
        %v408 = vadd.f32 0.0, %v407
        %409 = vmatmul.f32.gmra.mxu0 %v298
        %v410 = vpop.f32.mrf.mxu0
        %v411 = vadd.f32 0.0, %v410
        %412 = vmatmul.f32.gmra.mxu0 %v301
        %v413 = vpop.f32.mrf.mxu0
        %v414 = vadd.f32 0.0, %v413
        %415 = vmatmul.f32.gmra.mxu0 %v304
        %v416 = vpop.f32.mrf.mxu0
        %v417 = vadd.f32 0.0, %v416
        %418 = vmatmul.f32.gmra.mxu0 %v307
        %v419 = vpop.f32.mrf.mxu0
        %v420 = vadd.f32 0.0, %v419
        %421 = vmatmul.f32.gmra.mxu0 %v310
        %v422 = vpop.f32.mrf.mxu0
        %v423 = vadd.f32 0.0, %v422
        %424 = vmatmul.f32.gmra.mxu0 %v313
        %v425 = vpop.f32.mrf.mxu0
        %v426 = vadd.f32 0.0, %v425
        %427 = vmatmul.f32.gmra.mxu0 %v316
        %v428 = vpop.f32.mrf.mxu0
        %v429 = vadd.f32 0.0, %v428
        %430 = vmatmul.f32.gmra.mxu0 %v319
        %v431 = vpop.f32.mrf.mxu0
        %v432 = vadd.f32 0.0, %v431
        %433 = vmatmul.f32.gmra.mxu0 %v322
        %v434 = vpop.f32.mrf.mxu0
        %v435 = vadd.f32 0.0, %v434
        %436 = vmatmul.f32.gmra.mxu0 %v325
        %v437 = vpop.f32.mrf.mxu0
        %v438 = vadd.f32 0.0, %v437
        %439 = vmatmul.f32.gmra.mxu0 %v328
        %v440 = vpop.f32.mrf.mxu0
        %v441 = vadd.f32 0.0, %v440
        %442 = vmatmul.f32.gmra.mxu0 %v331
        %v443 = vpop.f32.mrf.mxu0
        %v444 = vadd.f32 0.0, %v443
        %445 = vmatmul.f32.gmra.mxu0 %v334
        %v446 = vpop.f32.mrf.mxu0
        %v447 = vadd.f32 0.0, %v446
        %448 = vmatmul.f32.gmra.mxu0 %v337
        %v449 = vpop.f32.mrf.mxu0
        %v450 = vadd.f32 0.0, %v449
        %451 = vmatmul.f32.gmra.mxu0 %v340
        %v452 = vpop.f32.mrf.mxu0
        %v453 = vadd.f32 0.0, %v452
        %454 = vmatmul.f32.gmra.mxu0 %v343
        %v455 = vpop.f32.mrf.mxu0
        %v456 = vadd.f32 0.0, %v455
        %457 = vmatmul.f32.gmra.mxu0 %v346
        %v458 = vpop.f32.mrf.mxu0
        %v459 = vadd.f32 0.0, %v458
        %460 = vmatmul.f32.gmra.mxu0 %v349
        %v461 = vpop.f32.mrf.mxu0
        %v462 = vadd.f32 0.0, %v461
        %463 = vmatmul.f32.gmra.mxu0 %v352
        %v464 = vpop.f32.mrf.mxu0
        %v465 = vadd.f32 0.0, %v464
        %466 = vmatmul.f32.gmra.mxu0 %v355
        %v467 = vpop.f32.mrf.mxu0
        %v468 = vadd.f32 0.0, %v467
        %469 = vmatmul.f32.gmra.mxu0 %v358
        %v470 = vpop.f32.mrf.mxu0
        %v471 = vadd.f32 0.0, %v470
        %472 = vdwg.mxu0
        %v473 = vadd.f32 %v226, %v378
        %v474 = vadd.f32 %v227, %v381
        %v475 = vadd.f32 %v228, %v384
        %v476 = vadd.f32 %v229, %v387
        %v477 = vadd.f32 %v230, %v390
        %v478 = vadd.f32 %v231, %v393
        %v479 = vadd.f32 %v232, %v396
        %v480 = vadd.f32 %v233, %v399
        %v481 = vadd.f32 %v234, %v402
        %v482 = vadd.f32 %v235, %v405
        %v483 = vadd.f32 %v236, %v408
        %v484 = vadd.f32 %v237, %v411
        %v485 = vadd.f32 %v238, %v414
        %v486 = vadd.f32 %v239, %v417
        %v487 = vadd.f32 %v240, %v420
        %v488 = vadd.f32 %v241, %v423
        %v489 = vadd.f32 %v242, %v426
        %v490 = vadd.f32 %v243, %v429
        %v491 = vadd.f32 %v244, %v432
        %v492 = vadd.f32 %v245, %v435
        %v493 = vadd.f32 %v246, %v438
        %v494 = vadd.f32 %v247, %v441
        %v495 = vadd.f32 %v248, %v444
        %v496 = vadd.f32 %v249, %v447
        %v497 = vadd.f32 %v250, %v450
        %v498 = vadd.f32 %v251, %v453
        %v499 = vadd.f32 %v252, %v456
        %v500 = vadd.f32 %v253, %v459
        %v501 = vadd.f32 %v254, %v462
        %v502 = vadd.f32 %v255, %v465
        %v503 = vadd.f32 %v256, %v468
        %v504 = vadd.f32 %v257, %v471
        %v505 = vperm.slane %v262, 0
        %v506 = vadd.f32 %v473, %v505
        %v507 = vadd.f32 %v474, %v505
        %v508 = vadd.f32 %v475, %v505
        %v509 = vadd.f32 %v476, %v505
        %v510 = vadd.f32 %v477, %v505
        %v511 = vadd.f32 %v478, %v505
        %v512 = vadd.f32 %v479, %v505
        %v513 = vadd.f32 %v480, %v505
        %v514 = vadd.f32 %v481, %v505
        %v515 = vadd.f32 %v482, %v505
        %v516 = vadd.f32 %v483, %v505
        %v517 = vadd.f32 %v484, %v505
        %v518 = vadd.f32 %v485, %v505
        %v519 = vadd.f32 %v486, %v505
        %v520 = vadd.f32 %v487, %v505
        %v521 = vadd.f32 %v488, %v505
        %v522 = vadd.f32 %v489, %v505
        %v523 = vadd.f32 %v490, %v505
        %v524 = vadd.f32 %v491, %v505
        %v525 = vadd.f32 %v492, %v505
        %v526 = vadd.f32 %v493, %v505
        %v527 = vadd.f32 %v494, %v505
        %v528 = vadd.f32 %v495, %v505
        %v529 = vadd.f32 %v496, %v505
        %v530 = vadd.f32 %v497, %v505
        %v531 = vadd.f32 %v498, %v505
        %v532 = vadd.f32 %v499, %v505
        %v533 = vadd.f32 %v500, %v505
        %v534 = vadd.f32 %v501, %v505
        %v535 = vadd.f32 %v502, %v505
        %v536 = vadd.f32 %v503, %v505
        %v537 = vadd.f32 %v504, %v505
        %v538 = vmax.f32 %v506, 0.0
        %v539 = vmax.f32 %v507, 0.0
        %v540 = vmax.f32 %v508, 0.0
        %v541 = vmax.f32 %v509, 0.0
        %v542 = vmax.f32 %v510, 0.0
        %v543 = vmax.f32 %v511, 0.0
        %v544 = vmax.f32 %v512, 0.0
        %v545 = vmax.f32 %v513, 0.0
        %v546 = vmax.f32 %v514, 0.0
        %v547 = vmax.f32 %v515, 0.0
        %v548 = vmax.f32 %v516, 0.0
        %v549 = vmax.f32 %v517, 0.0
        %v550 = vmax.f32 %v518, 0.0
        %v551 = vmax.f32 %v519, 0.0
        %v552 = vmax.f32 %v520, 0.0
        %v553 = vmax.f32 %v521, 0.0
        %v554 = vmax.f32 %v522, 0.0
        %v555 = vmax.f32 %v523, 0.0
        %v556 = vmax.f32 %v524, 0.0
        %v557 = vmax.f32 %v525, 0.0
        %v558 = vmax.f32 %v526, 0.0
        %v559 = vmax.f32 %v527, 0.0
        %v560 = vmax.f32 %v528, 0.0
        %v561 = vmax.f32 %v529, 0.0
        %v562 = vmax.f32 %v530, 0.0
        %v563 = vmax.f32 %v531, 0.0
        %v564 = vmax.f32 %v532, 0.0
        %v565 = vmax.f32 %v533, 0.0
        %v566 = vmax.f32 %v534, 0.0
        %v567 = vmax.f32 %v535, 0.0
        %v568 = vmax.f32 %v536, 0.0
        %v569 = vmax.f32 %v537, 0.0
        %s570 = scalar_lea.vmem %s1, 32
        %v571 = vld [vmem:[%s570] sm:$0xff]
        %v572 = vld [vmem:[%s570 + $0x8] sm:$0xff]
        %v573 = vld [vmem:[%s570 + $0x10] sm:$0xff]
        %v574 = vld [vmem:[%s570 + $0x18] sm:$0xff]
        %v575 = vld [vmem:[%s2 + $0x1] sm:$0x1]
        %v577 = vsel %vm263, %v538, 0
        %v580 = vsel %vm263, %v539, 0
        %v583 = vsel %vm263, %v540, 0
        %v586 = vsel %vm263, %v541, 0
        %v589 = vsel %vm263, %v542, 0
        %v592 = vsel %vm263, %v543, 0
        %v595 = vsel %vm263, %v544, 0
        %v598 = vsel %vm263, %v545, 0
        %v601 = vsel %vm263, %v546, 0
        %v604 = vsel %vm263, %v547, 0
        %v607 = vsel %vm263, %v548, 0
        %v610 = vsel %vm263, %v549, 0
        %v613 = vsel %vm263, %v550, 0
        %v616 = vsel %vm263, %v551, 0
        %v619 = vsel %vm263, %v552, 0
        %v622 = vsel %vm263, %v553, 0
        %v625 = vsel %vm263, %v554, 0
        %v628 = vsel %vm263, %v555, 0
        %v631 = vsel %vm263, %v556, 0
        %v634 = vsel %vm263, %v557, 0
        %v637 = vsel %vm263, %v558, 0
        %v640 = vsel %vm263, %v559, 0
        %v643 = vsel %vm263, %v560, 0
        %v646 = vsel %vm263, %v561, 0
        %v649 = vsel %vm263, %v562, 0
        %v652 = vsel %vm263, %v563, 0
        %v655 = vsel %vm263, %v564, 0
        %v658 = vsel %vm263, %v565, 0
        %v661 = vsel %vm263, %v566, 0
        %v664 = vsel %vm263, %v567, 0
        %v667 = vsel %vm263, %v568, 0
        %v670 = vsel %vm263, %v569, 0
        %672 = vmatpush.msra.mxu0 0.0
        %673 = vmatpush.msra.mxu0 0.0
        %674 = vmatpush.msra.mxu0 0.0
        %675 = vmatpush.msra.mxu0 0.0
        %676 = vmatpush.msra.mxu0 0.0
        %677 = vmatpush.msra.mxu0 0.0
        %678 = vmatpush.msra.mxu0 0.0
        %679 = vmatpush.msra.mxu0 0.0
        %680 = vmatpush.msra.mxu0 0.0
        %681 = vmatpush.msra.mxu0 0.0
        %682 = vmatpush.msra.mxu0 0.0
        %683 = vmatpush.msra.mxu0 0.0
        %684 = vmatpush.msra.mxu0 %v574
        %685 = vmatpush.msra.mxu0 %v573
        %686 = vmatpush.msra.mxu0 %v572
        %687 = vmatpush.msra.mxu0 %v571
        %688 = vmatmul.f32.gmra.mxu0 %v577
        %v689 = vpop.f32.mrf.mxu0
        %v690 = vadd.f32 0.0, %v689
        %691 = vmatmul.f32.gmra.mxu0 %v580
        %v692 = vpop.f32.mrf.mxu0
        %v693 = vadd.f32 0.0, %v692
        %694 = vmatmul.f32.gmra.mxu0 %v583
        %v695 = vpop.f32.mrf.mxu0
        %v696 = vadd.f32 0.0, %v695
        %697 = vmatmul.f32.gmra.mxu0 %v586
        %v698 = vpop.f32.mrf.mxu0
        %v699 = vadd.f32 0.0, %v698
        %700 = vmatmul.f32.gmra.mxu0 %v589
        %v701 = vpop.f32.mrf.mxu0
        %v702 = vadd.f32 0.0, %v701
        %703 = vmatmul.f32.gmra.mxu0 %v592
        %v704 = vpop.f32.mrf.mxu0
        %v705 = vadd.f32 0.0, %v704
        %706 = vmatmul.f32.gmra.mxu0 %v595
        %v707 = vpop.f32.mrf.mxu0
        %v708 = vadd.f32 0.0, %v707
        %709 = vmatmul.f32.gmra.mxu0 %v598
        %v710 = vpop.f32.mrf.mxu0
        %v711 = vadd.f32 0.0, %v710
        %712 = vmatmul.f32.gmra.mxu0 %v601
        %v713 = vpop.f32.mrf.mxu0
        %v714 = vadd.f32 0.0, %v713
        %715 = vmatmul.f32.gmra.mxu0 %v604
        %v716 = vpop.f32.mrf.mxu0
        %v717 = vadd.f32 0.0, %v716
        %718 = vmatmul.f32.gmra.mxu0 %v607
        %v719 = vpop.f32.mrf.mxu0
        %v720 = vadd.f32 0.0, %v719
        %721 = vmatmul.f32.gmra.mxu0 %v610
        %v722 = vpop.f32.mrf.mxu0
        %v723 = vadd.f32 0.0, %v722
        %724 = vmatmul.f32.gmra.mxu0 %v613
        %v725 = vpop.f32.mrf.mxu0
        %v726 = vadd.f32 0.0, %v725
        %727 = vmatmul.f32.gmra.mxu0 %v616
        %v728 = vpop.f32.mrf.mxu0
        %v729 = vadd.f32 0.0, %v728
        %730 = vmatmul.f32.gmra.mxu0 %v619
        %v731 = vpop.f32.mrf.mxu0
        %v732 = vadd.f32 0.0, %v731
        %733 = vmatmul.f32.gmra.mxu0 %v622
        %v734 = vpop.f32.mrf.mxu0
        %v735 = vadd.f32 0.0, %v734
        %736 = vmatmul.f32.gmra.mxu0 %v625
        %v737 = vpop.f32.mrf.mxu0
        %v738 = vadd.f32 0.0, %v737
        %739 = vmatmul.f32.gmra.mxu0 %v628
        %v740 = vpop.f32.mrf.mxu0
        %v741 = vadd.f32 0.0, %v740
        %742 = vmatmul.f32.gmra.mxu0 %v631
        %v743 = vpop.f32.mrf.mxu0
        %v744 = vadd.f32 0.0, %v743
        %745 = vmatmul.f32.gmra.mxu0 %v634
        %v746 = vpop.f32.mrf.mxu0
        %v747 = vadd.f32 0.0, %v746
        %748 = vmatmul.f32.gmra.mxu0 %v637
        %v749 = vpop.f32.mrf.mxu0
        %v750 = vadd.f32 0.0, %v749
        %751 = vmatmul.f32.gmra.mxu0 %v640
        %v752 = vpop.f32.mrf.mxu0
        %v753 = vadd.f32 0.0, %v752
        %754 = vmatmul.f32.gmra.mxu0 %v643
        %v755 = vpop.f32.mrf.mxu0
        %v756 = vadd.f32 0.0, %v755
        %757 = vmatmul.f32.gmra.mxu0 %v646
        %v758 = vpop.f32.mrf.mxu0
        %v759 = vadd.f32 0.0, %v758
        %760 = vmatmul.f32.gmra.mxu0 %v649
        %v761 = vpop.f32.mrf.mxu0
        %v762 = vadd.f32 0.0, %v761
        %763 = vmatmul.f32.gmra.mxu0 %v652
        %v764 = vpop.f32.mrf.mxu0
        %v765 = vadd.f32 0.0, %v764
        %766 = vmatmul.f32.gmra.mxu0 %v655
        %v767 = vpop.f32.mrf.mxu0
        %v768 = vadd.f32 0.0, %v767
        %769 = vmatmul.f32.gmra.mxu0 %v658
        %v770 = vpop.f32.mrf.mxu0
        %v771 = vadd.f32 0.0, %v770
        %772 = vmatmul.f32.gmra.mxu0 %v661
        %v773 = vpop.f32.mrf.mxu0
        %v774 = vadd.f32 0.0, %v773
        %775 = vmatmul.f32.gmra.mxu0 %v664
        %v776 = vpop.f32.mrf.mxu0
        %v777 = vadd.f32 0.0, %v776
        %778 = vmatmul.f32.gmra.mxu0 %v667
        %v779 = vpop.f32.mrf.mxu0
        %v780 = vadd.f32 0.0, %v779
        %781 = vmatmul.f32.gmra.mxu0 %v670
        %v782 = vpop.f32.mrf.mxu0
        %v783 = vadd.f32 0.0, %v782
        %784 = vdwg.mxu0
        %v785 = vadd.f32 %v538, %v690
        %v786 = vadd.f32 %v539, %v693
        %v787 = vadd.f32 %v540, %v696
        %v788 = vadd.f32 %v541, %v699
        %v789 = vadd.f32 %v542, %v702
        %v790 = vadd.f32 %v543, %v705
        %v791 = vadd.f32 %v544, %v708
        %v792 = vadd.f32 %v545, %v711
        %v793 = vadd.f32 %v546, %v714
        %v794 = vadd.f32 %v547, %v717
        %v795 = vadd.f32 %v548, %v720
        %v796 = vadd.f32 %v549, %v723
        %v797 = vadd.f32 %v550, %v726
        %v798 = vadd.f32 %v551, %v729
        %v799 = vadd.f32 %v552, %v732
        %v800 = vadd.f32 %v553, %v735
        %v801 = vadd.f32 %v554, %v738
        %v802 = vadd.f32 %v555, %v741
        %v803 = vadd.f32 %v556, %v744
        %v804 = vadd.f32 %v557, %v747
        %v805 = vadd.f32 %v558, %v750
        %v806 = vadd.f32 %v559, %v753
        %v807 = vadd.f32 %v560, %v756
        %v808 = vadd.f32 %v561, %v759
        %v809 = vadd.f32 %v562, %v762
        %v810 = vadd.f32 %v563, %v765
        %v811 = vadd.f32 %v564, %v768
        %v812 = vadd.f32 %v565, %v771
        %v813 = vadd.f32 %v566, %v774
        %v814 = vadd.f32 %v567, %v777
        %v815 = vadd.f32 %v568, %v780
        %v816 = vadd.f32 %v569, %v783
        %v817 = vperm.slane %v575, 0
        %v818 = vadd.f32 %v785, %v817
        %v819 = vadd.f32 %v786, %v817
        %v820 = vadd.f32 %v787, %v817
        %v821 = vadd.f32 %v788, %v817
        %v822 = vadd.f32 %v789, %v817
        %v823 = vadd.f32 %v790, %v817
        %v824 = vadd.f32 %v791, %v817
        %v825 = vadd.f32 %v792, %v817
        %v826 = vadd.f32 %v793, %v817
        %v827 = vadd.f32 %v794, %v817
        %v828 = vadd.f32 %v795, %v817
        %v829 = vadd.f32 %v796, %v817
        %v830 = vadd.f32 %v797, %v817
        %v831 = vadd.f32 %v798, %v817
        %v832 = vadd.f32 %v799, %v817
        %v833 = vadd.f32 %v800, %v817
        %v834 = vadd.f32 %v801, %v817
        %v835 = vadd.f32 %v802, %v817
        %v836 = vadd.f32 %v803, %v817
        %v837 = vadd.f32 %v804, %v817
        %v838 = vadd.f32 %v805, %v817
        %v839 = vadd.f32 %v806, %v817
        %v840 = vadd.f32 %v807, %v817
        %v841 = vadd.f32 %v808, %v817
        %v842 = vadd.f32 %v809, %v817
        %v843 = vadd.f32 %v810, %v817
        %v844 = vadd.f32 %v811, %v817
        %v845 = vadd.f32 %v812, %v817
        %v846 = vadd.f32 %v813, %v817
        %v847 = vadd.f32 %v814, %v817
        %v848 = vadd.f32 %v815, %v817
        %v849 = vadd.f32 %v816, %v817
        %v850 = vmax.f32 %v818, 0.0
        %v851 = vmax.f32 %v819, 0.0
        %v852 = vmax.f32 %v820, 0.0
        %v853 = vmax.f32 %v821, 0.0
        %v854 = vmax.f32 %v822, 0.0
        %v855 = vmax.f32 %v823, 0.0
        %v856 = vmax.f32 %v824, 0.0
        %v857 = vmax.f32 %v825, 0.0
        %v858 = vmax.f32 %v826, 0.0
        %v859 = vmax.f32 %v827, 0.0
        %v860 = vmax.f32 %v828, 0.0
        %v861 = vmax.f32 %v829, 0.0
        %v862 = vmax.f32 %v830, 0.0
        %v863 = vmax.f32 %v831, 0.0
        %v864 = vmax.f32 %v832, 0.0
        %v865 = vmax.f32 %v833, 0.0
        %v866 = vmax.f32 %v834, 0.0
        %v867 = vmax.f32 %v835, 0.0
        %v868 = vmax.f32 %v836, 0.0
        %v869 = vmax.f32 %v837, 0.0
        %v870 = vmax.f32 %v838, 0.0
        %v871 = vmax.f32 %v839, 0.0
        %v872 = vmax.f32 %v840, 0.0
        %v873 = vmax.f32 %v841, 0.0
        %v874 = vmax.f32 %v842, 0.0
        %v875 = vmax.f32 %v843, 0.0
        %v876 = vmax.f32 %v844, 0.0
        %v877 = vmax.f32 %v845, 0.0
        %v878 = vmax.f32 %v846, 0.0
        %v879 = vmax.f32 %v847, 0.0
        %v880 = vmax.f32 %v848, 0.0
        %v881 = vmax.f32 %v849, 0.0
        %s882 = scalar_lea.vmem %s1, 64
        %v883 = vld [vmem:[%s882] sm:$0xff]
        %v884 = vld [vmem:[%s882 + $0x8] sm:$0xff]
        %v885 = vld [vmem:[%s882 + $0x10] sm:$0xff]
        %v886 = vld [vmem:[%s882 + $0x18] sm:$0xff]
        %v887 = vld [vmem:[%s2 + $0x2] sm:$0x1]
        %v889 = vsel %vm263, %v850, 0
        %v892 = vsel %vm263, %v851, 0
        %v895 = vsel %vm263, %v852, 0
        %v898 = vsel %vm263, %v853, 0
        %v901 = vsel %vm263, %v854, 0
        %v904 = vsel %vm263, %v855, 0
        %v907 = vsel %vm263, %v856, 0
        %v910 = vsel %vm263, %v857, 0
        %v913 = vsel %vm263, %v858, 0
        %v916 = vsel %vm263, %v859, 0
        %v919 = vsel %vm263, %v860, 0
        %v922 = vsel %vm263, %v861, 0
        %v925 = vsel %vm263, %v862, 0
        %v928 = vsel %vm263, %v863, 0
        %v931 = vsel %vm263, %v864, 0
        %v934 = vsel %vm263, %v865, 0
        %v937 = vsel %vm263, %v866, 0
        %v940 = vsel %vm263, %v867, 0
        %v943 = vsel %vm263, %v868, 0
        %v946 = vsel %vm263, %v869, 0
        %v949 = vsel %vm263, %v870, 0
        %v952 = vsel %vm263, %v871, 0
        %v955 = vsel %vm263, %v872, 0
        %v958 = vsel %vm263, %v873, 0
        %v961 = vsel %vm263, %v874, 0
        %v964 = vsel %vm263, %v875, 0
        %v967 = vsel %vm263, %v876, 0
        %v970 = vsel %vm263, %v877, 0
        %v973 = vsel %vm263, %v878, 0
        %v976 = vsel %vm263, %v879, 0
        %v979 = vsel %vm263, %v880, 0
        %v982 = vsel %vm263, %v881, 0
        %984 = vmatpush.msra.mxu0 0.0
        %985 = vmatpush.msra.mxu0 0.0
        %986 = vmatpush.msra.mxu0 0.0
        %987 = vmatpush.msra.mxu0 0.0
        %988 = vmatpush.msra.mxu0 0.0
        %989 = vmatpush.msra.mxu0 0.0
        %990 = vmatpush.msra.mxu0 0.0
        %991 = vmatpush.msra.mxu0 0.0
        %992 = vmatpush.msra.mxu0 0.0
        %993 = vmatpush.msra.mxu0 0.0
        %994 = vmatpush.msra.mxu0 0.0
        %995 = vmatpush.msra.mxu0 0.0
        %996 = vmatpush.msra.mxu0 %v886
        %997 = vmatpush.msra.mxu0 %v885
        %998 = vmatpush.msra.mxu0 %v884
        %999 = vmatpush.msra.mxu0 %v883
        %1000 = vmatmul.f32.gmra.mxu0 %v889
        %v1001 = vpop.f32.mrf.mxu0
        %v1002 = vadd.f32 0.0, %v1001
        %1003 = vmatmul.f32.gmra.mxu0 %v892
        %v1004 = vpop.f32.mrf.mxu0
        %v1005 = vadd.f32 0.0, %v1004
        %1006 = vmatmul.f32.gmra.mxu0 %v895
        %v1007 = vpop.f32.mrf.mxu0
        %v1008 = vadd.f32 0.0, %v1007
        %1009 = vmatmul.f32.gmra.mxu0 %v898
        %v1010 = vpop.f32.mrf.mxu0
        %v1011 = vadd.f32 0.0, %v1010
        %1012 = vmatmul.f32.gmra.mxu0 %v901
        %v1013 = vpop.f32.mrf.mxu0
        %v1014 = vadd.f32 0.0, %v1013
        %1015 = vmatmul.f32.gmra.mxu0 %v904
        %v1016 = vpop.f32.mrf.mxu0
        %v1017 = vadd.f32 0.0, %v1016
        %1018 = vmatmul.f32.gmra.mxu0 %v907
        %v1019 = vpop.f32.mrf.mxu0
        %v1020 = vadd.f32 0.0, %v1019
        %1021 = vmatmul.f32.gmra.mxu0 %v910
        %v1022 = vpop.f32.mrf.mxu0
        %v1023 = vadd.f32 0.0, %v1022
        %1024 = vmatmul.f32.gmra.mxu0 %v913
        %v1025 = vpop.f32.mrf.mxu0
        %v1026 = vadd.f32 0.0, %v1025
        %1027 = vmatmul.f32.gmra.mxu0 %v916
        %v1028 = vpop.f32.mrf.mxu0
        %v1029 = vadd.f32 0.0, %v1028
        %1030 = vmatmul.f32.gmra.mxu0 %v919
        %v1031 = vpop.f32.mrf.mxu0
        %v1032 = vadd.f32 0.0, %v1031
        %1033 = vmatmul.f32.gmra.mxu0 %v922
        %v1034 = vpop.f32.mrf.mxu0
        %v1035 = vadd.f32 0.0, %v1034
        %1036 = vmatmul.f32.gmra.mxu0 %v925
        %v1037 = vpop.f32.mrf.mxu0
        %v1038 = vadd.f32 0.0, %v1037
        %1039 = vmatmul.f32.gmra.mxu0 %v928
        %v1040 = vpop.f32.mrf.mxu0
        %v1041 = vadd.f32 0.0, %v1040
        %1042 = vmatmul.f32.gmra.mxu0 %v931
        %v1043 = vpop.f32.mrf.mxu0
        %v1044 = vadd.f32 0.0, %v1043
        %1045 = vmatmul.f32.gmra.mxu0 %v934
        %v1046 = vpop.f32.mrf.mxu0
        %v1047 = vadd.f32 0.0, %v1046
        %1048 = vmatmul.f32.gmra.mxu0 %v937
        %v1049 = vpop.f32.mrf.mxu0
        %v1050 = vadd.f32 0.0, %v1049
        %1051 = vmatmul.f32.gmra.mxu0 %v940
        %v1052 = vpop.f32.mrf.mxu0
        %v1053 = vadd.f32 0.0, %v1052
        %1054 = vmatmul.f32.gmra.mxu0 %v943
        %v1055 = vpop.f32.mrf.mxu0
        %v1056 = vadd.f32 0.0, %v1055
        %1057 = vmatmul.f32.gmra.mxu0 %v946
        %v1058 = vpop.f32.mrf.mxu0
        %v1059 = vadd.f32 0.0, %v1058
        %1060 = vmatmul.f32.gmra.mxu0 %v949
        %v1061 = vpop.f32.mrf.mxu0
        %v1062 = vadd.f32 0.0, %v1061
        %1063 = vmatmul.f32.gmra.mxu0 %v952
        %v1064 = vpop.f32.mrf.mxu0
        %v1065 = vadd.f32 0.0, %v1064
        %1066 = vmatmul.f32.gmra.mxu0 %v955
        %v1067 = vpop.f32.mrf.mxu0
        %v1068 = vadd.f32 0.0, %v1067
        %1069 = vmatmul.f32.gmra.mxu0 %v958
        %v1070 = vpop.f32.mrf.mxu0
        %v1071 = vadd.f32 0.0, %v1070
        %1072 = vmatmul.f32.gmra.mxu0 %v961
        %v1073 = vpop.f32.mrf.mxu0
        %v1074 = vadd.f32 0.0, %v1073
        %1075 = vmatmul.f32.gmra.mxu0 %v964
        %v1076 = vpop.f32.mrf.mxu0
        %v1077 = vadd.f32 0.0, %v1076
        %1078 = vmatmul.f32.gmra.mxu0 %v967
        %v1079 = vpop.f32.mrf.mxu0
        %v1080 = vadd.f32 0.0, %v1079
        %1081 = vmatmul.f32.gmra.mxu0 %v970
        %v1082 = vpop.f32.mrf.mxu0
        %v1083 = vadd.f32 0.0, %v1082
        %1084 = vmatmul.f32.gmra.mxu0 %v973
        %v1085 = vpop.f32.mrf.mxu0
        %v1086 = vadd.f32 0.0, %v1085
        %1087 = vmatmul.f32.gmra.mxu0 %v976
        %v1088 = vpop.f32.mrf.mxu0
        %v1089 = vadd.f32 0.0, %v1088
        %1090 = vmatmul.f32.gmra.mxu0 %v979
        %v1091 = vpop.f32.mrf.mxu0
        %v1092 = vadd.f32 0.0, %v1091
        %1093 = vmatmul.f32.gmra.mxu0 %v982
        %v1094 = vpop.f32.mrf.mxu0
        %v1095 = vadd.f32 0.0, %v1094
        %1096 = vdwg.mxu0
        %v1097 = vadd.f32 %v850, %v1002
        %v1098 = vadd.f32 %v851, %v1005
        %v1099 = vadd.f32 %v852, %v1008
        %v1100 = vadd.f32 %v853, %v1011
        %v1101 = vadd.f32 %v854, %v1014
        %v1102 = vadd.f32 %v855, %v1017
        %v1103 = vadd.f32 %v856, %v1020
        %v1104 = vadd.f32 %v857, %v1023
        %v1105 = vadd.f32 %v858, %v1026
        %v1106 = vadd.f32 %v859, %v1029
        %v1107 = vadd.f32 %v860, %v1032
        %v1108 = vadd.f32 %v861, %v1035
        %v1109 = vadd.f32 %v862, %v1038
        %v1110 = vadd.f32 %v863, %v1041
        %v1111 = vadd.f32 %v864, %v1044
        %v1112 = vadd.f32 %v865, %v1047
        %v1113 = vadd.f32 %v866, %v1050
        %v1114 = vadd.f32 %v867, %v1053
        %v1115 = vadd.f32 %v868, %v1056
        %v1116 = vadd.f32 %v869, %v1059
        %v1117 = vadd.f32 %v870, %v1062
        %v1118 = vadd.f32 %v871, %v1065
        %v1119 = vadd.f32 %v872, %v1068
        %v1120 = vadd.f32 %v873, %v1071
        %v1121 = vadd.f32 %v874, %v1074
        %v1122 = vadd.f32 %v875, %v1077
        %v1123 = vadd.f32 %v876, %v1080
        %v1124 = vadd.f32 %v877, %v1083
        %v1125 = vadd.f32 %v878, %v1086
        %v1126 = vadd.f32 %v879, %v1089
        %v1127 = vadd.f32 %v880, %v1092
        %v1128 = vadd.f32 %v881, %v1095
        %v1129 = vperm.slane %v887, 0
        %v1130 = vadd.f32 %v1097, %v1129
        %v1131 = vadd.f32 %v1098, %v1129
        %v1132 = vadd.f32 %v1099, %v1129
        %v1133 = vadd.f32 %v1100, %v1129
        %v1134 = vadd.f32 %v1101, %v1129
        %v1135 = vadd.f32 %v1102, %v1129
        %v1136 = vadd.f32 %v1103, %v1129
        %v1137 = vadd.f32 %v1104, %v1129
        %v1138 = vadd.f32 %v1105, %v1129
        %v1139 = vadd.f32 %v1106, %v1129
        %v1140 = vadd.f32 %v1107, %v1129
        %v1141 = vadd.f32 %v1108, %v1129
        %v1142 = vadd.f32 %v1109, %v1129
        %v1143 = vadd.f32 %v1110, %v1129
        %v1144 = vadd.f32 %v1111, %v1129
        %v1145 = vadd.f32 %v1112, %v1129
        %v1146 = vadd.f32 %v1113, %v1129
        %v1147 = vadd.f32 %v1114, %v1129
        %v1148 = vadd.f32 %v1115, %v1129
        %v1149 = vadd.f32 %v1116, %v1129
        %v1150 = vadd.f32 %v1117, %v1129
        %v1151 = vadd.f32 %v1118, %v1129
        %v1152 = vadd.f32 %v1119, %v1129
        %v1153 = vadd.f32 %v1120, %v1129
        %v1154 = vadd.f32 %v1121, %v1129
        %v1155 = vadd.f32 %v1122, %v1129
        %v1156 = vadd.f32 %v1123, %v1129
        %v1157 = vadd.f32 %v1124, %v1129
        %v1158 = vadd.f32 %v1125, %v1129
        %v1159 = vadd.f32 %v1126, %v1129
        %v1160 = vadd.f32 %v1127, %v1129
        %v1161 = vadd.f32 %v1128, %v1129
        %v1162 = vmax.f32 %v1130, 0.0
        %v1163 = vmax.f32 %v1131, 0.0
        %v1164 = vmax.f32 %v1132, 0.0
        %v1165 = vmax.f32 %v1133, 0.0
        %v1166 = vmax.f32 %v1134, 0.0
        %v1167 = vmax.f32 %v1135, 0.0
        %v1168 = vmax.f32 %v1136, 0.0
        %v1169 = vmax.f32 %v1137, 0.0
        %v1170 = vmax.f32 %v1138, 0.0
        %v1171 = vmax.f32 %v1139, 0.0
        %v1172 = vmax.f32 %v1140, 0.0
        %v1173 = vmax.f32 %v1141, 0.0
        %v1174 = vmax.f32 %v1142, 0.0
        %v1175 = vmax.f32 %v1143, 0.0
        %v1176 = vmax.f32 %v1144, 0.0
        %v1177 = vmax.f32 %v1145, 0.0
        %v1178 = vmax.f32 %v1146, 0.0
        %v1179 = vmax.f32 %v1147, 0.0
        %v1180 = vmax.f32 %v1148, 0.0
        %v1181 = vmax.f32 %v1149, 0.0
        %v1182 = vmax.f32 %v1150, 0.0
        %v1183 = vmax.f32 %v1151, 0.0
        %v1184 = vmax.f32 %v1152, 0.0
        %v1185 = vmax.f32 %v1153, 0.0
        %v1186 = vmax.f32 %v1154, 0.0
        %v1187 = vmax.f32 %v1155, 0.0
        %v1188 = vmax.f32 %v1156, 0.0
        %v1189 = vmax.f32 %v1157, 0.0
        %v1190 = vmax.f32 %v1158, 0.0
        %v1191 = vmax.f32 %v1159, 0.0
        %v1192 = vmax.f32 %v1160, 0.0
        %v1193 = vmax.f32 %v1161, 0.0
        %s1194 = scalar_lea.vmem %s1, 96
        %v1195 = vld [vmem:[%s1194] sm:$0xff]
        %v1196 = vld [vmem:[%s1194 + $0x8] sm:$0xff]
        %v1197 = vld [vmem:[%s1194 + $0x10] sm:$0xff]
        %v1198 = vld [vmem:[%s1194 + $0x18] sm:$0xff]
        %v1199 = vld [vmem:[%s2 + $0x3] sm:$0x1]
        %v1201 = vsel %vm263, %v1162, 0
        %v1204 = vsel %vm263, %v1163, 0
        %v1207 = vsel %vm263, %v1164, 0
        %v1210 = vsel %vm263, %v1165, 0
        %v1213 = vsel %vm263, %v1166, 0
        %v1216 = vsel %vm263, %v1167, 0
        %v1219 = vsel %vm263, %v1168, 0
        %v1222 = vsel %vm263, %v1169, 0
        %v1225 = vsel %vm263, %v1170, 0
        %v1228 = vsel %vm263, %v1171, 0
        %v1231 = vsel %vm263, %v1172, 0
        %v1234 = vsel %vm263, %v1173, 0
        %v1237 = vsel %vm263, %v1174, 0
        %v1240 = vsel %vm263, %v1175, 0
        %v1243 = vsel %vm263, %v1176, 0
        %v1246 = vsel %vm263, %v1177, 0
        %v1249 = vsel %vm263, %v1178, 0
        %v1252 = vsel %vm263, %v1179, 0
        %v1255 = vsel %vm263, %v1180, 0
        %v1258 = vsel %vm263, %v1181, 0
        %v1261 = vsel %vm263, %v1182, 0
        %v1264 = vsel %vm263, %v1183, 0
        %v1267 = vsel %vm263, %v1184, 0
        %v1270 = vsel %vm263, %v1185, 0
        %v1273 = vsel %vm263, %v1186, 0
        %v1276 = vsel %vm263, %v1187, 0
        %v1279 = vsel %vm263, %v1188, 0
        %v1282 = vsel %vm263, %v1189, 0
        %v1285 = vsel %vm263, %v1190, 0
        %v1288 = vsel %vm263, %v1191, 0
        %v1291 = vsel %vm263, %v1192, 0
        %v1294 = vsel %vm263, %v1193, 0
        %1296 = vmatpush.msra.mxu0 0.0
        %1297 = vmatpush.msra.mxu0 0.0
        %1298 = vmatpush.msra.mxu0 0.0
        %1299 = vmatpush.msra.mxu0 0.0
        %1300 = vmatpush.msra.mxu0 0.0
        %1301 = vmatpush.msra.mxu0 0.0
        %1302 = vmatpush.msra.mxu0 0.0
        %1303 = vmatpush.msra.mxu0 0.0
        %1304 = vmatpush.msra.mxu0 0.0
        %1305 = vmatpush.msra.mxu0 0.0
        %1306 = vmatpush.msra.mxu0 0.0
        %1307 = vmatpush.msra.mxu0 0.0
        %1308 = vmatpush.msra.mxu0 %v1198
        %1309 = vmatpush.msra.mxu0 %v1197
        %1310 = vmatpush.msra.mxu0 %v1196
        %1311 = vmatpush.msra.mxu0 %v1195
        %1312 = vmatmul.f32.gmra.mxu0 %v1201
        %v1313 = vpop.f32.mrf.mxu0
        %v1314 = vadd.f32 0.0, %v1313
        %1315 = vmatmul.f32.gmra.mxu0 %v1204
        %v1316 = vpop.f32.mrf.mxu0
        %v1317 = vadd.f32 0.0, %v1316
        %1318 = vmatmul.f32.gmra.mxu0 %v1207
        %v1319 = vpop.f32.mrf.mxu0
        %v1320 = vadd.f32 0.0, %v1319
        %1321 = vmatmul.f32.gmra.mxu0 %v1210
        %v1322 = vpop.f32.mrf.mxu0
        %v1323 = vadd.f32 0.0, %v1322
        %1324 = vmatmul.f32.gmra.mxu0 %v1213
        %v1325 = vpop.f32.mrf.mxu0
        %v1326 = vadd.f32 0.0, %v1325
        %1327 = vmatmul.f32.gmra.mxu0 %v1216
        %v1328 = vpop.f32.mrf.mxu0
        %v1329 = vadd.f32 0.0, %v1328
        %1330 = vmatmul.f32.gmra.mxu0 %v1219
        %v1331 = vpop.f32.mrf.mxu0
        %v1332 = vadd.f32 0.0, %v1331
        %1333 = vmatmul.f32.gmra.mxu0 %v1222
        %v1334 = vpop.f32.mrf.mxu0
        %v1335 = vadd.f32 0.0, %v1334
        %1336 = vmatmul.f32.gmra.mxu0 %v1225
        %v1337 = vpop.f32.mrf.mxu0
        %v1338 = vadd.f32 0.0, %v1337
        %1339 = vmatmul.f32.gmra.mxu0 %v1228
        %v1340 = vpop.f32.mrf.mxu0
        %v1341 = vadd.f32 0.0, %v1340
        %1342 = vmatmul.f32.gmra.mxu0 %v1231
        %v1343 = vpop.f32.mrf.mxu0
        %v1344 = vadd.f32 0.0, %v1343
        %1345 = vmatmul.f32.gmra.mxu0 %v1234
        %v1346 = vpop.f32.mrf.mxu0
        %v1347 = vadd.f32 0.0, %v1346
        %1348 = vmatmul.f32.gmra.mxu0 %v1237
        %v1349 = vpop.f32.mrf.mxu0
        %v1350 = vadd.f32 0.0, %v1349
        %1351 = vmatmul.f32.gmra.mxu0 %v1240
        %v1352 = vpop.f32.mrf.mxu0
        %v1353 = vadd.f32 0.0, %v1352
        %1354 = vmatmul.f32.gmra.mxu0 %v1243
        %v1355 = vpop.f32.mrf.mxu0
        %v1356 = vadd.f32 0.0, %v1355
        %1357 = vmatmul.f32.gmra.mxu0 %v1246
        %v1358 = vpop.f32.mrf.mxu0
        %v1359 = vadd.f32 0.0, %v1358
        %1360 = vmatmul.f32.gmra.mxu0 %v1249
        %v1361 = vpop.f32.mrf.mxu0
        %v1362 = vadd.f32 0.0, %v1361
        %1363 = vmatmul.f32.gmra.mxu0 %v1252
        %v1364 = vpop.f32.mrf.mxu0
        %v1365 = vadd.f32 0.0, %v1364
        %1366 = vmatmul.f32.gmra.mxu0 %v1255
        %v1367 = vpop.f32.mrf.mxu0
        %v1368 = vadd.f32 0.0, %v1367
        %1369 = vmatmul.f32.gmra.mxu0 %v1258
        %v1370 = vpop.f32.mrf.mxu0
        %v1371 = vadd.f32 0.0, %v1370
        %1372 = vmatmul.f32.gmra.mxu0 %v1261
        %v1373 = vpop.f32.mrf.mxu0
        %v1374 = vadd.f32 0.0, %v1373
        %1375 = vmatmul.f32.gmra.mxu0 %v1264
        %v1376 = vpop.f32.mrf.mxu0
        %v1377 = vadd.f32 0.0, %v1376
        %1378 = vmatmul.f32.gmra.mxu0 %v1267
        %v1379 = vpop.f32.mrf.mxu0
        %v1380 = vadd.f32 0.0, %v1379
        %1381 = vmatmul.f32.gmra.mxu0 %v1270
        %v1382 = vpop.f32.mrf.mxu0
        %v1383 = vadd.f32 0.0, %v1382
        %1384 = vmatmul.f32.gmra.mxu0 %v1273
        %v1385 = vpop.f32.mrf.mxu0
        %v1386 = vadd.f32 0.0, %v1385
        %1387 = vmatmul.f32.gmra.mxu0 %v1276
        %v1388 = vpop.f32.mrf.mxu0
        %v1389 = vadd.f32 0.0, %v1388
        %1390 = vmatmul.f32.gmra.mxu0 %v1279
        %v1391 = vpop.f32.mrf.mxu0
        %v1392 = vadd.f32 0.0, %v1391
        %1393 = vmatmul.f32.gmra.mxu0 %v1282
        %v1394 = vpop.f32.mrf.mxu0
        %v1395 = vadd.f32 0.0, %v1394
        %1396 = vmatmul.f32.gmra.mxu0 %v1285
        %v1397 = vpop.f32.mrf.mxu0
        %v1398 = vadd.f32 0.0, %v1397
        %1399 = vmatmul.f32.gmra.mxu0 %v1288
        %v1400 = vpop.f32.mrf.mxu0
        %v1401 = vadd.f32 0.0, %v1400
        %1402 = vmatmul.f32.gmra.mxu0 %v1291
        %v1403 = vpop.f32.mrf.mxu0
        %v1404 = vadd.f32 0.0, %v1403
        %1405 = vmatmul.f32.gmra.mxu0 %v1294
        %v1406 = vpop.f32.mrf.mxu0
        %v1407 = vadd.f32 0.0, %v1406
        %1408 = vdwg.mxu0
        %v1409 = vadd.f32 %v1162, %v1314
        %v1410 = vadd.f32 %v1163, %v1317
        %v1411 = vadd.f32 %v1164, %v1320
        %v1412 = vadd.f32 %v1165, %v1323
        %v1413 = vadd.f32 %v1166, %v1326
        %v1414 = vadd.f32 %v1167, %v1329
        %v1415 = vadd.f32 %v1168, %v1332
        %v1416 = vadd.f32 %v1169, %v1335
        %v1417 = vadd.f32 %v1170, %v1338
        %v1418 = vadd.f32 %v1171, %v1341
        %v1419 = vadd.f32 %v1172, %v1344
        %v1420 = vadd.f32 %v1173, %v1347
        %v1421 = vadd.f32 %v1174, %v1350
        %v1422 = vadd.f32 %v1175, %v1353
        %v1423 = vadd.f32 %v1176, %v1356
        %v1424 = vadd.f32 %v1177, %v1359
        %v1425 = vadd.f32 %v1178, %v1362
        %v1426 = vadd.f32 %v1179, %v1365
        %v1427 = vadd.f32 %v1180, %v1368
        %v1428 = vadd.f32 %v1181, %v1371
        %v1429 = vadd.f32 %v1182, %v1374
        %v1430 = vadd.f32 %v1183, %v1377
        %v1431 = vadd.f32 %v1184, %v1380
        %v1432 = vadd.f32 %v1185, %v1383
        %v1433 = vadd.f32 %v1186, %v1386
        %v1434 = vadd.f32 %v1187, %v1389
        %v1435 = vadd.f32 %v1188, %v1392
        %v1436 = vadd.f32 %v1189, %v1395
        %v1437 = vadd.f32 %v1190, %v1398
        %v1438 = vadd.f32 %v1191, %v1401
        %v1439 = vadd.f32 %v1192, %v1404
        %v1440 = vadd.f32 %v1193, %v1407
        %v1441 = vperm.slane %v1199, 0
        %v1442 = vadd.f32 %v1409, %v1441
        %v1443 = vadd.f32 %v1410, %v1441
        %v1444 = vadd.f32 %v1411, %v1441
        %v1445 = vadd.f32 %v1412, %v1441
        %v1446 = vadd.f32 %v1413, %v1441
        %v1447 = vadd.f32 %v1414, %v1441
        %v1448 = vadd.f32 %v1415, %v1441
        %v1449 = vadd.f32 %v1416, %v1441
        %v1450 = vadd.f32 %v1417, %v1441
        %v1451 = vadd.f32 %v1418, %v1441
        %v1452 = vadd.f32 %v1419, %v1441
        %v1453 = vadd.f32 %v1420, %v1441
        %v1454 = vadd.f32 %v1421, %v1441
        %v1455 = vadd.f32 %v1422, %v1441
        %v1456 = vadd.f32 %v1423, %v1441
        %v1457 = vadd.f32 %v1424, %v1441
        %v1458 = vadd.f32 %v1425, %v1441
        %v1459 = vadd.f32 %v1426, %v1441
        %v1460 = vadd.f32 %v1427, %v1441
        %v1461 = vadd.f32 %v1428, %v1441
        %v1462 = vadd.f32 %v1429, %v1441
        %v1463 = vadd.f32 %v1430, %v1441
        %v1464 = vadd.f32 %v1431, %v1441
        %v1465 = vadd.f32 %v1432, %v1441
        %v1466 = vadd.f32 %v1433, %v1441
        %v1467 = vadd.f32 %v1434, %v1441
        %v1468 = vadd.f32 %v1435, %v1441
        %v1469 = vadd.f32 %v1436, %v1441
        %v1470 = vadd.f32 %v1437, %v1441
        %v1471 = vadd.f32 %v1438, %v1441
        %v1472 = vadd.f32 %v1439, %v1441
        %v1473 = vadd.f32 %v1440, %v1441
        %v1474 = vmax.f32 %v1442, 0.0
        %v1475 = vmax.f32 %v1443, 0.0
        %v1476 = vmax.f32 %v1444, 0.0
        %v1477 = vmax.f32 %v1445, 0.0
        %v1478 = vmax.f32 %v1446, 0.0
        %v1479 = vmax.f32 %v1447, 0.0
        %v1480 = vmax.f32 %v1448, 0.0
        %v1481 = vmax.f32 %v1449, 0.0
        %v1482 = vmax.f32 %v1450, 0.0
        %v1483 = vmax.f32 %v1451, 0.0
        %v1484 = vmax.f32 %v1452, 0.0
        %v1485 = vmax.f32 %v1453, 0.0
        %v1486 = vmax.f32 %v1454, 0.0
        %v1487 = vmax.f32 %v1455, 0.0
        %v1488 = vmax.f32 %v1456, 0.0
        %v1489 = vmax.f32 %v1457, 0.0
        %v1490 = vmax.f32 %v1458, 0.0
        %v1491 = vmax.f32 %v1459, 0.0
        %v1492 = vmax.f32 %v1460, 0.0
        %v1493 = vmax.f32 %v1461, 0.0
        %v1494 = vmax.f32 %v1462, 0.0
        %v1495 = vmax.f32 %v1463, 0.0
        %v1496 = vmax.f32 %v1464, 0.0
        %v1497 = vmax.f32 %v1465, 0.0
        %v1498 = vmax.f32 %v1466, 0.0
        %v1499 = vmax.f32 %v1467, 0.0
        %v1500 = vmax.f32 %v1468, 0.0
        %v1501 = vmax.f32 %v1469, 0.0
        %v1502 = vmax.f32 %v1470, 0.0
        %v1503 = vmax.f32 %v1471, 0.0
        %v1504 = vmax.f32 %v1472, 0.0
        %v1505 = vmax.f32 %v1473, 0.0
        %v1506 = vld [vmem:[%s3] sm:$0xff]
        %v1507 = vld [vmem:[%s3 + $0x8] sm:$0xff]
        %v1508 = vld [vmem:[%s3 + $0x10] sm:$0xff]
        %v1509 = vld [vmem:[%s3 + $0x18] sm:$0xff]
        %v1510 = vld [vmem:[%s4] sm:$0x1]
        %v1512 = vperm.slane %v1510, 0
        %v1515 = vsel %vm263, %v1474, 0
        %v1518 = vsel %vm263, %v1475, 0
        %v1521 = vsel %vm263, %v1476, 0
        %v1524 = vsel %vm263, %v1477, 0
        %v1527 = vsel %vm263, %v1478, 0
        %v1530 = vsel %vm263, %v1479, 0
        %v1533 = vsel %vm263, %v1480, 0
        %v1536 = vsel %vm263, %v1481, 0
        %v1539 = vsel %vm263, %v1482, 0
        %v1542 = vsel %vm263, %v1483, 0
        %v1545 = vsel %vm263, %v1484, 0
        %v1548 = vsel %vm263, %v1485, 0
        %v1551 = vsel %vm263, %v1486, 0
        %v1554 = vsel %vm263, %v1487, 0
        %v1557 = vsel %vm263, %v1488, 0
        %v1560 = vsel %vm263, %v1489, 0
        %v1563 = vsel %vm263, %v1490, 0
        %v1566 = vsel %vm263, %v1491, 0
        %v1569 = vsel %vm263, %v1492, 0
        %v1572 = vsel %vm263, %v1493, 0
        %v1575 = vsel %vm263, %v1494, 0
        %v1578 = vsel %vm263, %v1495, 0
        %v1581 = vsel %vm263, %v1496, 0
        %v1584 = vsel %vm263, %v1497, 0
        %v1587 = vsel %vm263, %v1498, 0
        %v1590 = vsel %vm263, %v1499, 0
        %v1593 = vsel %vm263, %v1500, 0
        %v1596 = vsel %vm263, %v1501, 0
        %v1599 = vsel %vm263, %v1502, 0
        %v1602 = vsel %vm263, %v1503, 0
        %v1605 = vsel %vm263, %v1504, 0
        %v1608 = vsel %vm263, %v1505, 0
        %1610 = vmatpush.msra.mxu0 0.0
        %1611 = vmatpush.msra.mxu0 0.0
        %1612 = vmatpush.msra.mxu0 0.0
        %1613 = vmatpush.msra.mxu0 0.0
        %1614 = vmatpush.msra.mxu0 0.0
        %1615 = vmatpush.msra.mxu0 0.0
        %1616 = vmatpush.msra.mxu0 0.0
        %1617 = vmatpush.msra.mxu0 0.0
        %1618 = vmatpush.msra.mxu0 0.0
        %1619 = vmatpush.msra.mxu0 0.0
        %1620 = vmatpush.msra.mxu0 0.0
        %1621 = vmatpush.msra.mxu0 0.0
        %1622 = vmatpush.msra.mxu0 %v1509
        %1623 = vmatpush.msra.mxu0 %v1508
        %1624 = vmatpush.msra.mxu0 %v1507
        %1625 = vmatpush.msra.mxu0 %v1506
        %1626 = vmatmul.f32.gmra.mxu0 %v1515
        %v1627 = vpop.f32.mrf.mxu0
        %v1628 = vadd.f32 %v1512, %v1627
        %1629 = vmatmul.f32.gmra.mxu0 %v1518
        %v1630 = vpop.f32.mrf.mxu0
        %v1631 = vadd.f32 %v1512, %v1630
        %1632 = vmatmul.f32.gmra.mxu0 %v1521
        %v1633 = vpop.f32.mrf.mxu0
        %v1634 = vadd.f32 %v1512, %v1633
        %1635 = vmatmul.f32.gmra.mxu0 %v1524
        %v1636 = vpop.f32.mrf.mxu0
        %v1637 = vadd.f32 %v1512, %v1636
        %1638 = vmatmul.f32.gmra.mxu0 %v1527
        %v1639 = vpop.f32.mrf.mxu0
        %v1640 = vadd.f32 %v1512, %v1639
        %1641 = vmatmul.f32.gmra.mxu0 %v1530
        %v1642 = vpop.f32.mrf.mxu0
        %v1643 = vadd.f32 %v1512, %v1642
        %1644 = vmatmul.f32.gmra.mxu0 %v1533
        %v1645 = vpop.f32.mrf.mxu0
        %v1646 = vadd.f32 %v1512, %v1645
        %1647 = vmatmul.f32.gmra.mxu0 %v1536
        %v1648 = vpop.f32.mrf.mxu0
        %v1649 = vadd.f32 %v1512, %v1648
        %1650 = vmatmul.f32.gmra.mxu0 %v1539
        %v1651 = vpop.f32.mrf.mxu0
        %v1652 = vadd.f32 %v1512, %v1651
        %1653 = vmatmul.f32.gmra.mxu0 %v1542
        %v1654 = vpop.f32.mrf.mxu0
        %v1655 = vadd.f32 %v1512, %v1654
        %1656 = vmatmul.f32.gmra.mxu0 %v1545
        %v1657 = vpop.f32.mrf.mxu0
        %v1658 = vadd.f32 %v1512, %v1657
        %1659 = vmatmul.f32.gmra.mxu0 %v1548
        %v1660 = vpop.f32.mrf.mxu0
        %v1661 = vadd.f32 %v1512, %v1660
        %1662 = vmatmul.f32.gmra.mxu0 %v1551
        %v1663 = vpop.f32.mrf.mxu0
        %v1664 = vadd.f32 %v1512, %v1663
        %1665 = vmatmul.f32.gmra.mxu0 %v1554
        %v1666 = vpop.f32.mrf.mxu0
        %v1667 = vadd.f32 %v1512, %v1666
        %1668 = vmatmul.f32.gmra.mxu0 %v1557
        %v1669 = vpop.f32.mrf.mxu0
        %v1670 = vadd.f32 %v1512, %v1669
        %1671 = vmatmul.f32.gmra.mxu0 %v1560
        %v1672 = vpop.f32.mrf.mxu0
        %v1673 = vadd.f32 %v1512, %v1672
        %1674 = vmatmul.f32.gmra.mxu0 %v1563
        %v1675 = vpop.f32.mrf.mxu0
        %v1676 = vadd.f32 %v1512, %v1675
        %1677 = vmatmul.f32.gmra.mxu0 %v1566
        %v1678 = vpop.f32.mrf.mxu0
        %v1679 = vadd.f32 %v1512, %v1678
        %1680 = vmatmul.f32.gmra.mxu0 %v1569
        %v1681 = vpop.f32.mrf.mxu0
        %v1682 = vadd.f32 %v1512, %v1681
        %1683 = vmatmul.f32.gmra.mxu0 %v1572
        %v1684 = vpop.f32.mrf.mxu0
        %v1685 = vadd.f32 %v1512, %v1684
        %1686 = vmatmul.f32.gmra.mxu0 %v1575
        %v1687 = vpop.f32.mrf.mxu0
        %v1688 = vadd.f32 %v1512, %v1687
        %1689 = vmatmul.f32.gmra.mxu0 %v1578
        %v1690 = vpop.f32.mrf.mxu0
        %v1691 = vadd.f32 %v1512, %v1690
        %1692 = vmatmul.f32.gmra.mxu0 %v1581
        %v1693 = vpop.f32.mrf.mxu0
        %v1694 = vadd.f32 %v1512, %v1693
        %1695 = vmatmul.f32.gmra.mxu0 %v1584
        %v1696 = vpop.f32.mrf.mxu0
        %v1697 = vadd.f32 %v1512, %v1696
        %1698 = vmatmul.f32.gmra.mxu0 %v1587
        %v1699 = vpop.f32.mrf.mxu0
        %v1700 = vadd.f32 %v1512, %v1699
        %1701 = vmatmul.f32.gmra.mxu0 %v1590
        %v1702 = vpop.f32.mrf.mxu0
        %v1703 = vadd.f32 %v1512, %v1702
        %1704 = vmatmul.f32.gmra.mxu0 %v1593
        %v1705 = vpop.f32.mrf.mxu0
        %v1706 = vadd.f32 %v1512, %v1705
        %1707 = vmatmul.f32.gmra.mxu0 %v1596
        %v1708 = vpop.f32.mrf.mxu0
        %v1709 = vadd.f32 %v1512, %v1708
        %1710 = vmatmul.f32.gmra.mxu0 %v1599
        %v1711 = vpop.f32.mrf.mxu0
        %v1712 = vadd.f32 %v1512, %v1711
        %1713 = vmatmul.f32.gmra.mxu0 %v1602
        %v1714 = vpop.f32.mrf.mxu0
        %v1715 = vadd.f32 %v1512, %v1714
        %1716 = vmatmul.f32.gmra.mxu0 %v1605
        %v1717 = vpop.f32.mrf.mxu0
        %v1718 = vadd.f32 %v1512, %v1717
        %1719 = vmatmul.f32.gmra.mxu0 %v1608
        %v1720 = vpop.f32.mrf.mxu0
        %v1721 = vadd.f32 %v1512, %v1720
        %1722 = vdwg.mxu0
        %1723 = vmax.xlane.f32.xlu0 %v1628
        %v1724 = vpop.xlane.xlu0 %1723
        %1725 = vmax.xlane.f32.xlu0 %v1631
        %v1726 = vpop.xlane.xlu0 %1725
        %1727 = vmax.xlane.f32.xlu0 %v1634
        %v1728 = vpop.xlane.xlu0 %1727
        %1729 = vmax.xlane.f32.xlu0 %v1637
        %v1730 = vpop.xlane.xlu0 %1729
        %1731 = vmax.xlane.f32.xlu0 %v1640
        %v1732 = vpop.xlane.xlu0 %1731
        %1733 = vmax.xlane.f32.xlu0 %v1643
        %v1734 = vpop.xlane.xlu0 %1733
        %1735 = vmax.xlane.f32.xlu0 %v1646
        %v1736 = vpop.xlane.xlu0 %1735
        %1737 = vmax.xlane.f32.xlu0 %v1649
        %v1738 = vpop.xlane.xlu0 %1737
        %1739 = vmax.xlane.f32.xlu0 %v1652
        %v1740 = vpop.xlane.xlu0 %1739
        %1741 = vmax.xlane.f32.xlu0 %v1655
        %v1742 = vpop.xlane.xlu0 %1741
        %1743 = vmax.xlane.f32.xlu0 %v1658
        %v1744 = vpop.xlane.xlu0 %1743
        %1745 = vmax.xlane.f32.xlu0 %v1661
        %v1746 = vpop.xlane.xlu0 %1745
        %1747 = vmax.xlane.f32.xlu0 %v1664
        %v1748 = vpop.xlane.xlu0 %1747
        %1749 = vmax.xlane.f32.xlu0 %v1667
        %v1750 = vpop.xlane.xlu0 %1749
        %1751 = vmax.xlane.f32.xlu0 %v1670
        %v1752 = vpop.xlane.xlu0 %1751
        %1753 = vmax.xlane.f32.xlu0 %v1673
        %v1754 = vpop.xlane.xlu0 %1753
        %1755 = vmax.xlane.f32.xlu0 %v1676
        %v1756 = vpop.xlane.xlu0 %1755
        %1757 = vmax.xlane.f32.xlu0 %v1679
        %v1758 = vpop.xlane.xlu0 %1757
        %1759 = vmax.xlane.f32.xlu0 %v1682
        %v1760 = vpop.xlane.xlu0 %1759
        %1761 = vmax.xlane.f32.xlu0 %v1685
        %v1762 = vpop.xlane.xlu0 %1761
        %1763 = vmax.xlane.f32.xlu0 %v1688
        %v1764 = vpop.xlane.xlu0 %1763
        %1765 = vmax.xlane.f32.xlu0 %v1691
        %v1766 = vpop.xlane.xlu0 %1765
        %1767 = vmax.xlane.f32.xlu0 %v1694
        %v1768 = vpop.xlane.xlu0 %1767
        %1769 = vmax.xlane.f32.xlu0 %v1697
        %v1770 = vpop.xlane.xlu0 %1769
        %1771 = vmax.xlane.f32.xlu0 %v1700
        %v1772 = vpop.xlane.xlu0 %1771
        %1773 = vmax.xlane.f32.xlu0 %v1703
        %v1774 = vpop.xlane.xlu0 %1773
        %1775 = vmax.xlane.f32.xlu0 %v1706
        %v1776 = vpop.xlane.xlu0 %1775
        %1777 = vmax.xlane.f32.xlu0 %v1709
        %v1778 = vpop.xlane.xlu0 %1777
        %1779 = vmax.xlane.f32.xlu0 %v1712
        %v1780 = vpop.xlane.xlu0 %1779
        %1781 = vmax.xlane.f32.xlu0 %v1715
        %v1782 = vpop.xlane.xlu0 %1781
        %1783 = vmax.xlane.f32.xlu0 %v1718
        %v1784 = vpop.xlane.xlu0 %1783
        %1785 = vmax.xlane.f32.xlu0 %v1721
        %v1786 = vpop.xlane.xlu0 %1785
        %v1787 = vsub.f32 %v1628, %v1724
        %v1788 = vsub.f32 %v1631, %v1726
        %v1789 = vsub.f32 %v1634, %v1728
        %v1790 = vsub.f32 %v1637, %v1730
        %v1791 = vsub.f32 %v1640, %v1732
        %v1792 = vsub.f32 %v1643, %v1734
        %v1793 = vsub.f32 %v1646, %v1736
        %v1794 = vsub.f32 %v1649, %v1738
        %v1795 = vsub.f32 %v1652, %v1740
        %v1796 = vsub.f32 %v1655, %v1742
        %v1797 = vsub.f32 %v1658, %v1744
        %v1798 = vsub.f32 %v1661, %v1746
        %v1799 = vsub.f32 %v1664, %v1748
        %v1800 = vsub.f32 %v1667, %v1750
        %v1801 = vsub.f32 %v1670, %v1752
        %v1802 = vsub.f32 %v1673, %v1754
        %v1803 = vsub.f32 %v1676, %v1756
        %v1804 = vsub.f32 %v1679, %v1758
        %v1805 = vsub.f32 %v1682, %v1760
        %v1806 = vsub.f32 %v1685, %v1762
        %v1807 = vsub.f32 %v1688, %v1764
        %v1808 = vsub.f32 %v1691, %v1766
        %v1809 = vsub.f32 %v1694, %v1768
        %v1810 = vsub.f32 %v1697, %v1770
        %v1811 = vsub.f32 %v1700, %v1772
        %v1812 = vsub.f32 %v1703, %v1774
        %v1813 = vsub.f32 %v1706, %v1776
        %v1814 = vsub.f32 %v1709, %v1778
        %v1815 = vsub.f32 %v1712, %v1780
        %v1816 = vsub.f32 %v1715, %v1782
        %v1817 = vsub.f32 %v1718, %v1784
        %v1818 = vsub.f32 %v1721, %v1786
        %v1819 = vmul.f32 %v1787, 1.442695
        %v1820 = vpow.pop %v1819
        %v1821 = vmul.f32 %v1788, 1.442695
        %v1822 = vpow.pop %v1821
        %v1823 = vmul.f32 %v1789, 1.442695
        %v1824 = vpow.pop %v1823
        %v1825 = vmul.f32 %v1790, 1.442695
        %v1826 = vpow.pop %v1825
        %v1827 = vmul.f32 %v1791, 1.442695
        %v1828 = vpow.pop %v1827
        %v1829 = vmul.f32 %v1792, 1.442695
        %v1830 = vpow.pop %v1829
        %v1831 = vmul.f32 %v1793, 1.442695
        %v1832 = vpow.pop %v1831
        %v1833 = vmul.f32 %v1794, 1.442695
        %v1834 = vpow.pop %v1833
        %v1835 = vmul.f32 %v1795, 1.442695
        %v1836 = vpow.pop %v1835
        %v1837 = vmul.f32 %v1796, 1.442695
        %v1838 = vpow.pop %v1837
        %v1839 = vmul.f32 %v1797, 1.442695
        %v1840 = vpow.pop %v1839
        %v1841 = vmul.f32 %v1798, 1.442695
        %v1842 = vpow.pop %v1841
        %v1843 = vmul.f32 %v1799, 1.442695
        %v1844 = vpow.pop %v1843
        %v1845 = vmul.f32 %v1800, 1.442695
        %v1846 = vpow.pop %v1845
        %v1847 = vmul.f32 %v1801, 1.442695
        %v1848 = vpow.pop %v1847
        %v1849 = vmul.f32 %v1802, 1.442695
        %v1850 = vpow.pop %v1849
        %v1851 = vmul.f32 %v1803, 1.442695
        %v1852 = vpow.pop %v1851
        %v1853 = vmul.f32 %v1804, 1.442695
        %v1854 = vpow.pop %v1853
        %v1855 = vmul.f32 %v1805, 1.442695
        %v1856 = vpow.pop %v1855
        %v1857 = vmul.f32 %v1806, 1.442695
        %v1858 = vpow.pop %v1857
        %v1859 = vmul.f32 %v1807, 1.442695
        %v1860 = vpow.pop %v1859
        %v1861 = vmul.f32 %v1808, 1.442695
        %v1862 = vpow.pop %v1861
        %v1863 = vmul.f32 %v1809, 1.442695
        %v1864 = vpow.pop %v1863
        %v1865 = vmul.f32 %v1810, 1.442695
        %v1866 = vpow.pop %v1865
        %v1867 = vmul.f32 %v1811, 1.442695
        %v1868 = vpow.pop %v1867
        %v1869 = vmul.f32 %v1812, 1.442695
        %v1870 = vpow.pop %v1869
        %v1871 = vmul.f32 %v1813, 1.442695
        %v1872 = vpow.pop %v1871
        %v1873 = vmul.f32 %v1814, 1.442695
        %v1874 = vpow.pop %v1873
        %v1875 = vmul.f32 %v1815, 1.442695
        %v1876 = vpow.pop %v1875
        %v1877 = vmul.f32 %v1816, 1.442695
        %v1878 = vpow.pop %v1877
        %v1879 = vmul.f32 %v1817, 1.442695
        %v1880 = vpow.pop %v1879
        %v1881 = vmul.f32 %v1818, 1.442695
        %v1882 = vpow.pop %v1881
        %1883 = vadd.xlane.f32.xlu0 %v1820
        %v1884 = vpop.xlane.xlu0 %1883
        %1885 = vadd.xlane.f32.xlu0 %v1822
        %v1886 = vpop.xlane.xlu0 %1885
        %1887 = vadd.xlane.f32.xlu0 %v1824
        %v1888 = vpop.xlane.xlu0 %1887
        %1889 = vadd.xlane.f32.xlu0 %v1826
        %v1890 = vpop.xlane.xlu0 %1889
        %1891 = vadd.xlane.f32.xlu0 %v1828
        %v1892 = vpop.xlane.xlu0 %1891
        %1893 = vadd.xlane.f32.xlu0 %v1830
        %v1894 = vpop.xlane.xlu0 %1893
        %1895 = vadd.xlane.f32.xlu0 %v1832
        %v1896 = vpop.xlane.xlu0 %1895
        %1897 = vadd.xlane.f32.xlu0 %v1834
        %v1898 = vpop.xlane.xlu0 %1897
        %1899 = vadd.xlane.f32.xlu0 %v1836
        %v1900 = vpop.xlane.xlu0 %1899
        %1901 = vadd.xlane.f32.xlu0 %v1838
        %v1902 = vpop.xlane.xlu0 %1901
        %1903 = vadd.xlane.f32.xlu0 %v1840
        %v1904 = vpop.xlane.xlu0 %1903
        %1905 = vadd.xlane.f32.xlu0 %v1842
        %v1906 = vpop.xlane.xlu0 %1905
        %1907 = vadd.xlane.f32.xlu0 %v1844
        %v1908 = vpop.xlane.xlu0 %1907
        %1909 = vadd.xlane.f32.xlu0 %v1846
        %v1910 = vpop.xlane.xlu0 %1909
        %1911 = vadd.xlane.f32.xlu0 %v1848
        %v1912 = vpop.xlane.xlu0 %1911
        %1913 = vadd.xlane.f32.xlu0 %v1850
        %v1914 = vpop.xlane.xlu0 %1913
        %1915 = vadd.xlane.f32.xlu0 %v1852
        %v1916 = vpop.xlane.xlu0 %1915
        %1917 = vadd.xlane.f32.xlu0 %v1854
        %v1918 = vpop.xlane.xlu0 %1917
        %1919 = vadd.xlane.f32.xlu0 %v1856
        %v1920 = vpop.xlane.xlu0 %1919
        %1921 = vadd.xlane.f32.xlu0 %v1858
        %v1922 = vpop.xlane.xlu0 %1921
        %1923 = vadd.xlane.f32.xlu0 %v1860
        %v1924 = vpop.xlane.xlu0 %1923
        %1925 = vadd.xlane.f32.xlu0 %v1862
        %v1926 = vpop.xlane.xlu0 %1925
        %1927 = vadd.xlane.f32.xlu0 %v1864
        %v1928 = vpop.xlane.xlu0 %1927
        %1929 = vadd.xlane.f32.xlu0 %v1866
        %v1930 = vpop.xlane.xlu0 %1929
        %1931 = vadd.xlane.f32.xlu0 %v1868
        %v1932 = vpop.xlane.xlu0 %1931
        %1933 = vadd.xlane.f32.xlu0 %v1870
        %v1934 = vpop.xlane.xlu0 %1933
        %1935 = vadd.xlane.f32.xlu0 %v1872
        %v1936 = vpop.xlane.xlu0 %1935
        %1937 = vadd.xlane.f32.xlu0 %v1874
        %v1938 = vpop.xlane.xlu0 %1937
        %1939 = vadd.xlane.f32.xlu0 %v1876
        %v1940 = vpop.xlane.xlu0 %1939
        %1941 = vadd.xlane.f32.xlu0 %v1878
        %v1942 = vpop.xlane.xlu0 %1941
        %1943 = vadd.xlane.f32.xlu0 %v1880
        %v1944 = vpop.xlane.xlu0 %1943
        %1945 = vadd.xlane.f32.xlu0 %v1882
        %v1946 = vpop.xlane.xlu0 %1945
        %v1947 = vrcp.pop %v1884
        %v1948 = vrcp.pop %v1886
        %v1949 = vrcp.pop %v1888
        %v1950 = vrcp.pop %v1890
        %v1951 = vrcp.pop %v1892
        %v1952 = vrcp.pop %v1894
        %v1953 = vrcp.pop %v1896
        %v1954 = vrcp.pop %v1898
        %v1955 = vrcp.pop %v1900
        %v1956 = vrcp.pop %v1902
        %v1957 = vrcp.pop %v1904
        %v1958 = vrcp.pop %v1906
        %v1959 = vrcp.pop %v1908
        %v1960 = vrcp.pop %v1910
        %v1961 = vrcp.pop %v1912
        %v1962 = vrcp.pop %v1914
        %v1963 = vrcp.pop %v1916
        %v1964 = vrcp.pop %v1918
        %v1965 = vrcp.pop %v1920
        %v1966 = vrcp.pop %v1922
        %v1967 = vrcp.pop %v1924
        %v1968 = vrcp.pop %v1926
        %v1969 = vrcp.pop %v1928
        %v1970 = vrcp.pop %v1930
        %v1971 = vrcp.pop %v1932
        %v1972 = vrcp.pop %v1934
        %v1973 = vrcp.pop %v1936
        %v1974 = vrcp.pop %v1938
        %v1975 = vrcp.pop %v1940
        %v1976 = vrcp.pop %v1942
        %v1977 = vrcp.pop %v1944
        %v1978 = vrcp.pop %v1946
        %v1979 = vmul.f32 %v1884, %v1947
        %v1980 = vmul.f32 %v1886, %v1948
        %v1981 = vmul.f32 %v1888, %v1949
        %v1982 = vmul.f32 %v1890, %v1950
        %v1983 = vmul.f32 %v1892, %v1951
        %v1984 = vmul.f32 %v1894, %v1952
        %v1985 = vmul.f32 %v1896, %v1953
        %v1986 = vmul.f32 %v1898, %v1954
        %v1987 = vmul.f32 %v1900, %v1955
        %v1988 = vmul.f32 %v1902, %v1956
        %v1989 = vmul.f32 %v1904, %v1957
        %v1990 = vmul.f32 %v1906, %v1958
        %v1991 = vmul.f32 %v1908, %v1959
        %v1992 = vmul.f32 %v1910, %v1960
        %v1993 = vmul.f32 %v1912, %v1961
        %v1994 = vmul.f32 %v1914, %v1962
        %v1995 = vmul.f32 %v1916, %v1963
        %v1996 = vmul.f32 %v1918, %v1964
        %v1997 = vmul.f32 %v1920, %v1965
        %v1998 = vmul.f32 %v1922, %v1966
        %v1999 = vmul.f32 %v1924, %v1967
        %v2000 = vmul.f32 %v1926, %v1968
        %v2001 = vmul.f32 %v1928, %v1969
        %v2002 = vmul.f32 %v1930, %v1970
        %v2003 = vmul.f32 %v1932, %v1971
        %v2004 = vmul.f32 %v1934, %v1972
        %v2005 = vmul.f32 %v1936, %v1973
        %v2006 = vmul.f32 %v1938, %v1974
        %v2007 = vmul.f32 %v1940, %v1975
        %v2008 = vmul.f32 %v1942, %v1976
        %v2009 = vmul.f32 %v1944, %v1977
        %v2010 = vmul.f32 %v1946, %v1978
        %v2011 = vsub.f32 2.0, %v1979
        %v2012 = vsub.f32 2.0, %v1980
        %v2013 = vsub.f32 2.0, %v1981
        %v2014 = vsub.f32 2.0, %v1982
        %v2015 = vsub.f32 2.0, %v1983
        %v2016 = vsub.f32 2.0, %v1984
        %v2017 = vsub.f32 2.0, %v1985
        %v2018 = vsub.f32 2.0, %v1986
        %v2019 = vsub.f32 2.0, %v1987
        %v2020 = vsub.f32 2.0, %v1988
        %v2021 = vsub.f32 2.0, %v1989
        %v2022 = vsub.f32 2.0, %v1990
        %v2023 = vsub.f32 2.0, %v1991
        %v2024 = vsub.f32 2.0, %v1992
        %v2025 = vsub.f32 2.0, %v1993
        %v2026 = vsub.f32 2.0, %v1994
        %v2027 = vsub.f32 2.0, %v1995
        %v2028 = vsub.f32 2.0, %v1996
        %v2029 = vsub.f32 2.0, %v1997
        %v2030 = vsub.f32 2.0, %v1998
        %v2031 = vsub.f32 2.0, %v1999
        %v2032 = vsub.f32 2.0, %v2000
        %v2033 = vsub.f32 2.0, %v2001
        %v2034 = vsub.f32 2.0, %v2002
        %v2035 = vsub.f32 2.0, %v2003
        %v2036 = vsub.f32 2.0, %v2004
        %v2037 = vsub.f32 2.0, %v2005
        %v2038 = vsub.f32 2.0, %v2006
        %v2039 = vsub.f32 2.0, %v2007
        %v2040 = vsub.f32 2.0, %v2008
        %v2041 = vsub.f32 2.0, %v2009
        %v2042 = vsub.f32 2.0, %v2010
        %v2043 = vmul.f32 %v1947, %v2011
        %v2044 = vmul.f32 %v1948, %v2012
        %v2045 = vmul.f32 %v1949, %v2013
        %v2046 = vmul.f32 %v1950, %v2014
        %v2047 = vmul.f32 %v1951, %v2015
        %v2048 = vmul.f32 %v1952, %v2016
        %v2049 = vmul.f32 %v1953, %v2017
        %v2050 = vmul.f32 %v1954, %v2018
        %v2051 = vmul.f32 %v1955, %v2019
        %v2052 = vmul.f32 %v1956, %v2020
        %v2053 = vmul.f32 %v1957, %v2021
        %v2054 = vmul.f32 %v1958, %v2022
        %v2055 = vmul.f32 %v1959, %v2023
        %v2056 = vmul.f32 %v1960, %v2024
        %v2057 = vmul.f32 %v1961, %v2025
        %v2058 = vmul.f32 %v1962, %v2026
        %v2059 = vmul.f32 %v1963, %v2027
        %v2060 = vmul.f32 %v1964, %v2028
        %v2061 = vmul.f32 %v1965, %v2029
        %v2062 = vmul.f32 %v1966, %v2030
        %v2063 = vmul.f32 %v1967, %v2031
        %v2064 = vmul.f32 %v1968, %v2032
        %v2065 = vmul.f32 %v1969, %v2033
        %v2066 = vmul.f32 %v1970, %v2034
        %v2067 = vmul.f32 %v1971, %v2035
        %v2068 = vmul.f32 %v1972, %v2036
        %v2069 = vmul.f32 %v1973, %v2037
        %v2070 = vmul.f32 %v1974, %v2038
        %v2071 = vmul.f32 %v1975, %v2039
        %v2072 = vmul.f32 %v1976, %v2040
        %v2073 = vmul.f32 %v1977, %v2041
        %v2074 = vmul.f32 %v1978, %v2042
        %v2075 = vmul.f32 %v1820, %v2043
        %v2076 = vmul.f32 %v1822, %v2044
        %v2077 = vmul.f32 %v1824, %v2045
        %v2078 = vmul.f32 %v1826, %v2046
        %v2079 = vmul.f32 %v1828, %v2047
        %v2080 = vmul.f32 %v1830, %v2048
        %v2081 = vmul.f32 %v1832, %v2049
        %v2082 = vmul.f32 %v1834, %v2050
        %v2083 = vmul.f32 %v1836, %v2051
        %v2084 = vmul.f32 %v1838, %v2052
        %v2085 = vmul.f32 %v1840, %v2053
        %v2086 = vmul.f32 %v1842, %v2054
        %v2087 = vmul.f32 %v1844, %v2055
        %v2088 = vmul.f32 %v1846, %v2056
        %v2089 = vmul.f32 %v1848, %v2057
        %v2090 = vmul.f32 %v1850, %v2058
        %v2091 = vmul.f32 %v1852, %v2059
        %v2092 = vmul.f32 %v1854, %v2060
        %v2093 = vmul.f32 %v1856, %v2061
        %v2094 = vmul.f32 %v1858, %v2062
        %v2095 = vmul.f32 %v1860, %v2063
        %v2096 = vmul.f32 %v1862, %v2064
        %v2097 = vmul.f32 %v1864, %v2065
        %v2098 = vmul.f32 %v1866, %v2066
        %v2099 = vmul.f32 %v1868, %v2067
        %v2100 = vmul.f32 %v1870, %v2068
        %v2101 = vmul.f32 %v1872, %v2069
        %v2102 = vmul.f32 %v1874, %v2070
        %v2103 = vmul.f32 %v1876, %v2071
        %v2104 = vmul.f32 %v1878, %v2072
        %v2105 = vmul.f32 %v1880, %v2073
        %v2106 = vmul.f32 %v1882, %v2074
        %2107 = vst [vmem:[%s218] sm:$0xff] %v2075
        %2108 = vst [vmem:[%s218 + $0x8] sm:$0xff] %v2076
        %2109 = vst [vmem:[%s218 + $0x10] sm:$0xff] %v2077
        %2110 = vst [vmem:[%s218 + $0x18] sm:$0xff] %v2078
        %2111 = vst [vmem:[%s218 + $0x20] sm:$0xff] %v2079
        %2112 = vst [vmem:[%s218 + $0x28] sm:$0xff] %v2080
        %2113 = vst [vmem:[%s218 + $0x30] sm:$0xff] %v2081
        %2114 = vst [vmem:[%s218 + $0x38] sm:$0xff] %v2082
        %2115 = vst [vmem:[%s218 + $0x40] sm:$0xff] %v2083
        %2116 = vst [vmem:[%s218 + $0x48] sm:$0xff] %v2084
        %2117 = vst [vmem:[%s218 + $0x50] sm:$0xff] %v2085
        %2118 = vst [vmem:[%s218 + $0x58] sm:$0xff] %v2086
        %2119 = vst [vmem:[%s218 + $0x60] sm:$0xff] %v2087
        %2120 = vst [vmem:[%s218 + $0x68] sm:$0xff] %v2088
        %2121 = vst [vmem:[%s218 + $0x70] sm:$0xff] %v2089
        %2122 = vst [vmem:[%s218 + $0x78] sm:$0xff] %v2090
        %2123 = vst [vmem:[%s218 + $0x80] sm:$0xff] %v2091
        %2124 = vst [vmem:[%s218 + $0x88] sm:$0xff] %v2092
        %2125 = vst [vmem:[%s218 + $0x90] sm:$0xff] %v2093
        %2126 = vst [vmem:[%s218 + $0x98] sm:$0xff] %v2094
        %2127 = vst [vmem:[%s218 + $0xa0] sm:$0xff] %v2095
        %2128 = vst [vmem:[%s218 + $0xa8] sm:$0xff] %v2096
        %2129 = vst [vmem:[%s218 + $0xb0] sm:$0xff] %v2097
        %2130 = vst [vmem:[%s218 + $0xb8] sm:$0xff] %v2098
        %2131 = vst [vmem:[%s218 + $0xc0] sm:$0xff] %v2099
        %2132 = vst [vmem:[%s218 + $0xc8] sm:$0xff] %v2100
        %2133 = vst [vmem:[%s218 + $0xd0] sm:$0xff] %v2101
        %2134 = vst [vmem:[%s218 + $0xd8] sm:$0xff] %v2102
        %2135 = vst [vmem:[%s218 + $0xe0] sm:$0xff] %v2103
        %2136 = vst [vmem:[%s218 + $0xe8] sm:$0xff] %v2104
        %2137 = vst [vmem:[%s218 + $0xf0] sm:$0xff] %v2105
        %2138 = vst [vmem:[%s218 + $0xf8] sm:$0xff] %v2106
        %s2139 = sand.u32 %s137, 1
        %s2140 = scalar_lea.sflag [#allocation3], %s2139
        %s2141 = sand.u32 %s137, 1
        %s2142 = smul.addr %s2141, 256
        %s2143 = scalar_lea.vmem [#allocation2], %s2142
        // Predicated region
        $region41: #{tpu_custom_call.1} parent=39 // pred_check
          %p2144 = pneg %p147
        $region42: #{tpu_custom_call.1} parent=39 // pred_check_branch
          %2146 = sbr.rel (%p2144) target = $region44
        $region43: #{tpu_custom_call.1} parent=39 // pred_region
          %s2147 = smul.u32 32, %s19
          %2149 = vsyncadd %s2140, 0
          %s2150 = smul.addr %s2147, 8
          %s2151 = scalar_lea.hbm %s5, %s2150
          %s2152 = sshll.u32 %s2143, 4
          %s2153 = int_to_ptr.vmem [resolvable:$true] %s2152
          %s2154 = sshll.u32 %s2151, 4
          %s2155 = int_to_ptr.hbm [resolvable:$true] %s2154
          %2160 = dma.vmem_to_hbm [thread:$0]  %s2153, 4096, %s2155, %s2140, 128, 128, 8
        $region44: #{tpu_custom_call.1} parent=39 // pred_fallthru
          _
      $region40: #{tpu_custom_call.1} parent=5 // pred_fallthru
        _
      %p2161 = scmp.le.s32.totalorder 2, %s14
      // Predicated region
      $region45: #{tpu_custom_call.1} parent=5 // pred_check
        %p2162 = pneg %p2161
      $region46: #{tpu_custom_call.1} parent=5 // pred_check_branch
        %2164 = sbr.rel (%p2162) target = $region48
      $region47: #{tpu_custom_call.1} parent=5 // pred_region
        %s2165 = ssub.s32 %s14, 2
        // Predicated region
        $region49: #{tpu_custom_call.1} parent=47 // pred_check
          %p2166 = pneg %p153
        $region50: #{tpu_custom_call.1} parent=47 // pred_check_branch
          %2168 = sbr.rel (%p2166) target = $region52
        $region51: #{tpu_custom_call.1} parent=47 // pred_region
          %s2169 = sand.u32 %s138, 1
          %s2170 = scalar_lea.sflag [#allocation3], %s2169
          %s2171 = sand.u32 %s138, 1
          %s2172 = smul.addr %s2171, 256
          %s2173 = scalar_lea.vmem [#allocation2], %s2172
          %2175 = dma.done %s2170, 4096
        $region52: #{tpu_custom_call.1} parent=47 // pred_fallthru
          _
      $region48: #{tpu_custom_call.1} parent=5 // pred_fallthru
        _
    $region6: #{tpu_custom_call.1} parent=1 // loop_footer
      %s18 = sadd.s32 1, %s14
    $region7: #{tpu_custom_call.1} parent=1 // loop_footer_branch
      %13 = sbr.rel target = $region3
    $region8: #{tpu_custom_call.1} parent=1 // loop_exit
      _
    %2176 = vsyncpa [#allocation3], 1
    %s2177 = scalar_lea.sflag [#allocation3], 1
    %2178 = vsyncpa %s2177, 1

</llo_original>
